<compile_context>
chip_gen: v6e
topology: v6e:2x2x1
jax: 0.10.0
libtpu: 0.0.40
codegen_flags: <defaults>
</compile_context>

<pallas_src>
import math

import jax
import jax.numpy as jnp
from jax.experimental import pallas as pl
from jax.experimental.pallas import tpu as pltpu

# ---- model hyper-parameters (fixed by the module definition) -----------------
FEAT = 8            # GraphEmbedding input feature size
EMBED = 32          # embedding_size (divisible by n_head)
HIDDEN = 32         # hidden_size (decoder-only; unused by the encoder path)
N_HEAD = 8
HEAD_DIM = EMBED // N_HEAD
FF_HIDDEN = 512     # att_layer feed_forward_hidden default
N_LAYERS = 3        # AttentionModule n_self_attentions default
NEG_INF = -1e30


# ------------------------------ fused kernel ----------------------------------
def _encoder_kernel(x_ref, wemb_ref,
                    amask_ref, segones_ref, tsel_ref, tselT_ref,
                    khmask_ref, vhmask_ref, mavg_ref,
                    wqkv_ref, bqkv_ref, wo_ref, bo_ref,
                    w1_ref, b1_ref, w2_ref, b2_ref,
                    wc_ref, bc_ref, hrest_ref,
                    emb_ref, h_ref, query_ref):
    f32 = jnp.float32
    n_layers = wqkv_ref.shape[0]
    scale = 1.0 / math.sqrt(HEAD_DIM)

    # GraphEmbedding: (BS, 8) @ (8, E)
    emb = jnp.dot(x_ref[...], wemb_ref[...], preferred_element_type=f32)
    emb_ref[...] = emb

    amask = amask_ref[...]      # (BS, H*BS) additive batch mask tiled over heads
    segones = segones_ref[...]  # (H*BS, H*BS) block-ones per head segment
    tsel = tsel_ref[...]        # (BS, H*BS) lane-tiling selector
    tselT = tselT_ref[...]      # (H*BS, BS) sublane-tiling selector
    khmask = khmask_ref[...]    # (E, H*BS) head-block mask (for K side)
    vhmask = vhmask_ref[...]    # (H*BS, E) head-block mask (for V side)

    h = emb                     # (BS, E) activation, stays on-chip

    for l in range(n_layers):   # unrolled; static leading-dim weight index
        # ---------- fused QKV: one lane-dense (BS,E)@(E,3E) MXU op ----------
        qkv = jnp.dot(h, wqkv_ref[l], preferred_element_type=f32) + bqkv_ref[l]
        q = qkv[:, :EMBED]                  # (BS, E)  heads folded along lanes
        k = qkv[:, EMBED:2 * EMBED]
        v = qkv[:, 2 * EMBED:]

        # ---------- lane-dense all-head attention -----------------------------
        # k_rep[e, h*BS+m] = K[m, e] if e belongs to head h else 0
        k_rep = jnp.dot(k.T, tsel, preferred_element_type=f32) * khmask   # (E, H*BS)
        s = jnp.dot(q, k_rep, preferred_element_type=f32) * scale + amask  # (BS, H*BS)
        s = s - jnp.max(s, axis=-1, keepdims=True)
        p = jnp.exp(s)
        # per-(head, row) segment sum via block-ones matmul; divide on the EUP.
        denom = jnp.dot(p, segones, preferred_element_type=f32)            # (BS, H*BS)
        p = p * pl.reciprocal(denom, approx=True)
        # v_rep[h*BS+m, e] = V[m, e] if e belongs to head h else 0
        v_rep = jnp.dot(tselT, v, preferred_element_type=f32) * vhmask     # (H*BS, E)
        ctx = jnp.dot(p, v_rep, preferred_element_type=f32)                # (BS, E)

        # ---------- fused out-projection (concat-over-heads layout) -----------
        attn = jnp.dot(ctx, wo_ref[l], preferred_element_type=f32) + bo_ref[l]
        h1 = h + attn                                                      # residual 1

        # ---------- feed forward (lane-dense 512-wide intermediate) -----------
        ff = jnp.maximum(
            jnp.dot(h1, w1_ref[l], preferred_element_type=f32) + b1_ref[l], 0.0)
        ff = jnp.dot(ff, w2_ref[l], preferred_element_type=f32) + b2_ref[l]
        h = h1 + ff                                                        # residual 2

    h_ref[...] = h

    # ---------- context head: per-batch mean via constant matmul ----------
    h_mean = jnp.dot(mavg_ref[...], h, preferred_element_type=f32)         # (B, E)
    h_bar = jnp.dot(h_mean, wc_ref[...], preferred_element_type=f32) + bc_ref[...]
    query_ref[...] = h_bar + hrest_ref[...]                                # (B, E)


# -------------------- host-side prep (run ONCE at model load) ------------------
def pack_params(params):
    """PyTorch-layout params -> kernel layout (pre-transposed, lane-dense)."""
    E = EMBED
    wqkv, bqkv, wo, bo, w1, b1, w2, b2 = [], [], [], [], [], [], [], []
    for lp in params["layers"]:
        wqkv.append(lp["in_proj_w"].T)                 # (E, 3E), cols = [Q|K|V]
        bqkv.append(lp["in_proj_b"].reshape(1, 3 * E))
        wo.append(lp["out_proj_w"].T)                  # (E, E)
        bo.append(lp["out_proj_b"].reshape(1, E))
        w1.append(lp["ff1_w"].T)                       # (E, FF)
        b1.append(lp["ff1_b"].reshape(1, FF_HIDDEN))
        w2.append(lp["ff2_w"].T)                       # (FF, E)
        b2.append(lp["ff2_b"].reshape(1, E))
    packed = dict(
        wqkv=jnp.stack(wqkv), bqkv=jnp.stack(bqkv),
        wo=jnp.stack(wo), bo=jnp.stack(bo),
        w1=jnp.stack(w1), b1=jnp.stack(b1),
        w2=jnp.stack(w2), b2=jnp.stack(b2),
        wemb=params["graph_embedding"],                # (8, E)
        wc=params["h_ctx_w"].T,                        # (E, E)
        bc=params["h_ctx_b"].reshape(1, E),
        # v_weight_embed(init_w) depends only on parameters -> fold to constant.
        h_rest=(params["init_w"] @ params["v_w_w"].T
                + params["v_w_b"]).reshape(1, E),
    )
    return packed


def encoder_constants(batch, seq):
    """Constant masks / selectors for the lane-dense attention (run once)."""
    BS = batch * seq
    HBS = N_HEAD * BS
    bid = jnp.arange(BS) // seq                                   # batch id per row
    base_mask = jnp.where(bid[:, None] == bid[None, :], 0.0,
                          NEG_INF).astype(jnp.float32)            # (BS, BS)
    attn_mask = jnp.tile(base_mask, (1, N_HEAD))                  # (BS, H*BS)

    col_pos = jnp.arange(HBS) % BS                                # key row of column
    col_head = jnp.arange(HBS) // BS                              # head of column
    tile_sel = (jnp.arange(BS)[:, None] == col_pos[None, :]
                ).astype(jnp.float32)                             # (BS, H*BS)
    tile_sel_t = tile_sel.T                                       # (H*BS, BS)

    e_head = jnp.arange(EMBED) // HEAD_DIM
    k_head_mask = (e_head[:, None] == col_head[None, :]
                   ).astype(jnp.float32)                          # (E, H*BS)
    v_head_mask = k_head_mask.T                                   # (H*BS, E)

    seg_ones = (col_head[:, None] == col_head[None, :]
                ).astype(jnp.float32)                             # (H*BS, H*BS)
    mavg = (jnp.arange(batch)[:, None] == bid[None, :]
            ).astype(jnp.float32) / seq                           # (B, BS)
    return dict(attn_mask=attn_mask, tile_sel=tile_sel, tile_sel_t=tile_sel_t,
                k_head_mask=k_head_mask, v_head_mask=v_head_mask,
                seg_ones=seg_ones, mavg=mavg)


# ------------------------------ jitted forward ---------------------------------
@jax.jit
def hetnet_tsne_forward(inputs, packed, consts):
    """inputs: (B, S, 8) f32; packed/consts built once outside the jit path."""
    B, S, F = inputs.shape
    BS, HBS = B * S, N_HEAD * B * S
    x_flat = inputs.reshape(BS, F)

    vmem = pl.BlockSpec(memory_space=pltpu.MemorySpace.VMEM)
    operands = (x_flat, packed["wemb"],
                consts["attn_mask"], consts["seg_ones"], consts["tile_sel"],
                consts["tile_sel_t"], consts["k_head_mask"], consts["v_head_mask"],
                consts["mavg"],
                packed["wqkv"], packed["bqkv"], packed["wo"], packed["bo"],
                packed["w1"], packed["b1"], packed["w2"], packed["b2"],
                packed["wc"], packed["bc"], packed["h_rest"])

    per_layer = (2 * BS * EMBED * 3 * EMBED          # qkv
                 + 2 * EMBED * BS * HBS              # k_rep
                 + 2 * BS * EMBED * HBS              # scores
                 + 2 * BS * HBS * HBS                # denom
                 + 2 * HBS * BS * EMBED              # v_rep
                 + 2 * BS * HBS * EMBED              # ctx
                 + 2 * BS * EMBED * EMBED            # out-proj
                 + 4 * BS * EMBED * FF_HIDDEN)       # ff1 + ff2
    flops = (N_LAYERS * per_layer + 2 * BS * FEAT * EMBED
             + 2 * B * BS * EMBED + 2 * B * EMBED * EMBED)
    out_elems = 2 * BS * EMBED + B * EMBED
    bytes_accessed = 4 * (sum(int(a.size) for a in operands) + out_elems)

    emb_flat, h_flat, query = pl.pallas_call(
        _encoder_kernel,
        out_shape=(
            jax.ShapeDtypeStruct((BS, EMBED), jnp.float32),   # embedded
            jax.ShapeDtypeStruct((BS, EMBED), jnp.float32),   # encoder output
            jax.ShapeDtypeStruct((B, EMBED), jnp.float32),    # initial query
        ),
        in_specs=[vmem] * len(operands),
        out_specs=(vmem, vmem, vmem),
        cost_estimate=pl.CostEstimate(
            flops=int(flops),
            transcendentals=int(2 * N_LAYERS * BS * HBS),
            bytes_accessed=int(bytes_accessed)),
        # No grid: the whole encoder (weights + activations, <1 MiB) lives in
        # VMEM for one invocation on every generation (incl. v7x's 64 MiB).
    )(*operands)

    h = h_flat.reshape(B, S, EMBED)
    # TODO(synk): decode while-loop omitted (TA_State/Beta_Glimpse/Beta_Pointer
    # undefined in the reference); returning encoder outputs + initial query
    # plus embedded.reshape(-1, E) (the module's third return value).
    return h, query, emb_flat


# --------------------------- pure-JAX reference --------------------------------
def _reference_forward(inputs, params):
    B, S, _ = inputs.shape
    scale = 1.0 / math.sqrt(HEAD_DIM)
    emb = jnp.einsum('bsf,fe->bse', inputs, params["graph_embedding"])
    h = emb
    for lp in params["layers"]:
        x = h
        qkv = jnp.einsum('bse,oe->bso', x, lp["in_proj_w"]) + lp["in_proj_b"]
        q, k, v = jnp.split(qkv, 3, axis=-1)

        def split_heads(t):
            return t.reshape(B, S, N_HEAD, HEAD_DIM).transpose(0, 2, 1, 3)

        qh, kh, vh = split_heads(q), split_heads(k), split_heads(v)
        s = jnp.einsum('bhsd,bhtd->bhst', qh, kh) * scale
        p = jax.nn.softmax(s, axis=-1)
        o = jnp.einsum('bhst,bhtd->bhsd', p, vh)
        o = o.transpose(0, 2, 1, 3).reshape(B, S, EMBED)
        attn = jnp.einsum('bse,oe->bso', o, lp["out_proj_w"]) + lp["out_proj_b"]
        h1 = x + attn
        ff = jax.nn.relu(jnp.einsum('bse,fe->bsf', h1, lp["ff1_w"]) + lp["ff1_b"])
        ff = jnp.einsum('bsf,ef->bse', ff, lp["ff2_w"]) + lp["ff2_b"]
        h = h1 + ff
    h_mean = h.mean(axis=1)
    h_bar = h_mean @ params["h_ctx_w"].T + params["h_ctx_b"]
    h_rest = params["init_w"] @ params["v_w_w"].T + params["v_w_b"]
    query = h_bar + h_rest
    return h, query, emb.reshape(-1, EMBED)


# ---------------------------- parameter init -----------------------------------
def init_params(key):
    keys = list(jax.random.split(key, 40))
    it = iter(keys)

    def u(shape, scale):
        return jax.random.uniform(next(it), shape, jnp.float32, -scale, scale)

    params = {
        # GraphEmbedding: learned (8, E) projection shared across the batch.
        "graph_embedding": u((FEAT, EMBED), 1.0 / math.sqrt(EMBED)),
        "init_w": u((2 * EMBED,), 1.0),                  # uniform_(-1, 1)
        "h_ctx_w": u((EMBED, EMBED), 1.0 / math.sqrt(EMBED)),
        "h_ctx_b": u((EMBED,), 1.0 / math.sqrt(EMBED)),
        "v_w_w": u((EMBED, 2 * EMBED), 1.0 / math.sqrt(2 * EMBED)),
        "v_w_b": u((EMBED,), 1.0 / math.sqrt(2 * EMBED)),
        "layers": [],
    }
    for _ in range(N_LAYERS):
        params["layers"].append(dict(
            in_proj_w=u((3 * EMBED, EMBED), 1.0 / math.sqrt(EMBED)),
            in_proj_b=u((3 * EMBED,), 1.0 / math.sqrt(EMBED)),
            out_proj_w=u((EMBED, EMBED), 1.0 / math.sqrt(EMBED)),
            out_proj_b=u((EMBED,), 1.0 / math.sqrt(EMBED)),
            ff1_w=u((FF_HIDDEN, EMBED), 1.0 / math.sqrt(EMBED)),
            ff1_b=u((FF_HIDDEN,), 1.0 / math.sqrt(EMBED)),
            ff2_w=u((EMBED, FF_HIDDEN), 1.0 / math.sqrt(FF_HIDDEN)),
            ff2_b=u((EMBED,), 1.0 / math.sqrt(FF_HIDDEN)),
        ))
    return params


if __name__ == "__main__":
    key = jax.random.PRNGKey(0)
    k_in, k_par = jax.random.split(key)
    B, S = 2, 8
    inputs = jax.random.uniform(k_in, (B, S, FEAT), jnp.float32)
    params = init_params(k_par)

    # Pack weights / build constant masks ONCE (outside the jitted call path).
    packed = pack_params(params)
    consts = encoder_constants(B, S)

    h, query, embedded_flat = hetnet_tsne_forward(inputs, packed, consts)
    jax.block_until_ready((h, query, embedded_flat))

    assert h.shape == (B, S, EMBED)
    assert query.shape == (B, EMBED)
    assert embedded_flat.shape == (B * S, EMBED)
    assert bool(jnp.all(jnp.isfinite(h))) and bool(jnp.all(jnp.isfinite(query)))

    # Cross-check against a pure-JAX reference (loose tolerance: default TPU
    # matmul precision may differ slightly between decompositions).
    h_ref, q_ref, e_ref = _reference_forward(inputs, params)
    assert bool(jnp.allclose(h, h_ref, rtol=5e-2, atol=5e-2)), "h mismatch"
    assert bool(jnp.allclose(query, q_ref, rtol=5e-2, atol=5e-2)), "query mismatch"
    assert bool(jnp.allclose(embedded_flat, e_ref, rtol=5e-2, atol=5e-2)), "embed mismatch"

    print("KERNEL_OK")
</pallas_src>

<mosaic_0001>
module attributes {stable_mosaic.version = 11 : i64} {
  func.func @_encoder_kernel(%arg0: memref<16x8xf32, #tpu.memory_space<vmem>>, %arg1: memref<8x32xf32, #tpu.memory_space<vmem>>, %arg2: memref<16x128xf32, #tpu.memory_space<vmem>>, %arg3: memref<128x128xf32, #tpu.memory_space<vmem>>, %arg4: memref<16x128xf32, #tpu.memory_space<vmem>>, %arg5: memref<128x16xf32, #tpu.memory_space<vmem>>, %arg6: memref<32x128xf32, #tpu.memory_space<vmem>>, %arg7: memref<128x32xf32, #tpu.memory_space<vmem>>, %arg8: memref<2x16xf32, #tpu.memory_space<vmem>>, %arg9: memref<3x32x96xf32, #tpu.memory_space<vmem>>, %arg10: memref<3x1x96xf32, #tpu.memory_space<vmem>>, %arg11: memref<3x32x32xf32, #tpu.memory_space<vmem>>, %arg12: memref<3x1x32xf32, #tpu.memory_space<vmem>>, %arg13: memref<3x32x512xf32, #tpu.memory_space<vmem>>, %arg14: memref<3x1x512xf32, #tpu.memory_space<vmem>>, %arg15: memref<3x512x32xf32, #tpu.memory_space<vmem>>, %arg16: memref<3x1x32xf32, #tpu.memory_space<vmem>>, %arg17: memref<32x32xf32, #tpu.memory_space<vmem>>, %arg18: memref<1x32xf32, #tpu.memory_space<vmem>>, %arg19: memref<1x32xf32, #tpu.memory_space<vmem>>, %arg20: memref<16x32xf32, #tpu.memory_space<vmem>>, %arg21: memref<16x32xf32, #tpu.memory_space<vmem>>, %arg22: memref<2x32xf32, #tpu.memory_space<vmem>>) attributes {dimension_semantics = [], scalar_prefetch = 0 : i64, scratch_operands = 0 : i64, tpu.core_type = #tpu.core_type<tc>} {
    %c0 = arith.constant 0 : index
    %c0_0 = arith.constant 0 : index
    %0 = vector.load %arg0[%c0, %c0_0] : memref<16x8xf32, #tpu.memory_space<vmem>>, vector<16x8xf32>
    %c0_1 = arith.constant 0 : index
    %c0_2 = arith.constant 0 : index
    %1 = vector.load %arg1[%c0_1, %c0_2] : memref<8x32xf32, #tpu.memory_space<vmem>>, vector<8x32xf32>
    %cst = arith.constant dense<0.000000e+00> : vector<16x32xf32>
    %2 = tpu.matmul %0, %1, %cst {dimension_numbers = #tpu.dot_dimension_numbers<[1], [0], [0], [1], [0, 0, 1, 1], [], []>} : vector<16x8xf32>, vector<8x32xf32>, vector<16x32xf32> -> vector<16x32xf32>
    %c0_3 = arith.constant 0 : index
    %c0_4 = arith.constant 0 : index
    %3 = vector.load %arg20[%c0_3, %c0_4] : memref<16x32xf32, #tpu.memory_space<vmem>>, vector<16x32xf32>
    tpu.vector_store %arg20[%c0_3, %c0_4], %2 {strides = array<i32>} : memref<16x32xf32, #tpu.memory_space<vmem>>, vector<16x32xf32>,
    %c0_5 = arith.constant 0 : index
    %c0_6 = arith.constant 0 : index
    %4 = vector.load %arg2[%c0_5, %c0_6] : memref<16x128xf32, #tpu.memory_space<vmem>>, vector<16x128xf32>
    %c0_7 = arith.constant 0 : index
    %c0_8 = arith.constant 0 : index
    %5 = vector.load %arg3[%c0_7, %c0_8] : memref<128x128xf32, #tpu.memory_space<vmem>>, vector<128x128xf32>
    %c0_9 = arith.constant 0 : index
    %c0_10 = arith.constant 0 : index
    %6 = vector.load %arg4[%c0_9, %c0_10] : memref<16x128xf32, #tpu.memory_space<vmem>>, vector<16x128xf32>
    %c0_11 = arith.constant 0 : index
    %c0_12 = arith.constant 0 : index
    %7 = vector.load %arg5[%c0_11, %c0_12] : memref<128x16xf32, #tpu.memory_space<vmem>>, vector<128x16xf32>
    %c0_13 = arith.constant 0 : index
    %c0_14 = arith.constant 0 : index
    %8 = vector.load %arg6[%c0_13, %c0_14] : memref<32x128xf32, #tpu.memory_space<vmem>>, vector<32x128xf32>
    %c0_15 = arith.constant 0 : index
    %c0_16 = arith.constant 0 : index
    %9 = vector.load %arg7[%c0_15, %c0_16] : memref<128x32xf32, #tpu.memory_space<vmem>>, vector<128x32xf32>
    %c0_17 = arith.constant 0 : index
    %c0_18 = arith.constant 0 : index
    %c0_19 = arith.constant 0 : index
    %10 = vector.load %arg9[%c0_17, %c0_18, %c0_19] : memref<3x32x96xf32, #tpu.memory_space<vmem>>, vector<1x32x96xf32>
    %11 = vector.shape_cast %10 : vector<1x32x96xf32> to vector<32x96xf32>
    %cst_20 = arith.constant dense<0.000000e+00> : vector<16x96xf32>
    %12 = tpu.matmul %2, %11, %cst_20 {dimension_numbers = #tpu.dot_dimension_numbers<[1], [0], [0], [1], [0, 0, 1, 1], [], []>} : vector<16x32xf32>, vector<32x96xf32>, vector<16x96xf32> -> vector<16x96xf32>
    %c0_21 = arith.constant 0 : index
    %c0_22 = arith.constant 0 : index
    %c0_23 = arith.constant 0 : index
    %13 = vector.load %arg10[%c0_21, %c0_22, %c0_23] : memref<3x1x96xf32, #tpu.memory_space<vmem>>, vector<1x1x96xf32>
    %14 = vector.shape_cast %13 : vector<1x1x96xf32> to vector<1x96xf32>
    %15 = vector.broadcast %14 : vector<1x96xf32> to vector<16x96xf32>
    %16 = arith.addf %12, %15 : vector<16x96xf32>
    %17 = vector.extract_strided_slice %16 {offsets = [0, 0], sizes = [16, 32], strides = [1, 1]} : vector<16x96xf32> to vector<16x32xf32>
    %18 = vector.extract_strided_slice %16 {offsets = [0, 32], sizes = [16, 32], strides = [1, 1]} : vector<16x96xf32> to vector<16x32xf32>
    %19 = vector.extract_strided_slice %16 {offsets = [0, 64], sizes = [16, 32], strides = [1, 1]} : vector<16x96xf32> to vector<16x32xf32>
    %20 = tpu.transpose %18, [1, 0] : vector<16x32xf32> -> vector<32x16xf32>
    %cst_24 = arith.constant dense<0.000000e+00> : vector<32x128xf32>
    %21 = tpu.matmul %20, %6, %cst_24 {dimension_numbers = #tpu.dot_dimension_numbers<[1], [0], [0], [1], [0, 0, 1, 1], [], []>} : vector<32x16xf32>, vector<16x128xf32>, vector<32x128xf32> -> vector<32x128xf32>
    %22 = arith.mulf %21, %8 : vector<32x128xf32>
    %cst_25 = arith.constant dense<0.000000e+00> : vector<16x128xf32>
    %23 = tpu.matmul %17, %22, %cst_25 {dimension_numbers = #tpu.dot_dimension_numbers<[1], [0], [0], [1], [0, 0, 1, 1], [], []>} : vector<16x32xf32>, vector<32x128xf32>, vector<16x128xf32> -> vector<16x128xf32>
    %cst_26 = arith.constant 5.000000e-01 : f32
    %24 = vector.broadcast %cst_26 : f32 to vector<16x128xf32>
    %25 = arith.mulf %23, %24 : vector<16x128xf32>
    %26 = arith.addf %25, %4 : vector<16x128xf32>
    %cst_27 = arith.constant dense<0xFF800000> : vector<16xf32>
    %27 = vector.multi_reduction <maximumf>, %26, %cst_27 [1] : vector<16x128xf32> to vector<16xf32>
    %28 = vector.shape_cast %27 : vector<16xf32> to vector<16x1xf32>
    %29 = vector.broadcast %28 : vector<16x1xf32> to vector<16x128xf32>
    %30 = arith.subf %26, %29 : vector<16x128xf32>
    %31 = math.exp %30 : vector<16x128xf32>
    %cst_28 = arith.constant dense<0.000000e+00> : vector<16x128xf32>
    %32 = tpu.matmul %31, %5, %cst_28 {dimension_numbers = #tpu.dot_dimension_numbers<[1], [0], [0], [1], [0, 0, 1, 1], [], []>} : vector<16x128xf32>, vector<128x128xf32>, vector<16x128xf32> -> vector<16x128xf32>
    %33 = tpu.reciprocal %32 {approx = true} : vector<16x128xf32> -> vector<16x128xf32>
    %34 = arith.mulf %31, %33 : vector<16x128xf32>
    %cst_29 = arith.constant dense<0.000000e+00> : vector<128x32xf32>
    %35 = tpu.matmul %7, %19, %cst_29 {dimension_numbers = #tpu.dot_dimension_numbers<[1], [0], [0], [1], [0, 0, 1, 1], [], []>} : vector<128x16xf32>, vector<16x32xf32>, vector<128x32xf32> -> vector<128x32xf32>
    %36 = arith.mulf %35, %9 : vector<128x32xf32>
    %cst_30 = arith.constant dense<0.000000e+00> : vector<16x32xf32>
    %37 = tpu.matmul %34, %36, %cst_30 {dimension_numbers = #tpu.dot_dimension_numbers<[1], [0], [0], [1], [0, 0, 1, 1], [], []>} : vector<16x128xf32>, vector<128x32xf32>, vector<16x32xf32> -> vector<16x32xf32>
    %c0_31 = arith.constant 0 : index
    %c0_32 = arith.constant 0 : index
    %c0_33 = arith.constant 0 : index
    %38 = vector.load %arg11[%c0_31, %c0_32, %c0_33] : memref<3x32x32xf32, #tpu.memory_space<vmem>>, vector<1x32x32xf32>
    %39 = vector.shape_cast %38 : vector<1x32x32xf32> to vector<32x32xf32>
    %cst_34 = arith.constant dense<0.000000e+00> : vector<16x32xf32>
    %40 = tpu.matmul %37, %39, %cst_34 {dimension_numbers = #tpu.dot_dimension_numbers<[1], [0], [0], [1], [0, 0, 1, 1], [], []>} : vector<16x32xf32>, vector<32x32xf32>, vector<16x32xf32> -> vector<16x32xf32>
    %c0_35 = arith.constant 0 : index
    %c0_36 = arith.constant 0 : index
    %c0_37 = arith.constant 0 : index
    %41 = vector.load %arg12[%c0_35, %c0_36, %c0_37] : memref<3x1x32xf32, #tpu.memory_space<vmem>>, vector<1x1x32xf32>
    %42 = vector.shape_cast %41 : vector<1x1x32xf32> to vector<1x32xf32>
    %43 = vector.broadcast %42 : vector<1x32xf32> to vector<16x32xf32>
    %44 = arith.addf %40, %43 : vector<16x32xf32>
    %45 = arith.addf %2, %44 : vector<16x32xf32>
    %c0_38 = arith.constant 0 : index
    %c0_39 = arith.constant 0 : index
    %c0_40 = arith.constant 0 : index
    %46 = vector.load %arg13[%c0_38, %c0_39, %c0_40] : memref<3x32x512xf32, #tpu.memory_space<vmem>>, vector<1x32x512xf32>
    %47 = vector.shape_cast %46 : vector<1x32x512xf32> to vector<32x512xf32>
    %cst_41 = arith.constant dense<0.000000e+00> : vector<16x512xf32>
    %48 = tpu.matmul %45, %47, %cst_41 {dimension_numbers = #tpu.dot_dimension_numbers<[1], [0], [0], [1], [0, 0, 1, 1], [], []>} : vector<16x32xf32>, vector<32x512xf32>, vector<16x512xf32> -> vector<16x512xf32>
    %c0_42 = arith.constant 0 : index
    %c0_43 = arith.constant 0 : index
    %c0_44 = arith.constant 0 : index
    %49 = vector.load %arg14[%c0_42, %c0_43, %c0_44] : memref<3x1x512xf32, #tpu.memory_space<vmem>>, vector<1x1x512xf32>
    %50 = vector.shape_cast %49 : vector<1x1x512xf32> to vector<1x512xf32>
    %51 = vector.broadcast %50 : vector<1x512xf32> to vector<16x512xf32>
    %52 = arith.addf %48, %51 : vector<16x512xf32>
    %cst_45 = arith.constant 0.000000e+00 : f32
    %53 = vector.broadcast %cst_45 : f32 to vector<16x512xf32>
    %54 = arith.maximumf %52, %53 : vector<16x512xf32>
    %c0_46 = arith.constant 0 : index
    %c0_47 = arith.constant 0 : index
    %c0_48 = arith.constant 0 : index
    %55 = vector.load %arg15[%c0_46, %c0_47, %c0_48] : memref<3x512x32xf32, #tpu.memory_space<vmem>>, vector<1x512x32xf32>
    %56 = vector.shape_cast %55 : vector<1x512x32xf32> to vector<512x32xf32>
    %cst_49 = arith.constant dense<0.000000e+00> : vector<16x32xf32>
    %57 = tpu.matmul %54, %56, %cst_49 {dimension_numbers = #tpu.dot_dimension_numbers<[1], [0], [0], [1], [0, 0, 1, 1], [], []>} : vector<16x512xf32>, vector<512x32xf32>, vector<16x32xf32> -> vector<16x32xf32>
    %c0_50 = arith.constant 0 : index
    %c0_51 = arith.constant 0 : index
    %c0_52 = arith.constant 0 : index
    %58 = vector.load %arg16[%c0_50, %c0_51, %c0_52] : memref<3x1x32xf32, #tpu.memory_space<vmem>>, vector<1x1x32xf32>
    %59 = vector.shape_cast %58 : vector<1x1x32xf32> to vector<1x32xf32>
    %60 = vector.broadcast %59 : vector<1x32xf32> to vector<16x32xf32>
    %61 = arith.addf %57, %60 : vector<16x32xf32>
    %62 = arith.addf %45, %61 : vector<16x32xf32>
    %c1 = arith.constant 1 : index
    %c0_53 = arith.constant 0 : index
    %c0_54 = arith.constant 0 : index
    %63 = vector.load %arg9[%c1, %c0_53, %c0_54] : memref<3x32x96xf32, #tpu.memory_space<vmem>>, vector<1x32x96xf32>
    %64 = vector.shape_cast %63 : vector<1x32x96xf32> to vector<32x96xf32>
    %cst_55 = arith.constant dense<0.000000e+00> : vector<16x96xf32>
    %65 = tpu.matmul %62, %64, %cst_55 {dimension_numbers = #tpu.dot_dimension_numbers<[1], [0], [0], [1], [0, 0, 1, 1], [], []>} : vector<16x32xf32>, vector<32x96xf32>, vector<16x96xf32> -> vector<16x96xf32>
    %c1_56 = arith.constant 1 : index
    %c0_57 = arith.constant 0 : index
    %c0_58 = arith.constant 0 : index
    %66 = vector.load %arg10[%c1_56, %c0_57, %c0_58] : memref<3x1x96xf32, #tpu.memory_space<vmem>>, vector<1x1x96xf32>
    %67 = vector.shape_cast %66 : vector<1x1x96xf32> to vector<1x96xf32>
    %68 = vector.broadcast %67 : vector<1x96xf32> to vector<16x96xf32>
    %69 = arith.addf %65, %68 : vector<16x96xf32>
    %70 = vector.extract_strided_slice %69 {offsets = [0, 0], sizes = [16, 32], strides = [1, 1]} : vector<16x96xf32> to vector<16x32xf32>
    %71 = vector.extract_strided_slice %69 {offsets = [0, 32], sizes = [16, 32], strides = [1, 1]} : vector<16x96xf32> to vector<16x32xf32>
    %72 = vector.extract_strided_slice %69 {offsets = [0, 64], sizes = [16, 32], strides = [1, 1]} : vector<16x96xf32> to vector<16x32xf32>
    %73 = tpu.transpose %71, [1, 0] : vector<16x32xf32> -> vector<32x16xf32>
    %cst_59 = arith.constant dense<0.000000e+00> : vector<32x128xf32>
    %74 = tpu.matmul %73, %6, %cst_59 {dimension_numbers = #tpu.dot_dimension_numbers<[1], [0], [0], [1], [0, 0, 1, 1], [], []>} : vector<32x16xf32>, vector<16x128xf32>, vector<32x128xf32> -> vector<32x128xf32>
    %75 = arith.mulf %74, %8 : vector<32x128xf32>
    %cst_60 = arith.constant dense<0.000000e+00> : vector<16x128xf32>
    %76 = tpu.matmul %70, %75, %cst_60 {dimension_numbers = #tpu.dot_dimension_numbers<[1], [0], [0], [1], [0, 0, 1, 1], [], []>} : vector<16x32xf32>, vector<32x128xf32>, vector<16x128xf32> -> vector<16x128xf32>
    %cst_61 = arith.constant 5.000000e-01 : f32
    %77 = vector.broadcast %cst_61 : f32 to vector<16x128xf32>
    %78 = arith.mulf %76, %77 : vector<16x128xf32>
    %79 = arith.addf %78, %4 : vector<16x128xf32>
    %cst_62 = arith.constant dense<0xFF800000> : vector<16xf32>
    %80 = vector.multi_reduction <maximumf>, %79, %cst_62 [1] : vector<16x128xf32> to vector<16xf32>
    %81 = vector.shape_cast %80 : vector<16xf32> to vector<16x1xf32>
    %82 = vector.broadcast %81 : vector<16x1xf32> to vector<16x128xf32>
    %83 = arith.subf %79, %82 : vector<16x128xf32>
    %84 = math.exp %83 : vector<16x128xf32>
    %cst_63 = arith.constant dense<0.000000e+00> : vector<16x128xf32>
    %85 = tpu.matmul %84, %5, %cst_63 {dimension_numbers = #tpu.dot_dimension_numbers<[1], [0], [0], [1], [0, 0, 1, 1], [], []>} : vector<16x128xf32>, vector<128x128xf32>, vector<16x128xf32> -> vector<16x128xf32>
    %86 = tpu.reciprocal %85 {approx = true} : vector<16x128xf32> -> vector<16x128xf32>
    %87 = arith.mulf %84, %86 : vector<16x128xf32>
    %cst_64 = arith.constant dense<0.000000e+00> : vector<128x32xf32>
    %88 = tpu.matmul %7, %72, %cst_64 {dimension_numbers = #tpu.dot_dimension_numbers<[1], [0], [0], [1], [0, 0, 1, 1], [], []>} : vector<128x16xf32>, vector<16x32xf32>, vector<128x32xf32> -> vector<128x32xf32>
    %89 = arith.mulf %88, %9 : vector<128x32xf32>
    %cst_65 = arith.constant dense<0.000000e+00> : vector<16x32xf32>
    %90 = tpu.matmul %87, %89, %cst_65 {dimension_numbers = #tpu.dot_dimension_numbers<[1], [0], [0], [1], [0, 0, 1, 1], [], []>} : vector<16x128xf32>, vector<128x32xf32>, vector<16x32xf32> -> vector<16x32xf32>
    %c1_66 = arith.constant 1 : index
    %c0_67 = arith.constant 0 : index
    %c0_68 = arith.constant 0 : index
    %91 = vector.load %arg11[%c1_66, %c0_67, %c0_68] : memref<3x32x32xf32, #tpu.memory_space<vmem>>, vector<1x32x32xf32>
    %92 = vector.shape_cast %91 : vector<1x32x32xf32> to vector<32x32xf32>
    %cst_69 = arith.constant dense<0.000000e+00> : vector<16x32xf32>
    %93 = tpu.matmul %90, %92, %cst_69 {dimension_numbers = #tpu.dot_dimension_numbers<[1], [0], [0], [1], [0, 0, 1, 1], [], []>} : vector<16x32xf32>, vector<32x32xf32>, vector<16x32xf32> -> vector<16x32xf32>
    %c1_70 = arith.constant 1 : index
    %c0_71 = arith.constant 0 : index
    %c0_72 = arith.constant 0 : index
    %94 = vector.load %arg12[%c1_70, %c0_71, %c0_72] : memref<3x1x32xf32, #tpu.memory_space<vmem>>, vector<1x1x32xf32>
    %95 = vector.shape_cast %94 : vector<1x1x32xf32> to vector<1x32xf32>
    %96 = vector.broadcast %95 : vector<1x32xf32> to vector<16x32xf32>
    %97 = arith.addf %93, %96 : vector<16x32xf32>
    %98 = arith.addf %62, %97 : vector<16x32xf32>
    %c1_73 = arith.constant 1 : index
    %c0_74 = arith.constant 0 : index
    %c0_75 = arith.constant 0 : index
    %99 = vector.load %arg13[%c1_73, %c0_74, %c0_75] : memref<3x32x512xf32, #tpu.memory_space<vmem>>, vector<1x32x512xf32>
    %100 = vector.shape_cast %99 : vector<1x32x512xf32> to vector<32x512xf32>
    %cst_76 = arith.constant dense<0.000000e+00> : vector<16x512xf32>
    %101 = tpu.matmul %98, %100, %cst_76 {dimension_numbers = #tpu.dot_dimension_numbers<[1], [0], [0], [1], [0, 0, 1, 1], [], []>} : vector<16x32xf32>, vector<32x512xf32>, vector<16x512xf32> -> vector<16x512xf32>
    %c1_77 = arith.constant 1 : index
    %c0_78 = arith.constant 0 : index
    %c0_79 = arith.constant 0 : index
    %102 = vector.load %arg14[%c1_77, %c0_78, %c0_79] : memref<3x1x512xf32, #tpu.memory_space<vmem>>, vector<1x1x512xf32>
    %103 = vector.shape_cast %102 : vector<1x1x512xf32> to vector<1x512xf32>
    %104 = vector.broadcast %103 : vector<1x512xf32> to vector<16x512xf32>
    %105 = arith.addf %101, %104 : vector<16x512xf32>
    %cst_80 = arith.constant 0.000000e+00 : f32
    %106 = vector.broadcast %cst_80 : f32 to vector<16x512xf32>
    %107 = arith.maximumf %105, %106 : vector<16x512xf32>
    %c1_81 = arith.constant 1 : index
    %c0_82 = arith.constant 0 : index
    %c0_83 = arith.constant 0 : index
    %108 = vector.load %arg15[%c1_81, %c0_82, %c0_83] : memref<3x512x32xf32, #tpu.memory_space<vmem>>, vector<1x512x32xf32>
    %109 = vector.shape_cast %108 : vector<1x512x32xf32> to vector<512x32xf32>
    %cst_84 = arith.constant dense<0.000000e+00> : vector<16x32xf32>
    %110 = tpu.matmul %107, %109, %cst_84 {dimension_numbers = #tpu.dot_dimension_numbers<[1], [0], [0], [1], [0, 0, 1, 1], [], []>} : vector<16x512xf32>, vector<512x32xf32>, vector<16x32xf32> -> vector<16x32xf32>
    %c1_85 = arith.constant 1 : index
    %c0_86 = arith.constant 0 : index
    %c0_87 = arith.constant 0 : index
    %111 = vector.load %arg16[%c1_85, %c0_86, %c0_87] : memref<3x1x32xf32, #tpu.memory_space<vmem>>, vector<1x1x32xf32>
    %112 = vector.shape_cast %111 : vector<1x1x32xf32> to vector<1x32xf32>
    %113 = vector.broadcast %112 : vector<1x32xf32> to vector<16x32xf32>
    %114 = arith.addf %110, %113 : vector<16x32xf32>
    %115 = arith.addf %98, %114 : vector<16x32xf32>
    %c2 = arith.constant 2 : index
    %c0_88 = arith.constant 0 : index
    %c0_89 = arith.constant 0 : index
    %116 = vector.load %arg9[%c2, %c0_88, %c0_89] : memref<3x32x96xf32, #tpu.memory_space<vmem>>, vector<1x32x96xf32>
    %117 = vector.shape_cast %116 : vector<1x32x96xf32> to vector<32x96xf32>
    %cst_90 = arith.constant dense<0.000000e+00> : vector<16x96xf32>
    %118 = tpu.matmul %115, %117, %cst_90 {dimension_numbers = #tpu.dot_dimension_numbers<[1], [0], [0], [1], [0, 0, 1, 1], [], []>} : vector<16x32xf32>, vector<32x96xf32>, vector<16x96xf32> -> vector<16x96xf32>
    %c2_91 = arith.constant 2 : index
    %c0_92 = arith.constant 0 : index
    %c0_93 = arith.constant 0 : index
    %119 = vector.load %arg10[%c2_91, %c0_92, %c0_93] : memref<3x1x96xf32, #tpu.memory_space<vmem>>, vector<1x1x96xf32>
    %120 = vector.shape_cast %119 : vector<1x1x96xf32> to vector<1x96xf32>
    %121 = vector.broadcast %120 : vector<1x96xf32> to vector<16x96xf32>
    %122 = arith.addf %118, %121 : vector<16x96xf32>
    %123 = vector.extract_strided_slice %122 {offsets = [0, 0], sizes = [16, 32], strides = [1, 1]} : vector<16x96xf32> to vector<16x32xf32>
    %124 = vector.extract_strided_slice %122 {offsets = [0, 32], sizes = [16, 32], strides = [1, 1]} : vector<16x96xf32> to vector<16x32xf32>
    %125 = vector.extract_strided_slice %122 {offsets = [0, 64], sizes = [16, 32], strides = [1, 1]} : vector<16x96xf32> to vector<16x32xf32>
    %126 = tpu.transpose %124, [1, 0] : vector<16x32xf32> -> vector<32x16xf32>
    %cst_94 = arith.constant dense<0.000000e+00> : vector<32x128xf32>
    %127 = tpu.matmul %126, %6, %cst_94 {dimension_numbers = #tpu.dot_dimension_numbers<[1], [0], [0], [1], [0, 0, 1, 1], [], []>} : vector<32x16xf32>, vector<16x128xf32>, vector<32x128xf32> -> vector<32x128xf32>
    %128 = arith.mulf %127, %8 : vector<32x128xf32>
    %cst_95 = arith.constant dense<0.000000e+00> : vector<16x128xf32>
    %129 = tpu.matmul %123, %128, %cst_95 {dimension_numbers = #tpu.dot_dimension_numbers<[1], [0], [0], [1], [0, 0, 1, 1], [], []>} : vector<16x32xf32>, vector<32x128xf32>, vector<16x128xf32> -> vector<16x128xf32>
    %cst_96 = arith.constant 5.000000e-01 : f32
    %130 = vector.broadcast %cst_96 : f32 to vector<16x128xf32>
    %131 = arith.mulf %129, %130 : vector<16x128xf32>
    %132 = arith.addf %131, %4 : vector<16x128xf32>
    %cst_97 = arith.constant dense<0xFF800000> : vector<16xf32>
    %133 = vector.multi_reduction <maximumf>, %132, %cst_97 [1] : vector<16x128xf32> to vector<16xf32>
    %134 = vector.shape_cast %133 : vector<16xf32> to vector<16x1xf32>
    %135 = vector.broadcast %134 : vector<16x1xf32> to vector<16x128xf32>
    %136 = arith.subf %132, %135 : vector<16x128xf32>
    %137 = math.exp %136 : vector<16x128xf32>
    %cst_98 = arith.constant dense<0.000000e+00> : vector<16x128xf32>
    %138 = tpu.matmul %137, %5, %cst_98 {dimension_numbers = #tpu.dot_dimension_numbers<[1], [0], [0], [1], [0, 0, 1, 1], [], []>} : vector<16x128xf32>, vector<128x128xf32>, vector<16x128xf32> -> vector<16x128xf32>
    %139 = tpu.reciprocal %138 {approx = true} : vector<16x128xf32> -> vector<16x128xf32>
    %140 = arith.mulf %137, %139 : vector<16x128xf32>
    %cst_99 = arith.constant dense<0.000000e+00> : vector<128x32xf32>
    %141 = tpu.matmul %7, %125, %cst_99 {dimension_numbers = #tpu.dot_dimension_numbers<[1], [0], [0], [1], [0, 0, 1, 1], [], []>} : vector<128x16xf32>, vector<16x32xf32>, vector<128x32xf32> -> vector<128x32xf32>
    %142 = arith.mulf %141, %9 : vector<128x32xf32>
    %cst_100 = arith.constant dense<0.000000e+00> : vector<16x32xf32>
    %143 = tpu.matmul %140, %142, %cst_100 {dimension_numbers = #tpu.dot_dimension_numbers<[1], [0], [0], [1], [0, 0, 1, 1], [], []>} : vector<16x128xf32>, vector<128x32xf32>, vector<16x32xf32> -> vector<16x32xf32>
    %c2_101 = arith.constant 2 : index
    %c0_102 = arith.constant 0 : index
    %c0_103 = arith.constant 0 : index
    %144 = vector.load %arg11[%c2_101, %c0_102, %c0_103] : memref<3x32x32xf32, #tpu.memory_space<vmem>>, vector<1x32x32xf32>
    %145 = vector.shape_cast %144 : vector<1x32x32xf32> to vector<32x32xf32>
    %cst_104 = arith.constant dense<0.000000e+00> : vector<16x32xf32>
    %146 = tpu.matmul %143, %145, %cst_104 {dimension_numbers = #tpu.dot_dimension_numbers<[1], [0], [0], [1], [0, 0, 1, 1], [], []>} : vector<16x32xf32>, vector<32x32xf32>, vector<16x32xf32> -> vector<16x32xf32>
    %c2_105 = arith.constant 2 : index
    %c0_106 = arith.constant 0 : index
    %c0_107 = arith.constant 0 : index
    %147 = vector.load %arg12[%c2_105, %c0_106, %c0_107] : memref<3x1x32xf32, #tpu.memory_space<vmem>>, vector<1x1x32xf32>
    %148 = vector.shape_cast %147 : vector<1x1x32xf32> to vector<1x32xf32>
    %149 = vector.broadcast %148 : vector<1x32xf32> to vector<16x32xf32>
    %150 = arith.addf %146, %149 : vector<16x32xf32>
    %151 = arith.addf %115, %150 : vector<16x32xf32>
    %c2_108 = arith.constant 2 : index
    %c0_109 = arith.constant 0 : index
    %c0_110 = arith.constant 0 : index
    %152 = vector.load %arg13[%c2_108, %c0_109, %c0_110] : memref<3x32x512xf32, #tpu.memory_space<vmem>>, vector<1x32x512xf32>
    %153 = vector.shape_cast %152 : vector<1x32x512xf32> to vector<32x512xf32>
    %cst_111 = arith.constant dense<0.000000e+00> : vector<16x512xf32>
    %154 = tpu.matmul %151, %153, %cst_111 {dimension_numbers = #tpu.dot_dimension_numbers<[1], [0], [0], [1], [0, 0, 1, 1], [], []>} : vector<16x32xf32>, vector<32x512xf32>, vector<16x512xf32> -> vector<16x512xf32>
    %c2_112 = arith.constant 2 : index
    %c0_113 = arith.constant 0 : index
    %c0_114 = arith.constant 0 : index
    %155 = vector.load %arg14[%c2_112, %c0_113, %c0_114] : memref<3x1x512xf32, #tpu.memory_space<vmem>>, vector<1x1x512xf32>
    %156 = vector.shape_cast %155 : vector<1x1x512xf32> to vector<1x512xf32>
    %157 = vector.broadcast %156 : vector<1x512xf32> to vector<16x512xf32>
    %158 = arith.addf %154, %157 : vector<16x512xf32>
    %cst_115 = arith.constant 0.000000e+00 : f32
    %159 = vector.broadcast %cst_115 : f32 to vector<16x512xf32>
    %160 = arith.maximumf %158, %159 : vector<16x512xf32>
    %c2_116 = arith.constant 2 : index
    %c0_117 = arith.constant 0 : index
    %c0_118 = arith.constant 0 : index
    %161 = vector.load %arg15[%c2_116, %c0_117, %c0_118] : memref<3x512x32xf32, #tpu.memory_space<vmem>>, vector<1x512x32xf32>
    %162 = vector.shape_cast %161 : vector<1x512x32xf32> to vector<512x32xf32>
    %cst_119 = arith.constant dense<0.000000e+00> : vector<16x32xf32>
    %163 = tpu.matmul %160, %162, %cst_119 {dimension_numbers = #tpu.dot_dimension_numbers<[1], [0], [0], [1], [0, 0, 1, 1], [], []>} : vector<16x512xf32>, vector<512x32xf32>, vector<16x32xf32> -> vector<16x32xf32>
    %c2_120 = arith.constant 2 : index
    %c0_121 = arith.constant 0 : index
    %c0_122 = arith.constant 0 : index
    %164 = vector.load %arg16[%c2_120, %c0_121, %c0_122] : memref<3x1x32xf32, #tpu.memory_space<vmem>>, vector<1x1x32xf32>
    %165 = vector.shape_cast %164 : vector<1x1x32xf32> to vector<1x32xf32>
    %166 = vector.broadcast %165 : vector<1x32xf32> to vector<16x32xf32>
    %167 = arith.addf %163, %166 : vector<16x32xf32>
    %168 = arith.addf %151, %167 : vector<16x32xf32>
    %c0_123 = arith.constant 0 : index
    %c0_124 = arith.constant 0 : index
    %169 = vector.load %arg21[%c0_123, %c0_124] : memref<16x32xf32, #tpu.memory_space<vmem>>, vector<16x32xf32>
    tpu.vector_store %arg21[%c0_123, %c0_124], %168 {strides = array<i32>} : memref<16x32xf32, #tpu.memory_space<vmem>>, vector<16x32xf32>,
    %c0_125 = arith.constant 0 : index
    %c0_126 = arith.constant 0 : index
    %170 = vector.load %arg8[%c0_125, %c0_126] : memref<2x16xf32, #tpu.memory_space<vmem>>, vector<2x16xf32>
    %cst_127 = arith.constant dense<0.000000e+00> : vector<2x32xf32>
    %171 = tpu.matmul %170, %168, %cst_127 {dimension_numbers = #tpu.dot_dimension_numbers<[1], [0], [0], [1], [0, 0, 1, 1], [], []>} : vector<2x16xf32>, vector<16x32xf32>, vector<2x32xf32> -> vector<2x32xf32>
    %c0_128 = arith.constant 0 : index
    %c0_129 = arith.constant 0 : index
    %172 = vector.load %arg17[%c0_128, %c0_129] : memref<32x32xf32, #tpu.memory_space<vmem>>, vector<32x32xf32>
    %cst_130 = arith.constant dense<0.000000e+00> : vector<2x32xf32>
    %173 = tpu.matmul %171, %172, %cst_130 {dimension_numbers = #tpu.dot_dimension_numbers<[1], [0], [0], [1], [0, 0, 1, 1], [], []>} : vector<2x32xf32>, vector<32x32xf32>, vector<2x32xf32> -> vector<2x32xf32>
    %c0_131 = arith.constant 0 : index
    %c0_132 = arith.constant 0 : index
    %174 = vector.load %arg18[%c0_131, %c0_132] : memref<1x32xf32, #tpu.memory_space<vmem>>, vector<1x32xf32>
    %175 = vector.broadcast %174 : vector<1x32xf32> to vector<2x32xf32>
    %176 = arith.addf %173, %175 : vector<2x32xf32>
    %c0_133 = arith.constant 0 : index
    %c0_134 = arith.constant 0 : index
    %177 = vector.load %arg19[%c0_133, %c0_134] : memref<1x32xf32, #tpu.memory_space<vmem>>, vector<1x32xf32>
    %178 = vector.broadcast %177 : vector<1x32xf32> to vector<2x32xf32>
    %179 = arith.addf %176, %178 : vector<2x32xf32>
    %c0_135 = arith.constant 0 : index
    %c0_136 = arith.constant 0 : index
    %180 = vector.load %arg22[%c0_135, %c0_136] : memref<2x32xf32, #tpu.memory_space<vmem>>, vector<2x32xf32>
    tpu.vector_store %arg22[%c0_135, %c0_136], %179 {strides = array<i32>} : memref<2x32xf32, #tpu.memory_space<vmem>>, vector<2x32xf32>,
    return
  }
}

</mosaic_0001>

<llo_original>
// kernel: hetnet_tsne_forward.1
$region0: #{hetnet_tsne_forward.1}
  #allocation0 [shape = 'u32[]', space=smem, size = 0x4, offset = 0x4, fixed_abs, tag = 'smem constant byte address 0x4 - core index']
  #allocation1 [shape = 'u32[144,128]{1,0:T(1,128)}', space=vmem, size = 0x12000, scoped, tag = 'internal scratch']
  %s0 = inlined_call_operand.vmem [shape: f32[16,8], index: 0, kind: input, shape index: {}]
  %s1 = inlined_call_operand.vmem [shape: f32[8,32], index: 1, kind: input, shape index: {}]
  %s2 = inlined_call_operand.vmem [shape: f32[16,128], index: 2, kind: input, shape index: {}]
  %s3 = inlined_call_operand.vmem [shape: f32[128,128], index: 3, kind: input, shape index: {}]
  %s4 = inlined_call_operand.vmem [shape: f32[16,128], index: 4, kind: input, shape index: {}]
  %s5 = inlined_call_operand.vmem [shape: f32[128,16], index: 5, kind: input, shape index: {}]
  %s6 = inlined_call_operand.vmem [shape: f32[32,128], index: 6, kind: input, shape index: {}]
  %s7 = inlined_call_operand.vmem [shape: f32[128,32], index: 7, kind: input, shape index: {}]
  %s8 = inlined_call_operand.vmem [shape: f32[2,16], index: 8, kind: input, shape index: {}]
  %s9 = inlined_call_operand.vmem [shape: f32[3,32,96], index: 9, kind: input, shape index: {}]
  %s10 = inlined_call_operand.vmem [shape: f32[3,1,96], index: 10, kind: input, shape index: {}]
  %s11 = inlined_call_operand.vmem [shape: f32[3,32,32], index: 11, kind: input, shape index: {}]
  %s12 = inlined_call_operand.vmem [shape: f32[3,1,32], index: 12, kind: input, shape index: {}]
  %s13 = inlined_call_operand.vmem [shape: f32[3,32,512], index: 13, kind: input, shape index: {}]
  %s14 = inlined_call_operand.vmem [shape: f32[3,1,512], index: 14, kind: input, shape index: {}]
  %s15 = inlined_call_operand.vmem [shape: f32[3,512,32], index: 15, kind: input, shape index: {}]
  %s16 = inlined_call_operand.vmem [shape: f32[3,1,32], index: 16, kind: input, shape index: {}]
  %s17 = inlined_call_operand.vmem [shape: f32[32,32], index: 17, kind: input, shape index: {}]
  %s18 = inlined_call_operand.vmem [shape: f32[1,32], index: 18, kind: input, shape index: {}]
  %s19 = inlined_call_operand.vmem [shape: f32[1,32], index: 19, kind: input, shape index: {}]
  %s20 = inlined_call_operand.hbm [shape: f32[16,32], index: 20, kind: output, shape index: {0}]
  %s21 = inlined_call_operand.hbm [shape: f32[16,32], index: 21, kind: output, shape index: {1}]
  %s22 = inlined_call_operand.hbm [shape: f32[2,32], index: 22, kind: output, shape index: {2}]
  %23 = xla_tuple %s20, %s21, %s22
  %s24 = sld [smem:[#allocation0]]
  $region106: #{hetnet_tsne_forward.1} parent=0
    _
  %s26 = ssub.s32 1, %s24
  %s27 = scalar_select 0, %s26, %s24
  $region1: #{hetnet_tsne_forward.1} parent=0
    #allocation2 [shape = 'u8[8192]{0}', space=vmem, size = 0x2000, scoped, tag = 'output window, operand 0, single buffered']
    #allocation3 [shape = 's32[1]{0}', space=sflag, size = 0x4, scoped, tag = 'scoped memory for hetnet_tsne_forward.1']
    #allocation4 [shape = 'u8[8192]{0}', space=vmem, size = 0x2000, scoped, tag = 'output window, operand 1, single buffered']
    #allocation5 [shape = 's32[1]{0}', space=sflag, size = 0x4, scoped, tag = 'scoped memory for hetnet_tsne_forward.1']
    #allocation6 [shape = 'u8[1024]{0}', space=vmem, size = 0x400, scoped, tag = 'output window, operand 2, single buffered']
    %28 = vsyncpa [#allocation3], 0
    %29 = vsyncpa [#allocation5], 0
    // Predicated region
    $region2: #{hetnet_tsne_forward.1} parent=1 // pred_check
      _
    $region3: #{hetnet_tsne_forward.1} parent=1 // pred_check_branch
      %31 = sbr.rel (0) target = $region5
    $region4: #{hetnet_tsne_forward.1} parent=1 // pred_region
      _
    $region5: #{hetnet_tsne_forward.1} parent=1 // pred_fallthru
      _
    // Predicated region
    $region6: #{hetnet_tsne_forward.1} parent=1 // pred_check
      _
    $region7: #{hetnet_tsne_forward.1} parent=1 // pred_check_branch
      %33 = sbr.rel (0) target = $region9
    $region8: #{hetnet_tsne_forward.1} parent=1 // pred_region
      _
    $region9: #{hetnet_tsne_forward.1} parent=1 // pred_fallthru
      _
    // Predicated region
    $region10: #{hetnet_tsne_forward.1} parent=1 // pred_check
      _
    $region11: #{hetnet_tsne_forward.1} parent=1 // pred_check_branch
      %35 = sbr.rel (0) target = $region13
    $region12: #{hetnet_tsne_forward.1} parent=1 // pred_region
      _
    $region13: #{hetnet_tsne_forward.1} parent=1 // pred_fallthru
      _
    // Predicated region
    $region14: #{hetnet_tsne_forward.1} parent=1 // pred_check
      _
    $region15: #{hetnet_tsne_forward.1} parent=1 // pred_check_branch
      %37 = sbr.rel (0) target = $region17
    $region16: #{hetnet_tsne_forward.1} parent=1 // pred_region
      _
    $region17: #{hetnet_tsne_forward.1} parent=1 // pred_fallthru
      _
    // Predicated region
    $region18: #{hetnet_tsne_forward.1} parent=1 // pred_check
      _
    $region19: #{hetnet_tsne_forward.1} parent=1 // pred_check_branch
      %39 = sbr.rel (0) target = $region21
    $region20: #{hetnet_tsne_forward.1} parent=1 // pred_region
      _
    $region21: #{hetnet_tsne_forward.1} parent=1 // pred_fallthru
      _
    // Predicated region
    $region22: #{hetnet_tsne_forward.1} parent=1 // pred_check
      _
    $region23: #{hetnet_tsne_forward.1} parent=1 // pred_check_branch
      %41 = sbr.rel (0) target = $region25
    $region24: #{hetnet_tsne_forward.1} parent=1 // pred_region
      _
    $region25: #{hetnet_tsne_forward.1} parent=1 // pred_fallthru
      _
    // Predicated region
    $region26: #{hetnet_tsne_forward.1} parent=1 // pred_check
      _
    $region27: #{hetnet_tsne_forward.1} parent=1 // pred_check_branch
      %43 = sbr.rel (0) target = $region29
    $region28: #{hetnet_tsne_forward.1} parent=1 // pred_region
      _
    $region29: #{hetnet_tsne_forward.1} parent=1 // pred_fallthru
      _
    // Predicated region
    $region30: #{hetnet_tsne_forward.1} parent=1 // pred_check
      _
    $region31: #{hetnet_tsne_forward.1} parent=1 // pred_check_branch
      %45 = sbr.rel (0) target = $region33
    $region32: #{hetnet_tsne_forward.1} parent=1 // pred_region
      _
    $region33: #{hetnet_tsne_forward.1} parent=1 // pred_fallthru
      _
    // Predicated region
    $region34: #{hetnet_tsne_forward.1} parent=1 // pred_check
      _
    $region35: #{hetnet_tsne_forward.1} parent=1 // pred_check_branch
      %47 = sbr.rel (0) target = $region37
    $region36: #{hetnet_tsne_forward.1} parent=1 // pred_region
      _
    $region37: #{hetnet_tsne_forward.1} parent=1 // pred_fallthru
      _
    // Predicated region
    $region38: #{hetnet_tsne_forward.1} parent=1 // pred_check
      _
    $region39: #{hetnet_tsne_forward.1} parent=1 // pred_check_branch
      %49 = sbr.rel (0) target = $region41
    $region40: #{hetnet_tsne_forward.1} parent=1 // pred_region
      _
    $region41: #{hetnet_tsne_forward.1} parent=1 // pred_fallthru
      _
    // Predicated region
    $region42: #{hetnet_tsne_forward.1} parent=1 // pred_check
      _
    $region43: #{hetnet_tsne_forward.1} parent=1 // pred_check_branch
      %51 = sbr.rel (0) target = $region45
    $region44: #{hetnet_tsne_forward.1} parent=1 // pred_region
      _
    $region45: #{hetnet_tsne_forward.1} parent=1 // pred_fallthru
      _
    // Predicated region
    $region46: #{hetnet_tsne_forward.1} parent=1 // pred_check
      _
    $region47: #{hetnet_tsne_forward.1} parent=1 // pred_check_branch
      %53 = sbr.rel (0) target = $region49
    $region48: #{hetnet_tsne_forward.1} parent=1 // pred_region
      _
    $region49: #{hetnet_tsne_forward.1} parent=1 // pred_fallthru
      _
    // Predicated region
    $region50: #{hetnet_tsne_forward.1} parent=1 // pred_check
      _
    $region51: #{hetnet_tsne_forward.1} parent=1 // pred_check_branch
      %55 = sbr.rel (0) target = $region53
    $region52: #{hetnet_tsne_forward.1} parent=1 // pred_region
      _
    $region53: #{hetnet_tsne_forward.1} parent=1 // pred_fallthru
      _
    // Predicated region
    $region54: #{hetnet_tsne_forward.1} parent=1 // pred_check
      _
    $region55: #{hetnet_tsne_forward.1} parent=1 // pred_check_branch
      %57 = sbr.rel (0) target = $region57
    $region56: #{hetnet_tsne_forward.1} parent=1 // pred_region
      _
    $region57: #{hetnet_tsne_forward.1} parent=1 // pred_fallthru
      _
    // Predicated region
    $region58: #{hetnet_tsne_forward.1} parent=1 // pred_check
      _
    $region59: #{hetnet_tsne_forward.1} parent=1 // pred_check_branch
      %59 = sbr.rel (0) target = $region61
    $region60: #{hetnet_tsne_forward.1} parent=1 // pred_region
      _
    $region61: #{hetnet_tsne_forward.1} parent=1 // pred_fallthru
      _
    // Predicated region
    $region62: #{hetnet_tsne_forward.1} parent=1 // pred_check
      _
    $region63: #{hetnet_tsne_forward.1} parent=1 // pred_check_branch
      %61 = sbr.rel (0) target = $region65
    $region64: #{hetnet_tsne_forward.1} parent=1 // pred_region
      _
    $region65: #{hetnet_tsne_forward.1} parent=1 // pred_fallthru
      _
    // Predicated region
    $region66: #{hetnet_tsne_forward.1} parent=1 // pred_check
      _
    $region67: #{hetnet_tsne_forward.1} parent=1 // pred_check_branch
      %63 = sbr.rel (0) target = $region69
    $region68: #{hetnet_tsne_forward.1} parent=1 // pred_region
      _
    $region69: #{hetnet_tsne_forward.1} parent=1 // pred_fallthru
      _
    // Predicated region
    $region70: #{hetnet_tsne_forward.1} parent=1 // pred_check
      _
    $region71: #{hetnet_tsne_forward.1} parent=1 // pred_check_branch
      %65 = sbr.rel (0) target = $region73
    $region72: #{hetnet_tsne_forward.1} parent=1 // pred_region
      _
    $region73: #{hetnet_tsne_forward.1} parent=1 // pred_fallthru
      _
    // Predicated region
    $region74: #{hetnet_tsne_forward.1} parent=1 // pred_check
      _
    $region75: #{hetnet_tsne_forward.1} parent=1 // pred_check_branch
      %67 = sbr.rel (0) target = $region77
    $region76: #{hetnet_tsne_forward.1} parent=1 // pred_region
      _
    $region77: #{hetnet_tsne_forward.1} parent=1 // pred_fallthru
      _
    // Predicated region
    $region78: #{hetnet_tsne_forward.1} parent=1 // pred_check
      _
    $region79: #{hetnet_tsne_forward.1} parent=1 // pred_check_branch
      %69 = sbr.rel (0) target = $region81
    $region80: #{hetnet_tsne_forward.1} parent=1 // pred_region
      _
    $region81: #{hetnet_tsne_forward.1} parent=1 // pred_fallthru
      _
    %v70 = vld [vmem:[%s0] sm:$0xff]
    %v71 = vld [vmem:[%s0 + $0x8] sm:$0xff]
    %v72 = vld [vmem:[%s1] sm:$0xff]
    %vm73 = vcmask 64512
    %v75 = vsel %vm73, %v70, 0
    %v78 = vsel %vm73, %v71, 0
    %80 = vmatprep.subr.mxu0 0.0
    %81 = vmatpush1.msra.mxu0 0.0
    %82 = vmatprep.subr.mxu0 0.0
    %83 = vmatpush1.msra.mxu0 0.0
    %84 = vmatprep.subr.mxu0 0.0
    %85 = vmatpush1.msra.mxu0 0.0
    %86 = vmatprep.subr.mxu0 0.0
    %87 = vmatpush1.msra.mxu0 0.0
    %88 = vmatprep.subr.mxu0 0.0
    %89 = vmatpush1.msra.mxu0 0.0
    %90 = vmatprep.subr.mxu0 0.0
    %91 = vmatpush1.msra.mxu0 0.0
    %92 = vmatprep.subr.mxu0 0.0
    %93 = vmatpush1.msra.mxu0 0.0
    %94 = vmatprep.subr.mxu0 0.0
    %95 = vmatpush1.msra.mxu0 0.0
    %96 = vmatprep.subr.mxu0 0.0
    %97 = vmatpush1.msra.mxu0 0.0
    %98 = vmatprep.subr.mxu0 0.0
    %99 = vmatpush1.msra.mxu0 0.0
    %100 = vmatprep.subr.mxu0 0.0
    %101 = vmatpush1.msra.mxu0 0.0
    %102 = vmatprep.subr.mxu0 0.0
    %103 = vmatpush1.msra.mxu0 0.0
    %104 = vmatprep.subr.mxu0 0.0
    %105 = vmatpush1.msra.mxu0 0.0
    %106 = vmatprep.subr.mxu0 0.0
    %107 = vmatpush1.msra.mxu0 0.0
    %108 = vmatprep.subr.mxu0 0.0
    %109 = vmatpush1.msra.mxu0 0.0
    %110 = vmatprep.subr.mxu0 0.0
    %111 = vmatpush1.msra.mxu0 %v72
    %112 = vmatprep.subr.mxu0 0.0
    %113 = vmatpush2.msra.mxu0 0.0
    %114 = vmatprep.subr.mxu0 0.0
    %115 = vmatpush2.msra.mxu0 0.0
    %116 = vmatprep.subr.mxu0 0.0
    %117 = vmatpush2.msra.mxu0 0.0
    %118 = vmatprep.subr.mxu0 0.0
    %119 = vmatpush2.msra.mxu0 0.0
    %120 = vmatprep.subr.mxu0 0.0
    %121 = vmatpush2.msra.mxu0 0.0
    %122 = vmatprep.subr.mxu0 0.0
    %123 = vmatpush2.msra.mxu0 0.0
    %124 = vmatprep.subr.mxu0 0.0
    %125 = vmatpush2.msra.mxu0 0.0
    %126 = vmatprep.subr.mxu0 0.0
    %127 = vmatpush2.msra.mxu0 0.0
    %128 = vmatprep.subr.mxu0 0.0
    %129 = vmatpush2.msra.mxu0 0.0
    %130 = vmatprep.subr.mxu0 0.0
    %131 = vmatpush2.msra.mxu0 0.0
    %132 = vmatprep.subr.mxu0 0.0
    %133 = vmatpush2.msra.mxu0 0.0
    %134 = vmatprep.subr.mxu0 0.0
    %135 = vmatpush2.msra.mxu0 0.0
    %136 = vmatprep.subr.mxu0 0.0
    %137 = vmatpush2.msra.mxu0 0.0
    %138 = vmatprep.subr.mxu0 0.0
    %139 = vmatpush2.msra.mxu0 0.0
    %140 = vmatprep.subr.mxu0 0.0
    %141 = vmatpush2.msra.mxu0 0.0
    %142 = vmatprep.subr.mxu0 0.0
    %143 = vmatpush2.msra.mxu0 0.0
    %144 = vmatprep.mubr.f32.mxu0 0.0
    %145 = vmatmul.mubr.f32.gmra.mxu0 %v75
    %v146 = vpop.f32.mrf.mxu0
    %v147 = vadd.f32 0.0, %v146
    %v148 = vpop.f32.mrf.mxu0
    %149 = vmatprep.mubr.f32.mxu0 0.0
    %150 = vmatmul.mubr.f32.gmra.mxu0 %v78
    %v151 = vpop.f32.mrf.mxu0
    %v152 = vadd.f32 0.0, %v151
    %v153 = vpop.f32.mrf.mxu0
    %154 = vdwg.mxu0
    %vm155 = vcmask 261120
    %156 = vst.msk [vmem:[#allocation2] sm:$0xff] %vm155, %v147
    %157 = vst.msk [vmem:[#allocation2 + $0x8] sm:$0xff] %vm155, %v152
    %v158 = vld [vmem:[%s2] sm:$0xff]
    %v159 = vld [vmem:[%s2 + $0x8] sm:$0xff]
    %v160 = vld [vmem:[%s3] sm:$0xff]
    %v161 = vld [vmem:[%s3 + $0x8] sm:$0xff]
    %v162 = vld [vmem:[%s3 + $0x10] sm:$0xff]
    %v163 = vld [vmem:[%s3 + $0x18] sm:$0xff]
    %v164 = vld [vmem:[%s3 + $0x20] sm:$0xff]
    %v165 = vld [vmem:[%s3 + $0x28] sm:$0xff]
    %v166 = vld [vmem:[%s3 + $0x30] sm:$0xff]
    %v167 = vld [vmem:[%s3 + $0x38] sm:$0xff]
    %v168 = vld [vmem:[%s3 + $0x40] sm:$0xff]
    %v169 = vld [vmem:[%s3 + $0x48] sm:$0xff]
    %v170 = vld [vmem:[%s3 + $0x50] sm:$0xff]
    %v171 = vld [vmem:[%s3 + $0x58] sm:$0xff]
    %v172 = vld [vmem:[%s3 + $0x60] sm:$0xff]
    %v173 = vld [vmem:[%s3 + $0x68] sm:$0xff]
    %v174 = vld [vmem:[%s3 + $0x70] sm:$0xff]
    %v175 = vld [vmem:[%s3 + $0x78] sm:$0xff]
    %v176 = vld [vmem:[%s4] sm:$0xff]
    %v177 = vld [vmem:[%s4 + $0x8] sm:$0xff]
    %v178 = vld [vmem:[%s5] sm:$0xff]
    %v179 = vld [vmem:[%s5 + $0x8] sm:$0xff]
    %v180 = vld [vmem:[%s5 + $0x10] sm:$0xff]
    %v181 = vld [vmem:[%s5 + $0x18] sm:$0xff]
    %v182 = vld [vmem:[%s5 + $0x20] sm:$0xff]
    %v183 = vld [vmem:[%s5 + $0x28] sm:$0xff]
    %v184 = vld [vmem:[%s5 + $0x30] sm:$0xff]
    %v185 = vld [vmem:[%s5 + $0x38] sm:$0xff]
    %v186 = vld [vmem:[%s5 + $0x40] sm:$0xff]
    %v187 = vld [vmem:[%s5 + $0x48] sm:$0xff]
    %v188 = vld [vmem:[%s5 + $0x50] sm:$0xff]
    %v189 = vld [vmem:[%s5 + $0x58] sm:$0xff]
    %v190 = vld [vmem:[%s5 + $0x60] sm:$0xff]
    %v191 = vld [vmem:[%s5 + $0x68] sm:$0xff]
    %v192 = vld [vmem:[%s5 + $0x70] sm:$0xff]
    %v193 = vld [vmem:[%s5 + $0x78] sm:$0xff]
    %v194 = vld [vmem:[%s6] sm:$0xff]
    %v195 = vld [vmem:[%s6 + $0x8] sm:$0xff]
    %v196 = vld [vmem:[%s6 + $0x10] sm:$0xff]
    %v197 = vld [vmem:[%s6 + $0x18] sm:$0xff]
    %v198 = vld [vmem:[%s7] sm:$0xff]
    %v199 = vld [vmem:[%s7 + $0x8] sm:$0xff]
    %v200 = vld [vmem:[%s7 + $0x10] sm:$0xff]
    %v201 = vld [vmem:[%s7 + $0x18] sm:$0xff]
    %v202 = vld [vmem:[%s7 + $0x20] sm:$0xff]
    %v203 = vld [vmem:[%s7 + $0x28] sm:$0xff]
    %v204 = vld [vmem:[%s7 + $0x30] sm:$0xff]
    %v205 = vld [vmem:[%s7 + $0x38] sm:$0xff]
    %v206 = vld [vmem:[%s7 + $0x40] sm:$0xff]
    %v207 = vld [vmem:[%s7 + $0x48] sm:$0xff]
    %v208 = vld [vmem:[%s7 + $0x50] sm:$0xff]
    %v209 = vld [vmem:[%s7 + $0x58] sm:$0xff]
    %v210 = vld [vmem:[%s7 + $0x60] sm:$0xff]
    %v211 = vld [vmem:[%s7 + $0x68] sm:$0xff]
    %v212 = vld [vmem:[%s7 + $0x70] sm:$0xff]
    %v213 = vld [vmem:[%s7 + $0x78] sm:$0xff]
    %v214 = vld [vmem:[%s9] sm:$0xff]
    %v215 = vld [vmem:[%s9 + $0x8] sm:$0xff]
    %v216 = vld [vmem:[%s9 + $0x10] sm:$0xff]
    %v217 = vld [vmem:[%s9 + $0x18] sm:$0xff]
    %v218 = vld [vmem:[%s10] sm:$0x1]
    %v220 = vlaneseq
    %v221 = vshrl.u32 %v220, 7
    %v222 = vsub.s32 0, %v221
    %v223 = vrot.slane %v218, %v222
    %v226 = vsel %vm155, %v147, 0
    %v229 = vsel %vm155, %v152, 0
    %231 = vmatprep.subr.mxu0 0.0
    %232 = vmatpush1.msra.mxu0 0.0
    %233 = vmatprep.subr.mxu0 0.0
    %234 = vmatpush1.msra.mxu0 0.0
    %235 = vmatprep.subr.mxu0 0.0
    %236 = vmatpush1.msra.mxu0 0.0
    %237 = vmatprep.subr.mxu0 0.0
    %238 = vmatpush1.msra.mxu0 0.0
    %239 = vmatprep.subr.mxu0 0.0
    %240 = vmatpush1.msra.mxu0 0.0
    %241 = vmatprep.subr.mxu0 0.0
    %242 = vmatpush1.msra.mxu0 0.0
    %243 = vmatprep.subr.mxu0 0.0
    %244 = vmatpush1.msra.mxu0 0.0
    %245 = vmatprep.subr.mxu0 0.0
    %246 = vmatpush1.msra.mxu0 0.0
    %247 = vmatprep.subr.mxu0 0.0
    %248 = vmatpush1.msra.mxu0 0.0
    %249 = vmatprep.subr.mxu0 0.0
    %250 = vmatpush1.msra.mxu0 0.0
    %251 = vmatprep.subr.mxu0 0.0
    %252 = vmatpush1.msra.mxu0 0.0
    %253 = vmatprep.subr.mxu0 0.0
    %254 = vmatpush1.msra.mxu0 0.0
    %255 = vmatprep.subr.mxu0 0.0
    %256 = vmatpush1.msra.mxu0 %v217
    %257 = vmatprep.subr.mxu0 0.0
    %258 = vmatpush1.msra.mxu0 %v216
    %259 = vmatprep.subr.mxu0 0.0
    %260 = vmatpush1.msra.mxu0 %v215
    %261 = vmatprep.subr.mxu0 0.0
    %262 = vmatpush1.msra.mxu0 %v214
    %263 = vmatprep.subr.mxu0 0.0
    %264 = vmatpush2.msra.mxu0 0.0
    %265 = vmatprep.subr.mxu0 0.0
    %266 = vmatpush2.msra.mxu0 0.0
    %267 = vmatprep.subr.mxu0 0.0
    %268 = vmatpush2.msra.mxu0 0.0
    %269 = vmatprep.subr.mxu0 0.0
    %270 = vmatpush2.msra.mxu0 0.0
    %271 = vmatprep.subr.mxu0 0.0
    %272 = vmatpush2.msra.mxu0 0.0
    %273 = vmatprep.subr.mxu0 0.0
    %274 = vmatpush2.msra.mxu0 0.0
    %275 = vmatprep.subr.mxu0 0.0
    %276 = vmatpush2.msra.mxu0 0.0
    %277 = vmatprep.subr.mxu0 0.0
    %278 = vmatpush2.msra.mxu0 0.0
    %279 = vmatprep.subr.mxu0 0.0
    %280 = vmatpush2.msra.mxu0 0.0
    %281 = vmatprep.subr.mxu0 0.0
    %282 = vmatpush2.msra.mxu0 0.0
    %283 = vmatprep.subr.mxu0 0.0
    %284 = vmatpush2.msra.mxu0 0.0
    %285 = vmatprep.subr.mxu0 0.0
    %286 = vmatpush2.msra.mxu0 0.0
    %287 = vmatprep.subr.mxu0 0.0
    %288 = vmatpush2.msra.mxu0 0.0
    %289 = vmatprep.subr.mxu0 0.0
    %290 = vmatpush2.msra.mxu0 0.0
    %291 = vmatprep.subr.mxu0 0.0
    %292 = vmatpush2.msra.mxu0 0.0
    %293 = vmatprep.subr.mxu0 0.0
    %294 = vmatpush2.msra.mxu0 0.0
    %295 = vmatprep.mubr.f32.mxu0 0.0
    %296 = vmatmul.mubr.f32.gmra.mxu0 %v226
    %v297 = vpop.f32.mrf.mxu0
    %v298 = vadd.f32 %v223, %v297
    %v299 = vpop.f32.mrf.mxu0
    %300 = vmatprep.mubr.f32.mxu0 0.0
    %301 = vmatmul.mubr.f32.gmra.mxu0 %v229
    %v302 = vpop.f32.mrf.mxu0
    %v303 = vadd.f32 %v223, %v302
    %v304 = vpop.f32.mrf.mxu0
    %305 = vdwg.mxu0
    %308 = vrot.lane.b32.xlu0 %v298, 96
    %v309 = vpop.permute.xlu0 %308
    %310 = vrot.lane.b32.xlu0 %v303, 96
    %v311 = vpop.permute.xlu0 %310
    %314 = vxpose.xlu0.b32.start [1/16] %v309, 128
    %315 = vxpose.xlu0.b32.cont [2/16] %v311, 128
    %316 = vxpose.xlu0.b32.cont [3/16] 0.0, 128
    %317 = vxpose.xlu0.b32.cont [4/16] 0.0, 128
    %318 = vxpose.xlu0.b32.cont [5/16] 0.0, 128
    %319 = vxpose.xlu0.b32.cont [6/16] 0.0, 128
    %320 = vxpose.xlu0.b32.cont [7/16] 0.0, 128
    %321 = vxpose.xlu0.b32.cont [8/16] 0.0, 128
    %322 = vxpose.xlu0.b32.cont [9/16] 0.0, 128
    %323 = vxpose.xlu0.b32.cont [10/16] 0.0, 128
    %324 = vxpose.xlu0.b32.cont [11/16] 0.0, 128
    %325 = vxpose.xlu0.b32.cont [12/16] 0.0, 128
    %326 = vxpose.xlu0.b32.cont [13/16] 0.0, 128
    %327 = vxpose.xlu0.b32.cont [14/16] 0.0, 128
    %328 = vxpose.xlu0.b32.cont [15/16] 0.0, 128
    %329 = vxpose.xlu0.b32.end [16/16] 0.0, 128
    %v330 = vpop.trf.xlu0
    %v331 = vpop.trf.xlu0
    %v332 = vpop.trf.xlu0
    %v333 = vpop.trf.xlu0
    %v334 = vpop.trf.xlu0
    %v335 = vpop.trf.xlu0
    %v336 = vpop.trf.xlu0
    %v337 = vpop.trf.xlu0
    %v338 = vpop.trf.xlu0
    %v339 = vpop.trf.xlu0
    %v340 = vpop.trf.xlu0
    %v341 = vpop.trf.xlu0
    %v342 = vpop.trf.xlu0
    %v343 = vpop.trf.xlu0
    %v344 = vpop.trf.xlu0
    %v345 = vpop.trf.xlu0
    %vm346 = vcmask 130048
    %v348 = vsel %vm346, %v330, 0
    %v351 = vsel %vm346, %v331, 0
    %v354 = vsel %vm346, %v332, 0
    %v357 = vsel %vm346, %v333, 0
    %359 = vmatprep.subr.mxu0 0.0
    %360 = vmatpush1.msra.mxu0 0.0
    %361 = vmatprep.subr.mxu0 0.0
    %362 = vmatpush1.msra.mxu0 0.0
    %363 = vmatprep.subr.mxu0 0.0
    %364 = vmatpush1.msra.mxu0 0.0
    %365 = vmatprep.subr.mxu0 0.0
    %366 = vmatpush1.msra.mxu0 0.0
    %367 = vmatprep.subr.mxu0 0.0
    %368 = vmatpush1.msra.mxu0 0.0
    %369 = vmatprep.subr.mxu0 0.0
    %370 = vmatpush1.msra.mxu0 0.0
    %371 = vmatprep.subr.mxu0 0.0
    %372 = vmatpush1.msra.mxu0 0.0
    %373 = vmatprep.subr.mxu0 0.0
    %374 = vmatpush1.msra.mxu0 0.0
    %375 = vmatprep.subr.mxu0 0.0
    %376 = vmatpush1.msra.mxu0 0.0
    %377 = vmatprep.subr.mxu0 0.0
    %378 = vmatpush1.msra.mxu0 0.0
    %379 = vmatprep.subr.mxu0 0.0
    %380 = vmatpush1.msra.mxu0 0.0
    %381 = vmatprep.subr.mxu0 0.0
    %382 = vmatpush1.msra.mxu0 0.0
    %383 = vmatprep.subr.mxu0 0.0
    %384 = vmatpush1.msra.mxu0 0.0
    %385 = vmatprep.subr.mxu0 0.0
    %386 = vmatpush1.msra.mxu0 0.0
    %387 = vmatprep.subr.mxu0 0.0
    %388 = vmatpush1.msra.mxu0 %v177
    %389 = vmatprep.subr.mxu0 0.0
    %390 = vmatpush1.msra.mxu0 %v176
    %391 = vmatprep.subr.mxu0 0.0
    %392 = vmatpush2.msra.mxu0 0.0
    %393 = vmatprep.subr.mxu0 0.0
    %394 = vmatpush2.msra.mxu0 0.0
    %395 = vmatprep.subr.mxu0 0.0
    %396 = vmatpush2.msra.mxu0 0.0
    %397 = vmatprep.subr.mxu0 0.0
    %398 = vmatpush2.msra.mxu0 0.0
    %399 = vmatprep.subr.mxu0 0.0
    %400 = vmatpush2.msra.mxu0 0.0
    %401 = vmatprep.subr.mxu0 0.0
    %402 = vmatpush2.msra.mxu0 0.0
    %403 = vmatprep.subr.mxu0 0.0
    %404 = vmatpush2.msra.mxu0 0.0
    %405 = vmatprep.subr.mxu0 0.0
    %406 = vmatpush2.msra.mxu0 0.0
    %407 = vmatprep.subr.mxu0 0.0
    %408 = vmatpush2.msra.mxu0 0.0
    %409 = vmatprep.subr.mxu0 0.0
    %410 = vmatpush2.msra.mxu0 0.0
    %411 = vmatprep.subr.mxu0 0.0
    %412 = vmatpush2.msra.mxu0 0.0
    %413 = vmatprep.subr.mxu0 0.0
    %414 = vmatpush2.msra.mxu0 0.0
    %415 = vmatprep.subr.mxu0 0.0
    %416 = vmatpush2.msra.mxu0 0.0
    %417 = vmatprep.subr.mxu0 0.0
    %418 = vmatpush2.msra.mxu0 0.0
    %419 = vmatprep.subr.mxu0 0.0
    %420 = vmatpush2.msra.mxu0 0.0
    %421 = vmatprep.subr.mxu0 0.0
    %422 = vmatpush2.msra.mxu0 0.0
    %423 = vmatprep.mubr.f32.mxu0 0.0
    %424 = vmatmul.mubr.f32.gmra.mxu0 %v348
    %v425 = vpop.f32.mrf.mxu0
    %v426 = vadd.f32 0.0, %v425
    %v427 = vpop.f32.mrf.mxu0
    %428 = vmatprep.mubr.f32.mxu0 0.0
    %429 = vmatmul.mubr.f32.gmra.mxu0 %v351
    %v430 = vpop.f32.mrf.mxu0
    %v431 = vadd.f32 0.0, %v430
    %v432 = vpop.f32.mrf.mxu0
    %433 = vmatprep.mubr.f32.mxu0 0.0
    %434 = vmatmul.mubr.f32.gmra.mxu0 %v354
    %v435 = vpop.f32.mrf.mxu0
    %v436 = vadd.f32 0.0, %v435
    %v437 = vpop.f32.mrf.mxu0
    %438 = vmatprep.mubr.f32.mxu0 0.0
    %439 = vmatmul.mubr.f32.gmra.mxu0 %v357
    %v440 = vpop.f32.mrf.mxu0
    %v441 = vadd.f32 0.0, %v440
    %v442 = vpop.f32.mrf.mxu0
    %443 = vdwg.mxu0
    %v444 = vmul.f32 %v426, %v194
    %v445 = vmul.f32 %v431, %v195
    %v446 = vmul.f32 %v436, %v196
    %v447 = vmul.f32 %v441, %v197
    %v448 = vsel %vm155, %v298, 0
    %v450 = vsel %vm155, %v303, 0
    %452 = vmatprep.subr.mxu0 0.0
    %453 = vmatpush1.msra.mxu0 0.0
    %454 = vmatprep.subr.mxu0 0.0
    %455 = vmatpush1.msra.mxu0 0.0
    %456 = vmatprep.subr.mxu0 0.0
    %457 = vmatpush1.msra.mxu0 0.0
    %458 = vmatprep.subr.mxu0 0.0
    %459 = vmatpush1.msra.mxu0 0.0
    %460 = vmatprep.subr.mxu0 0.0
    %461 = vmatpush1.msra.mxu0 0.0
    %462 = vmatprep.subr.mxu0 0.0
    %463 = vmatpush1.msra.mxu0 0.0
    %464 = vmatprep.subr.mxu0 0.0
    %465 = vmatpush1.msra.mxu0 0.0
    %466 = vmatprep.subr.mxu0 0.0
    %467 = vmatpush1.msra.mxu0 0.0
    %468 = vmatprep.subr.mxu0 0.0
    %469 = vmatpush1.msra.mxu0 0.0
    %470 = vmatprep.subr.mxu0 0.0
    %471 = vmatpush1.msra.mxu0 0.0
    %472 = vmatprep.subr.mxu0 0.0
    %473 = vmatpush1.msra.mxu0 0.0
    %474 = vmatprep.subr.mxu0 0.0
    %475 = vmatpush1.msra.mxu0 0.0
    %476 = vmatprep.subr.mxu0 0.0
    %477 = vmatpush1.msra.mxu0 %v447
    %478 = vmatprep.subr.mxu0 0.0
    %479 = vmatpush1.msra.mxu0 %v446
    %480 = vmatprep.subr.mxu0 0.0
    %481 = vmatpush1.msra.mxu0 %v445
    %482 = vmatprep.subr.mxu0 0.0
    %483 = vmatpush1.msra.mxu0 %v444
    %484 = vmatprep.subr.mxu0 0.0
    %485 = vmatpush2.msra.mxu0 0.0
    %486 = vmatprep.subr.mxu0 0.0
    %487 = vmatpush2.msra.mxu0 0.0
    %488 = vmatprep.subr.mxu0 0.0
    %489 = vmatpush2.msra.mxu0 0.0
    %490 = vmatprep.subr.mxu0 0.0
    %491 = vmatpush2.msra.mxu0 0.0
    %492 = vmatprep.subr.mxu0 0.0
    %493 = vmatpush2.msra.mxu0 0.0
    %494 = vmatprep.subr.mxu0 0.0
    %495 = vmatpush2.msra.mxu0 0.0
    %496 = vmatprep.subr.mxu0 0.0
    %497 = vmatpush2.msra.mxu0 0.0
    %498 = vmatprep.subr.mxu0 0.0
    %499 = vmatpush2.msra.mxu0 0.0
    %500 = vmatprep.subr.mxu0 0.0
    %501 = vmatpush2.msra.mxu0 0.0
    %502 = vmatprep.subr.mxu0 0.0
    %503 = vmatpush2.msra.mxu0 0.0
    %504 = vmatprep.subr.mxu0 0.0
    %505 = vmatpush2.msra.mxu0 0.0
    %506 = vmatprep.subr.mxu0 0.0
    %507 = vmatpush2.msra.mxu0 0.0
    %508 = vmatprep.subr.mxu0 0.0
    %509 = vmatpush2.msra.mxu0 0.0
    %510 = vmatprep.subr.mxu0 0.0
    %511 = vmatpush2.msra.mxu0 0.0
    %512 = vmatprep.subr.mxu0 0.0
    %513 = vmatpush2.msra.mxu0 0.0
    %514 = vmatprep.subr.mxu0 0.0
    %515 = vmatpush2.msra.mxu0 0.0
    %516 = vmatprep.mubr.f32.mxu0 0.0
    %517 = vmatmul.mubr.f32.gmra.mxu0 %v448
    %v518 = vpop.f32.mrf.mxu0
    %v519 = vadd.f32 0.0, %v518
    %v520 = vpop.f32.mrf.mxu0
    %521 = vmatprep.mubr.f32.mxu0 0.0
    %522 = vmatmul.mubr.f32.gmra.mxu0 %v450
    %v523 = vpop.f32.mrf.mxu0
    %v524 = vadd.f32 0.0, %v523
    %v525 = vpop.f32.mrf.mxu0
    %526 = vdwg.mxu0
    %v527 = vmul.f32 %v519, 0.5
    %v528 = vmul.f32 %v524, 0.5
    %v529 = vadd.f32 %v527, %v158
    %v530 = vadd.f32 %v528, %v159
    %531 = vmax.xlane.f32.xlu0 %v529
    %v532 = vpop.xlane.xlu0 %531
    %533 = vmax.xlane.f32.xlu0 %v530
    %v534 = vpop.xlane.xlu0 %533
    %v535 = vsub.f32 %v529, %v532
    %v536 = vsub.f32 %v530, %v534
    %v537 = vmul.f32 %v535, 1.442695
    %v538 = vpow.pop %v537
    %v539 = vmul.f32 %v536, 1.442695
    %v540 = vpow.pop %v539
    %541 = vmatprep.subr.mxu0 0.0
    %542 = vmatpush1.msra.mxu0 %v175
    %543 = vmatprep.subr.mxu0 0.0
    %544 = vmatpush1.msra.mxu0 %v174
    %545 = vmatprep.subr.mxu0 0.0
    %546 = vmatpush1.msra.mxu0 %v173
    %547 = vmatprep.subr.mxu0 0.0
    %548 = vmatpush1.msra.mxu0 %v172
    %549 = vmatprep.subr.mxu0 0.0
    %550 = vmatpush1.msra.mxu0 %v171
    %551 = vmatprep.subr.mxu0 0.0
    %552 = vmatpush1.msra.mxu0 %v170
    %553 = vmatprep.subr.mxu0 0.0
    %554 = vmatpush1.msra.mxu0 %v169
    %555 = vmatprep.subr.mxu0 0.0
    %556 = vmatpush1.msra.mxu0 %v168
    %557 = vmatprep.subr.mxu0 0.0
    %558 = vmatpush1.msra.mxu0 %v167
    %559 = vmatprep.subr.mxu0 0.0
    %560 = vmatpush1.msra.mxu0 %v166
    %561 = vmatprep.subr.mxu0 0.0
    %562 = vmatpush1.msra.mxu0 %v165
    %563 = vmatprep.subr.mxu0 0.0
    %564 = vmatpush1.msra.mxu0 %v164
    %565 = vmatprep.subr.mxu0 0.0
    %566 = vmatpush1.msra.mxu0 %v163
    %567 = vmatprep.subr.mxu0 0.0
    %568 = vmatpush1.msra.mxu0 %v162
    %569 = vmatprep.subr.mxu0 0.0
    %570 = vmatpush1.msra.mxu0 %v161
    %571 = vmatprep.subr.mxu0 0.0
    %572 = vmatpush1.msra.mxu0 %v160
    %573 = vmatprep.subr.mxu0 0.0
    %574 = vmatpush2.msra.mxu0 0.0
    %575 = vmatprep.subr.mxu0 0.0
    %576 = vmatpush2.msra.mxu0 0.0
    %577 = vmatprep.subr.mxu0 0.0
    %578 = vmatpush2.msra.mxu0 0.0
    %579 = vmatprep.subr.mxu0 0.0
    %580 = vmatpush2.msra.mxu0 0.0
    %581 = vmatprep.subr.mxu0 0.0
    %582 = vmatpush2.msra.mxu0 0.0
    %583 = vmatprep.subr.mxu0 0.0
    %584 = vmatpush2.msra.mxu0 0.0
    %585 = vmatprep.subr.mxu0 0.0
    %586 = vmatpush2.msra.mxu0 0.0
    %587 = vmatprep.subr.mxu0 0.0
    %588 = vmatpush2.msra.mxu0 0.0
    %589 = vmatprep.subr.mxu0 0.0
    %590 = vmatpush2.msra.mxu0 0.0
    %591 = vmatprep.subr.mxu0 0.0
    %592 = vmatpush2.msra.mxu0 0.0
    %593 = vmatprep.subr.mxu0 0.0
    %594 = vmatpush2.msra.mxu0 0.0
    %595 = vmatprep.subr.mxu0 0.0
    %596 = vmatpush2.msra.mxu0 0.0
    %597 = vmatprep.subr.mxu0 0.0
    %598 = vmatpush2.msra.mxu0 0.0
    %599 = vmatprep.subr.mxu0 0.0
    %600 = vmatpush2.msra.mxu0 0.0
    %601 = vmatprep.subr.mxu0 0.0
    %602 = vmatpush2.msra.mxu0 0.0
    %603 = vmatprep.subr.mxu0 0.0
    %604 = vmatpush2.msra.mxu0 0.0
    %605 = vmatprep.mubr.f32.mxu0 0.0
    %606 = vmatmul.mubr.f32.gmra.mxu0 %v538
    %v607 = vpop.f32.mrf.mxu0
    %v608 = vadd.f32 0.0, %v607
    %v609 = vpop.f32.mrf.mxu0
    %610 = vmatprep.mubr.f32.mxu0 0.0
    %611 = vmatmul.mubr.f32.gmra.mxu0 %v540
    %v612 = vpop.f32.mrf.mxu0
    %v613 = vadd.f32 0.0, %v612
    %v614 = vpop.f32.mrf.mxu0
    %615 = vdwg.mxu0
    %v616 = vrcp.pop %v608
    %v617 = vrcp.pop %v613
    %v618 = vmul.f32 %v538, %v616
    %v619 = vmul.f32 %v540, %v617
    %620 = vrot.lane.b32.xlu0 %v298, 64
    %v621 = vpop.permute.xlu0 %620
    %622 = vrot.lane.b32.xlu0 %v303, 64
    %v623 = vpop.permute.xlu0 %622
    %v627 = vsel %vm346, %v178, 0
    %v630 = vsel %vm346, %v179, 0
    %v633 = vsel %vm346, %v180, 0
    %v636 = vsel %vm346, %v181, 0
    %v639 = vsel %vm346, %v182, 0
    %v642 = vsel %vm346, %v183, 0
    %v645 = vsel %vm346, %v184, 0
    %v648 = vsel %vm346, %v185, 0
    %v651 = vsel %vm346, %v186, 0
    %v654 = vsel %vm346, %v187, 0
    %v657 = vsel %vm346, %v188, 0
    %v660 = vsel %vm346, %v189, 0
    %v663 = vsel %vm346, %v190, 0
    %v666 = vsel %vm346, %v191, 0
    %v669 = vsel %vm346, %v192, 0
    %v672 = vsel %vm346, %v193, 0
    %674 = vmatprep.subr.mxu0 0.0
    %675 = vmatpush1.msra.mxu0 0.0
    %676 = vmatprep.subr.mxu0 0.0
    %677 = vmatpush1.msra.mxu0 0.0
    %678 = vmatprep.subr.mxu0 0.0
    %679 = vmatpush1.msra.mxu0 0.0
    %680 = vmatprep.subr.mxu0 0.0
    %681 = vmatpush1.msra.mxu0 0.0
    %682 = vmatprep.subr.mxu0 0.0
    %683 = vmatpush1.msra.mxu0 0.0
    %684 = vmatprep.subr.mxu0 0.0
    %685 = vmatpush1.msra.mxu0 0.0
    %686 = vmatprep.subr.mxu0 0.0
    %687 = vmatpush1.msra.mxu0 0.0
    %688 = vmatprep.subr.mxu0 0.0
    %689 = vmatpush1.msra.mxu0 0.0
    %690 = vmatprep.subr.mxu0 0.0
    %691 = vmatpush1.msra.mxu0 0.0
    %692 = vmatprep.subr.mxu0 0.0
    %693 = vmatpush1.msra.mxu0 0.0
    %694 = vmatprep.subr.mxu0 0.0
    %695 = vmatpush1.msra.mxu0 0.0
    %696 = vmatprep.subr.mxu0 0.0
    %697 = vmatpush1.msra.mxu0 0.0
    %698 = vmatprep.subr.mxu0 0.0
    %699 = vmatpush1.msra.mxu0 0.0
    %700 = vmatprep.subr.mxu0 0.0
    %701 = vmatpush1.msra.mxu0 0.0
    %702 = vmatprep.subr.mxu0 0.0
    %703 = vmatpush1.msra.mxu0 %v623
    %704 = vmatprep.subr.mxu0 0.0
    %705 = vmatpush1.msra.mxu0 %v621
    %706 = vmatprep.subr.mxu0 0.0
    %707 = vmatpush2.msra.mxu0 0.0
    %708 = vmatprep.subr.mxu0 0.0
    %709 = vmatpush2.msra.mxu0 0.0
    %710 = vmatprep.subr.mxu0 0.0
    %711 = vmatpush2.msra.mxu0 0.0
    %712 = vmatprep.subr.mxu0 0.0
    %713 = vmatpush2.msra.mxu0 0.0
    %714 = vmatprep.subr.mxu0 0.0
    %715 = vmatpush2.msra.mxu0 0.0
    %716 = vmatprep.subr.mxu0 0.0
    %717 = vmatpush2.msra.mxu0 0.0
    %718 = vmatprep.subr.mxu0 0.0
    %719 = vmatpush2.msra.mxu0 0.0
    %720 = vmatprep.subr.mxu0 0.0
    %721 = vmatpush2.msra.mxu0 0.0
    %722 = vmatprep.subr.mxu0 0.0
    %723 = vmatpush2.msra.mxu0 0.0
    %724 = vmatprep.subr.mxu0 0.0
    %725 = vmatpush2.msra.mxu0 0.0
    %726 = vmatprep.subr.mxu0 0.0
    %727 = vmatpush2.msra.mxu0 0.0
    %728 = vmatprep.subr.mxu0 0.0
    %729 = vmatpush2.msra.mxu0 0.0
    %730 = vmatprep.subr.mxu0 0.0
    %731 = vmatpush2.msra.mxu0 0.0
    %732 = vmatprep.subr.mxu0 0.0
    %733 = vmatpush2.msra.mxu0 0.0
    %734 = vmatprep.subr.mxu0 0.0
    %735 = vmatpush2.msra.mxu0 0.0
    %736 = vmatprep.subr.mxu0 0.0
    %737 = vmatpush2.msra.mxu0 0.0
    %738 = vmatprep.mubr.f32.mxu0 0.0
    %739 = vmatmul.mubr.f32.gmra.mxu0 %v627
    %v740 = vpop.f32.mrf.mxu0
    %v741 = vadd.f32 0.0, %v740
    %v742 = vpop.f32.mrf.mxu0
    %743 = vmatprep.mubr.f32.mxu0 0.0
    %744 = vmatmul.mubr.f32.gmra.mxu0 %v630
    %v745 = vpop.f32.mrf.mxu0
    %v746 = vadd.f32 0.0, %v745
    %v747 = vpop.f32.mrf.mxu0
    %748 = vmatprep.mubr.f32.mxu0 0.0
    %749 = vmatmul.mubr.f32.gmra.mxu0 %v633
    %v750 = vpop.f32.mrf.mxu0
    %v751 = vadd.f32 0.0, %v750
    %v752 = vpop.f32.mrf.mxu0
    %753 = vmatprep.mubr.f32.mxu0 0.0
    %754 = vmatmul.mubr.f32.gmra.mxu0 %v636
    %v755 = vpop.f32.mrf.mxu0
    %v756 = vadd.f32 0.0, %v755
    %v757 = vpop.f32.mrf.mxu0
    %758 = vmatprep.mubr.f32.mxu0 0.0
    %759 = vmatmul.mubr.f32.gmra.mxu0 %v639
    %v760 = vpop.f32.mrf.mxu0
    %v761 = vadd.f32 0.0, %v760
    %v762 = vpop.f32.mrf.mxu0
    %763 = vmatprep.mubr.f32.mxu0 0.0
    %764 = vmatmul.mubr.f32.gmra.mxu0 %v642
    %v765 = vpop.f32.mrf.mxu0
    %v766 = vadd.f32 0.0, %v765
    %v767 = vpop.f32.mrf.mxu0
    %768 = vmatprep.mubr.f32.mxu0 0.0
    %769 = vmatmul.mubr.f32.gmra.mxu0 %v645
    %v770 = vpop.f32.mrf.mxu0
    %v771 = vadd.f32 0.0, %v770
    %v772 = vpop.f32.mrf.mxu0
    %773 = vmatprep.mubr.f32.mxu0 0.0
    %774 = vmatmul.mubr.f32.gmra.mxu0 %v648
    %v775 = vpop.f32.mrf.mxu0
    %v776 = vadd.f32 0.0, %v775
    %v777 = vpop.f32.mrf.mxu0
    %778 = vmatprep.mubr.f32.mxu0 0.0
    %779 = vmatmul.mubr.f32.gmra.mxu0 %v651
    %v780 = vpop.f32.mrf.mxu0
    %v781 = vadd.f32 0.0, %v780
    %v782 = vpop.f32.mrf.mxu0
    %783 = vmatprep.mubr.f32.mxu0 0.0
    %784 = vmatmul.mubr.f32.gmra.mxu0 %v654
    %v785 = vpop.f32.mrf.mxu0
    %v786 = vadd.f32 0.0, %v785
    %v787 = vpop.f32.mrf.mxu0
    %788 = vmatprep.mubr.f32.mxu0 0.0
    %789 = vmatmul.mubr.f32.gmra.mxu0 %v657
    %v790 = vpop.f32.mrf.mxu0
    %v791 = vadd.f32 0.0, %v790
    %v792 = vpop.f32.mrf.mxu0
    %793 = vmatprep.mubr.f32.mxu0 0.0
    %794 = vmatmul.mubr.f32.gmra.mxu0 %v660
    %v795 = vpop.f32.mrf.mxu0
    %v796 = vadd.f32 0.0, %v795
    %v797 = vpop.f32.mrf.mxu0
    %798 = vmatprep.mubr.f32.mxu0 0.0
    %799 = vmatmul.mubr.f32.gmra.mxu0 %v663
    %v800 = vpop.f32.mrf.mxu0
    %v801 = vadd.f32 0.0, %v800
    %v802 = vpop.f32.mrf.mxu0
    %803 = vmatprep.mubr.f32.mxu0 0.0
    %804 = vmatmul.mubr.f32.gmra.mxu0 %v666
    %v805 = vpop.f32.mrf.mxu0
    %v806 = vadd.f32 0.0, %v805
    %v807 = vpop.f32.mrf.mxu0
    %808 = vmatprep.mubr.f32.mxu0 0.0
    %809 = vmatmul.mubr.f32.gmra.mxu0 %v669
    %v810 = vpop.f32.mrf.mxu0
    %v811 = vadd.f32 0.0, %v810
    %v812 = vpop.f32.mrf.mxu0
    %813 = vmatprep.mubr.f32.mxu0 0.0
    %814 = vmatmul.mubr.f32.gmra.mxu0 %v672
    %v815 = vpop.f32.mrf.mxu0
    %v816 = vadd.f32 0.0, %v815
    %v817 = vpop.f32.mrf.mxu0
    %818 = vdwg.mxu0
    %v819 = vmul.f32 %v741, %v198
    %v820 = vmul.f32 %v746, %v199
    %v821 = vmul.f32 %v751, %v200
    %v822 = vmul.f32 %v756, %v201
    %v823 = vmul.f32 %v761, %v202
    %v824 = vmul.f32 %v766, %v203
    %v825 = vmul.f32 %v771, %v204
    %v826 = vmul.f32 %v776, %v205
    %v827 = vmul.f32 %v781, %v206
    %v828 = vmul.f32 %v786, %v207
    %v829 = vmul.f32 %v791, %v208
    %v830 = vmul.f32 %v796, %v209
    %v831 = vmul.f32 %v801, %v210
    %v832 = vmul.f32 %v806, %v211
    %v833 = vmul.f32 %v811, %v212
    %v834 = vmul.f32 %v816, %v213
    %835 = vmatprep.subr.mxu0 0.0
    %836 = vmatpush1.msra.mxu0 %v834
    %837 = vmatprep.subr.mxu0 0.0
    %838 = vmatpush1.msra.mxu0 %v833
    %839 = vmatprep.subr.mxu0 0.0
    %840 = vmatpush1.msra.mxu0 %v832
    %841 = vmatprep.subr.mxu0 0.0
    %842 = vmatpush1.msra.mxu0 %v831
    %843 = vmatprep.subr.mxu0 0.0
    %844 = vmatpush1.msra.mxu0 %v830
    %845 = vmatprep.subr.mxu0 0.0
    %846 = vmatpush1.msra.mxu0 %v829
    %847 = vmatprep.subr.mxu0 0.0
    %848 = vmatpush1.msra.mxu0 %v828
    %849 = vmatprep.subr.mxu0 0.0
    %850 = vmatpush1.msra.mxu0 %v827
    %851 = vmatprep.subr.mxu0 0.0
    %852 = vmatpush1.msra.mxu0 %v826
    %853 = vmatprep.subr.mxu0 0.0
    %854 = vmatpush1.msra.mxu0 %v825
    %855 = vmatprep.subr.mxu0 0.0
    %856 = vmatpush1.msra.mxu0 %v824
    %857 = vmatprep.subr.mxu0 0.0
    %858 = vmatpush1.msra.mxu0 %v823
    %859 = vmatprep.subr.mxu0 0.0
    %860 = vmatpush1.msra.mxu0 %v822
    %861 = vmatprep.subr.mxu0 0.0
    %862 = vmatpush1.msra.mxu0 %v821
    %863 = vmatprep.subr.mxu0 0.0
    %864 = vmatpush1.msra.mxu0 %v820
    %865 = vmatprep.subr.mxu0 0.0
    %866 = vmatpush1.msra.mxu0 %v819
    %867 = vmatprep.subr.mxu0 0.0
    %868 = vmatpush2.msra.mxu0 0.0
    %869 = vmatprep.subr.mxu0 0.0
    %870 = vmatpush2.msra.mxu0 0.0
    %871 = vmatprep.subr.mxu0 0.0
    %872 = vmatpush2.msra.mxu0 0.0
    %873 = vmatprep.subr.mxu0 0.0
    %874 = vmatpush2.msra.mxu0 0.0
    %875 = vmatprep.subr.mxu0 0.0
    %876 = vmatpush2.msra.mxu0 0.0
    %877 = vmatprep.subr.mxu0 0.0
    %878 = vmatpush2.msra.mxu0 0.0
    %879 = vmatprep.subr.mxu0 0.0
    %880 = vmatpush2.msra.mxu0 0.0
    %881 = vmatprep.subr.mxu0 0.0
    %882 = vmatpush2.msra.mxu0 0.0
    %883 = vmatprep.subr.mxu0 0.0
    %884 = vmatpush2.msra.mxu0 0.0
    %885 = vmatprep.subr.mxu0 0.0
    %886 = vmatpush2.msra.mxu0 0.0
    %887 = vmatprep.subr.mxu0 0.0
    %888 = vmatpush2.msra.mxu0 0.0
    %889 = vmatprep.subr.mxu0 0.0
    %890 = vmatpush2.msra.mxu0 0.0
    %891 = vmatprep.subr.mxu0 0.0
    %892 = vmatpush2.msra.mxu0 0.0
    %893 = vmatprep.subr.mxu0 0.0
    %894 = vmatpush2.msra.mxu0 0.0
    %895 = vmatprep.subr.mxu0 0.0
    %896 = vmatpush2.msra.mxu0 0.0
    %897 = vmatprep.subr.mxu0 0.0
    %898 = vmatpush2.msra.mxu0 0.0
    %899 = vmatprep.mubr.f32.mxu0 0.0
    %900 = vmatmul.mubr.f32.gmra.mxu0 %v618
    %v901 = vpop.f32.mrf.mxu0
    %v902 = vadd.f32 0.0, %v901
    %v903 = vpop.f32.mrf.mxu0
    %904 = vmatprep.mubr.f32.mxu0 0.0
    %905 = vmatmul.mubr.f32.gmra.mxu0 %v619
    %v906 = vpop.f32.mrf.mxu0
    %v907 = vadd.f32 0.0, %v906
    %v908 = vpop.f32.mrf.mxu0
    %909 = vdwg.mxu0
    %v910 = vld [vmem:[%s11] sm:$0xff]
    %v911 = vld [vmem:[%s11 + $0x8] sm:$0xff]
    %v912 = vld [vmem:[%s11 + $0x10] sm:$0xff]
    %v913 = vld [vmem:[%s11 + $0x18] sm:$0xff]
    %v914 = vld [vmem:[%s12] sm:$0x1]
    %v916 = vlaneseq
    %v917 = vshrl.u32 %v916, 7
    %v918 = vsub.s32 0, %v917
    %v919 = vrot.slane %v914, %v918
    %v922 = vsel %vm155, %v902, 0
    %v925 = vsel %vm155, %v907, 0
    %927 = vmatprep.subr.mxu0 0.0
    %928 = vmatpush1.msra.mxu0 0.0
    %929 = vmatprep.subr.mxu0 0.0
    %930 = vmatpush1.msra.mxu0 0.0
    %931 = vmatprep.subr.mxu0 0.0
    %932 = vmatpush1.msra.mxu0 0.0
    %933 = vmatprep.subr.mxu0 0.0
    %934 = vmatpush1.msra.mxu0 0.0
    %935 = vmatprep.subr.mxu0 0.0
    %936 = vmatpush1.msra.mxu0 0.0
    %937 = vmatprep.subr.mxu0 0.0
    %938 = vmatpush1.msra.mxu0 0.0
    %939 = vmatprep.subr.mxu0 0.0
    %940 = vmatpush1.msra.mxu0 0.0
    %941 = vmatprep.subr.mxu0 0.0
    %942 = vmatpush1.msra.mxu0 0.0
    %943 = vmatprep.subr.mxu0 0.0
    %944 = vmatpush1.msra.mxu0 0.0
    %945 = vmatprep.subr.mxu0 0.0
    %946 = vmatpush1.msra.mxu0 0.0
    %947 = vmatprep.subr.mxu0 0.0
    %948 = vmatpush1.msra.mxu0 0.0
    %949 = vmatprep.subr.mxu0 0.0
    %950 = vmatpush1.msra.mxu0 0.0
    %951 = vmatprep.subr.mxu0 0.0
    %952 = vmatpush1.msra.mxu0 %v913
    %953 = vmatprep.subr.mxu0 0.0
    %954 = vmatpush1.msra.mxu0 %v912
    %955 = vmatprep.subr.mxu0 0.0
    %956 = vmatpush1.msra.mxu0 %v911
    %957 = vmatprep.subr.mxu0 0.0
    %958 = vmatpush1.msra.mxu0 %v910
    %959 = vmatprep.subr.mxu0 0.0
    %960 = vmatpush2.msra.mxu0 0.0
    %961 = vmatprep.subr.mxu0 0.0
    %962 = vmatpush2.msra.mxu0 0.0
    %963 = vmatprep.subr.mxu0 0.0
    %964 = vmatpush2.msra.mxu0 0.0
    %965 = vmatprep.subr.mxu0 0.0
    %966 = vmatpush2.msra.mxu0 0.0
    %967 = vmatprep.subr.mxu0 0.0
    %968 = vmatpush2.msra.mxu0 0.0
    %969 = vmatprep.subr.mxu0 0.0
    %970 = vmatpush2.msra.mxu0 0.0
    %971 = vmatprep.subr.mxu0 0.0
    %972 = vmatpush2.msra.mxu0 0.0
    %973 = vmatprep.subr.mxu0 0.0
    %974 = vmatpush2.msra.mxu0 0.0
    %975 = vmatprep.subr.mxu0 0.0
    %976 = vmatpush2.msra.mxu0 0.0
    %977 = vmatprep.subr.mxu0 0.0
    %978 = vmatpush2.msra.mxu0 0.0
    %979 = vmatprep.subr.mxu0 0.0
    %980 = vmatpush2.msra.mxu0 0.0
    %981 = vmatprep.subr.mxu0 0.0
    %982 = vmatpush2.msra.mxu0 0.0
    %983 = vmatprep.subr.mxu0 0.0
    %984 = vmatpush2.msra.mxu0 0.0
    %985 = vmatprep.subr.mxu0 0.0
    %986 = vmatpush2.msra.mxu0 0.0
    %987 = vmatprep.subr.mxu0 0.0
    %988 = vmatpush2.msra.mxu0 0.0
    %989 = vmatprep.subr.mxu0 0.0
    %990 = vmatpush2.msra.mxu0 0.0
    %991 = vmatprep.mubr.f32.mxu0 0.0
    %992 = vmatmul.mubr.f32.gmra.mxu0 %v922
    %v993 = vpop.f32.mrf.mxu0
    %v994 = vadd.f32 %v919, %v993
    %v995 = vpop.f32.mrf.mxu0
    %996 = vmatprep.mubr.f32.mxu0 0.0
    %997 = vmatmul.mubr.f32.gmra.mxu0 %v925
    %v998 = vpop.f32.mrf.mxu0
    %v999 = vadd.f32 %v919, %v998
    %v1000 = vpop.f32.mrf.mxu0
    %1001 = vdwg.mxu0
    %v1002 = vadd.f32 %v147, %v994
    %v1003 = vadd.f32 %v152, %v999
    %v1004 = vld [vmem:[%s13] sm:$0xff]
    %v1005 = vld [vmem:[%s13 + $0x8] sm:$0xff]
    %v1006 = vld [vmem:[%s13 + $0x10] sm:$0xff]
    %v1007 = vld [vmem:[%s13 + $0x18] sm:$0xff]
    %v1008 = vld [vmem:[%s13 + $0x20] sm:$0xff]
    %v1009 = vld [vmem:[%s13 + $0x28] sm:$0xff]
    %v1010 = vld [vmem:[%s13 + $0x30] sm:$0xff]
    %v1011 = vld [vmem:[%s13 + $0x38] sm:$0xff]
    %v1012 = vld [vmem:[%s13 + $0x40] sm:$0xff]
    %v1013 = vld [vmem:[%s13 + $0x48] sm:$0xff]
    %v1014 = vld [vmem:[%s13 + $0x50] sm:$0xff]
    %v1015 = vld [vmem:[%s13 + $0x58] sm:$0xff]
    %v1016 = vld [vmem:[%s13 + $0x60] sm:$0xff]
    %v1017 = vld [vmem:[%s13 + $0x68] sm:$0xff]
    %v1018 = vld [vmem:[%s13 + $0x70] sm:$0xff]
    %v1019 = vld [vmem:[%s13 + $0x78] sm:$0xff]
    %v1020 = vld [vmem:[%s14] sm:$0xf]
    %v1022 = vlaneseq
    %v1023 = vshrl.u32 %v1022, 7
    %v1024 = vsub.s32 0, %v1023
    %v1025 = vrot.slane %v1020, %v1024
    %v1026 = vlaneseq
    %v1027 = vshrl.u32 %v1026, 7
    %v1028 = vsub.s32 1, %v1027
    %v1029 = vrot.slane %v1020, %v1028
    %v1030 = vlaneseq
    %v1031 = vshrl.u32 %v1030, 7
    %v1032 = vsub.s32 2, %v1031
    %v1033 = vrot.slane %v1020, %v1032
    %v1034 = vlaneseq
    %v1035 = vshrl.u32 %v1034, 7
    %v1036 = vsub.s32 3, %v1035
    %v1037 = vrot.slane %v1020, %v1036
    %v1043 = vsel %vm155, %v1002, 0
    %v1046 = vsel %vm155, %v1003, 0
    %1048 = vmatprep.subr.mxu0 0.0
    %1049 = vmatpush1.msra.mxu0 0.0
    %1050 = vmatprep.subr.mxu0 0.0
    %1051 = vmatpush1.msra.mxu0 0.0
    %1052 = vmatprep.subr.mxu0 0.0
    %1053 = vmatpush1.msra.mxu0 0.0
    %1054 = vmatprep.subr.mxu0 0.0
    %1055 = vmatpush1.msra.mxu0 0.0
    %1056 = vmatprep.subr.mxu0 0.0
    %1057 = vmatpush1.msra.mxu0 0.0
    %1058 = vmatprep.subr.mxu0 0.0
    %1059 = vmatpush1.msra.mxu0 0.0
    %1060 = vmatprep.subr.mxu0 0.0
    %1061 = vmatpush1.msra.mxu0 0.0
    %1062 = vmatprep.subr.mxu0 0.0
    %1063 = vmatpush1.msra.mxu0 0.0
    %1064 = vmatprep.subr.mxu0 0.0
    %1065 = vmatpush1.msra.mxu0 0.0
    %1066 = vmatprep.subr.mxu0 0.0
    %1067 = vmatpush1.msra.mxu0 0.0
    %1068 = vmatprep.subr.mxu0 0.0
    %1069 = vmatpush1.msra.mxu0 0.0
    %1070 = vmatprep.subr.mxu0 0.0
    %1071 = vmatpush1.msra.mxu0 0.0
    %1072 = vmatprep.subr.mxu0 %v1017
    %1073 = vmatpush1.msra.mxu0 %v1016
    %1074 = vmatprep.subr.mxu0 %v1013
    %1075 = vmatpush1.msra.mxu0 %v1012
    %1076 = vmatprep.subr.mxu0 %v1009
    %1077 = vmatpush1.msra.mxu0 %v1008
    %1078 = vmatprep.subr.mxu0 %v1005
    %1079 = vmatpush1.msra.mxu0 %v1004
    %1080 = vmatprep.subr.mxu0 0.0
    %1081 = vmatpush2.msra.mxu0 0.0
    %1082 = vmatprep.subr.mxu0 0.0
    %1083 = vmatpush2.msra.mxu0 0.0
    %1084 = vmatprep.subr.mxu0 0.0
    %1085 = vmatpush2.msra.mxu0 0.0
    %1086 = vmatprep.subr.mxu0 0.0
    %1087 = vmatpush2.msra.mxu0 0.0
    %1088 = vmatprep.subr.mxu0 0.0
    %1089 = vmatpush2.msra.mxu0 0.0
    %1090 = vmatprep.subr.mxu0 0.0
    %1091 = vmatpush2.msra.mxu0 0.0
    %1092 = vmatprep.subr.mxu0 0.0
    %1093 = vmatpush2.msra.mxu0 0.0
    %1094 = vmatprep.subr.mxu0 0.0
    %1095 = vmatpush2.msra.mxu0 0.0
    %1096 = vmatprep.subr.mxu0 0.0
    %1097 = vmatpush2.msra.mxu0 0.0
    %1098 = vmatprep.subr.mxu0 0.0
    %1099 = vmatpush2.msra.mxu0 0.0
    %1100 = vmatprep.subr.mxu0 0.0
    %1101 = vmatpush2.msra.mxu0 0.0
    %1102 = vmatprep.subr.mxu0 0.0
    %1103 = vmatpush2.msra.mxu0 0.0
    %1104 = vmatprep.subr.mxu0 0.0
    %1105 = vmatpush2.msra.mxu0 0.0
    %1106 = vmatprep.subr.mxu0 0.0
    %1107 = vmatpush2.msra.mxu0 0.0
    %1108 = vmatprep.subr.mxu0 0.0
    %1109 = vmatpush2.msra.mxu0 0.0
    %1110 = vmatprep.subr.mxu0 0.0
    %1111 = vmatpush2.msra.mxu0 0.0
    %1112 = vmatprep.mubr.f32.mxu0 0.0
    %1113 = vmatmul.mubr.f32.gmra.mxu0 %v1043
    %v1114 = vpop.f32.mrf.mxu0
    %v1115 = vadd.f32 %v1025, %v1114
    %v1116 = vpop.f32.mrf.mxu0
    %v1117 = vadd.f32 %v1029, %v1116
    %1118 = vmatprep.mubr.f32.mxu0 0.0
    %1119 = vmatmul.mubr.f32.gmra.mxu0 %v1046
    %v1120 = vpop.f32.mrf.mxu0
    %v1121 = vadd.f32 %v1025, %v1120
    %v1122 = vpop.f32.mrf.mxu0
    %v1123 = vadd.f32 %v1029, %v1122
    %1124 = vdwg.mxu0
    %1125 = vmatprep.subr.mxu0 0.0
    %1126 = vmatpush1.msra.mxu0 0.0
    %1127 = vmatprep.subr.mxu0 0.0
    %1128 = vmatpush1.msra.mxu0 0.0
    %1129 = vmatprep.subr.mxu0 0.0
    %1130 = vmatpush1.msra.mxu0 0.0
    %1131 = vmatprep.subr.mxu0 0.0
    %1132 = vmatpush1.msra.mxu0 0.0
    %1133 = vmatprep.subr.mxu0 0.0
    %1134 = vmatpush1.msra.mxu0 0.0
    %1135 = vmatprep.subr.mxu0 0.0
    %1136 = vmatpush1.msra.mxu0 0.0
    %1137 = vmatprep.subr.mxu0 0.0
    %1138 = vmatpush1.msra.mxu0 0.0
    %1139 = vmatprep.subr.mxu0 0.0
    %1140 = vmatpush1.msra.mxu0 0.0
    %1141 = vmatprep.subr.mxu0 0.0
    %1142 = vmatpush1.msra.mxu0 0.0
    %1143 = vmatprep.subr.mxu0 0.0
    %1144 = vmatpush1.msra.mxu0 0.0
    %1145 = vmatprep.subr.mxu0 0.0
    %1146 = vmatpush1.msra.mxu0 0.0
    %1147 = vmatprep.subr.mxu0 0.0
    %1148 = vmatpush1.msra.mxu0 0.0
    %1149 = vmatprep.subr.mxu0 %v1019
    %1150 = vmatpush1.msra.mxu0 %v1018
    %1151 = vmatprep.subr.mxu0 %v1015
    %1152 = vmatpush1.msra.mxu0 %v1014
    %1153 = vmatprep.subr.mxu0 %v1011
    %1154 = vmatpush1.msra.mxu0 %v1010
    %1155 = vmatprep.subr.mxu0 %v1007
    %1156 = vmatpush1.msra.mxu0 %v1006
    %1157 = vmatprep.subr.mxu0 0.0
    %1158 = vmatpush2.msra.mxu0 0.0
    %1159 = vmatprep.subr.mxu0 0.0
    %1160 = vmatpush2.msra.mxu0 0.0
    %1161 = vmatprep.subr.mxu0 0.0
    %1162 = vmatpush2.msra.mxu0 0.0
    %1163 = vmatprep.subr.mxu0 0.0
    %1164 = vmatpush2.msra.mxu0 0.0
    %1165 = vmatprep.subr.mxu0 0.0
    %1166 = vmatpush2.msra.mxu0 0.0
    %1167 = vmatprep.subr.mxu0 0.0
    %1168 = vmatpush2.msra.mxu0 0.0
    %1169 = vmatprep.subr.mxu0 0.0
    %1170 = vmatpush2.msra.mxu0 0.0
    %1171 = vmatprep.subr.mxu0 0.0
    %1172 = vmatpush2.msra.mxu0 0.0
    %1173 = vmatprep.subr.mxu0 0.0
    %1174 = vmatpush2.msra.mxu0 0.0
    %1175 = vmatprep.subr.mxu0 0.0
    %1176 = vmatpush2.msra.mxu0 0.0
    %1177 = vmatprep.subr.mxu0 0.0
    %1178 = vmatpush2.msra.mxu0 0.0
    %1179 = vmatprep.subr.mxu0 0.0
    %1180 = vmatpush2.msra.mxu0 0.0
    %1181 = vmatprep.subr.mxu0 0.0
    %1182 = vmatpush2.msra.mxu0 0.0
    %1183 = vmatprep.subr.mxu0 0.0
    %1184 = vmatpush2.msra.mxu0 0.0
    %1185 = vmatprep.subr.mxu0 0.0
    %1186 = vmatpush2.msra.mxu0 0.0
    %1187 = vmatprep.subr.mxu0 0.0
    %1188 = vmatpush2.msra.mxu0 0.0
    %1189 = vmatprep.mubr.f32.mxu0 0.0
    %1190 = vmatmul.mubr.f32.gmra.mxu0 %v1043
    %v1191 = vpop.f32.mrf.mxu0
    %v1192 = vadd.f32 %v1033, %v1191
    %v1193 = vpop.f32.mrf.mxu0
    %v1194 = vadd.f32 %v1037, %v1193
    %1195 = vmatprep.mubr.f32.mxu0 0.0
    %1196 = vmatmul.mubr.f32.gmra.mxu0 %v1046
    %v1197 = vpop.f32.mrf.mxu0
    %v1198 = vadd.f32 %v1033, %v1197
    %v1199 = vpop.f32.mrf.mxu0
    %v1200 = vadd.f32 %v1037, %v1199
    %1201 = vdwg.mxu0
    %v1202 = vmax.f32 %v1115, 0.0
    %v1203 = vmax.f32 %v1117, 0.0
    %v1204 = vmax.f32 %v1192, 0.0
    %v1205 = vmax.f32 %v1194, 0.0
    %v1206 = vmax.f32 %v1121, 0.0
    %v1207 = vmax.f32 %v1123, 0.0
    %v1208 = vmax.f32 %v1198, 0.0
    %v1209 = vmax.f32 %v1200, 0.0
    %v1210 = vld [vmem:[%s15] sm:$0xff]
    %v1211 = vld [vmem:[%s15 + $0x8] sm:$0xff]
    %v1212 = vld [vmem:[%s15 + $0x10] sm:$0xff]
    %v1213 = vld [vmem:[%s15 + $0x18] sm:$0xff]
    %v1214 = vld [vmem:[%s15 + $0x20] sm:$0xff]
    %v1215 = vld [vmem:[%s15 + $0x28] sm:$0xff]
    %v1216 = vld [vmem:[%s15 + $0x30] sm:$0xff]
    %v1217 = vld [vmem:[%s15 + $0x38] sm:$0xff]
    %v1218 = vld [vmem:[%s15 + $0x40] sm:$0xff]
    %v1219 = vld [vmem:[%s15 + $0x48] sm:$0xff]
    %v1220 = vld [vmem:[%s15 + $0x50] sm:$0xff]
    %v1221 = vld [vmem:[%s15 + $0x58] sm:$0xff]
    %v1222 = vld [vmem:[%s15 + $0x60] sm:$0xff]
    %v1223 = vld [vmem:[%s15 + $0x68] sm:$0xff]
    %v1224 = vld [vmem:[%s15 + $0x70] sm:$0xff]
    %v1225 = vld [vmem:[%s15 + $0x78] sm:$0xff]
    %v1226 = vld [vmem:[%s15 + $0x80] sm:$0xff]
    %v1227 = vld [vmem:[%s15 + $0x88] sm:$0xff]
    %v1228 = vld [vmem:[%s15 + $0x90] sm:$0xff]
    %v1229 = vld [vmem:[%s15 + $0x98] sm:$0xff]
    %v1230 = vld [vmem:[%s15 + $0xa0] sm:$0xff]
    %v1231 = vld [vmem:[%s15 + $0xa8] sm:$0xff]
    %v1232 = vld [vmem:[%s15 + $0xb0] sm:$0xff]
    %v1233 = vld [vmem:[%s15 + $0xb8] sm:$0xff]
    %v1234 = vld [vmem:[%s15 + $0xc0] sm:$0xff]
    %v1235 = vld [vmem:[%s15 + $0xc8] sm:$0xff]
    %v1236 = vld [vmem:[%s15 + $0xd0] sm:$0xff]
    %v1237 = vld [vmem:[%s15 + $0xd8] sm:$0xff]
    %v1238 = vld [vmem:[%s15 + $0xe0] sm:$0xff]
    %v1239 = vld [vmem:[%s15 + $0xe8] sm:$0xff]
    %v1240 = vld [vmem:[%s15 + $0xf0] sm:$0xff]
    %v1241 = vld [vmem:[%s15 + $0xf8] sm:$0xff]
    %v1242 = vld [vmem:[%s15 + $0x100] sm:$0xff]
    %v1243 = vld [vmem:[%s15 + $0x108] sm:$0xff]
    %v1244 = vld [vmem:[%s15 + $0x110] sm:$0xff]
    %v1245 = vld [vmem:[%s15 + $0x118] sm:$0xff]
    %v1246 = vld [vmem:[%s15 + $0x120] sm:$0xff]
    %v1247 = vld [vmem:[%s15 + $0x128] sm:$0xff]
    %v1248 = vld [vmem:[%s15 + $0x130] sm:$0xff]
    %v1249 = vld [vmem:[%s15 + $0x138] sm:$0xff]
    %v1250 = vld [vmem:[%s15 + $0x140] sm:$0xff]
    %v1251 = vld [vmem:[%s15 + $0x148] sm:$0xff]
    %v1252 = vld [vmem:[%s15 + $0x150] sm:$0xff]
    %v1253 = vld [vmem:[%s15 + $0x158] sm:$0xff]
    %v1254 = vld [vmem:[%s15 + $0x160] sm:$0xff]
    %v1255 = vld [vmem:[%s15 + $0x168] sm:$0xff]
    %v1256 = vld [vmem:[%s15 + $0x170] sm:$0xff]
    %v1257 = vld [vmem:[%s15 + $0x178] sm:$0xff]
    %v1258 = vld [vmem:[%s15 + $0x180] sm:$0xff]
    %v1259 = vld [vmem:[%s15 + $0x188] sm:$0xff]
    %v1260 = vld [vmem:[%s15 + $0x190] sm:$0xff]
    %v1261 = vld [vmem:[%s15 + $0x198] sm:$0xff]
    %v1262 = vld [vmem:[%s15 + $0x1a0] sm:$0xff]
    %v1263 = vld [vmem:[%s15 + $0x1a8] sm:$0xff]
    %v1264 = vld [vmem:[%s15 + $0x1b0] sm:$0xff]
    %v1265 = vld [vmem:[%s15 + $0x1b8] sm:$0xff]
    %v1266 = vld [vmem:[%s15 + $0x1c0] sm:$0xff]
    %v1267 = vld [vmem:[%s15 + $0x1c8] sm:$0xff]
    %v1268 = vld [vmem:[%s15 + $0x1d0] sm:$0xff]
    %v1269 = vld [vmem:[%s15 + $0x1d8] sm:$0xff]
    %v1270 = vld [vmem:[%s15 + $0x1e0] sm:$0xff]
    %v1271 = vld [vmem:[%s15 + $0x1e8] sm:$0xff]
    %v1272 = vld [vmem:[%s15 + $0x1f0] sm:$0xff]
    %v1273 = vld [vmem:[%s15 + $0x1f8] sm:$0xff]
    %v1274 = vld [vmem:[%s16] sm:$0x1]
    %v1276 = vlaneseq
    %v1277 = vshrl.u32 %v1276, 7
    %v1278 = vsub.s32 0, %v1277
    %v1279 = vrot.slane %v1274, %v1278
    %1281 = vmatprep.subr.mxu0 0.0
    %1282 = vmatpush1.msra.mxu0 %v1225
    %1283 = vmatprep.subr.mxu0 0.0
    %1284 = vmatpush1.msra.mxu0 %v1224
    %1285 = vmatprep.subr.mxu0 0.0
    %1286 = vmatpush1.msra.mxu0 %v1223
    %1287 = vmatprep.subr.mxu0 0.0
    %1288 = vmatpush1.msra.mxu0 %v1222
    %1289 = vmatprep.subr.mxu0 0.0
    %1290 = vmatpush1.msra.mxu0 %v1221
    %1291 = vmatprep.subr.mxu0 0.0
    %1292 = vmatpush1.msra.mxu0 %v1220
    %1293 = vmatprep.subr.mxu0 0.0
    %1294 = vmatpush1.msra.mxu0 %v1219
    %1295 = vmatprep.subr.mxu0 0.0
    %1296 = vmatpush1.msra.mxu0 %v1218
    %1297 = vmatprep.subr.mxu0 0.0
    %1298 = vmatpush1.msra.mxu0 %v1217
    %1299 = vmatprep.subr.mxu0 0.0
    %1300 = vmatpush1.msra.mxu0 %v1216
    %1301 = vmatprep.subr.mxu0 0.0
    %1302 = vmatpush1.msra.mxu0 %v1215
    %1303 = vmatprep.subr.mxu0 0.0
    %1304 = vmatpush1.msra.mxu0 %v1214
    %1305 = vmatprep.subr.mxu0 0.0
    %1306 = vmatpush1.msra.mxu0 %v1213
    %1307 = vmatprep.subr.mxu0 0.0
    %1308 = vmatpush1.msra.mxu0 %v1212
    %1309 = vmatprep.subr.mxu0 0.0
    %1310 = vmatpush1.msra.mxu0 %v1211
    %1311 = vmatprep.subr.mxu0 0.0
    %1312 = vmatpush1.msra.mxu0 %v1210
    %1313 = vmatprep.subr.mxu0 0.0
    %1314 = vmatpush2.msra.mxu0 %v1241
    %1315 = vmatprep.subr.mxu0 0.0
    %1316 = vmatpush2.msra.mxu0 %v1240
    %1317 = vmatprep.subr.mxu0 0.0
    %1318 = vmatpush2.msra.mxu0 %v1239
    %1319 = vmatprep.subr.mxu0 0.0
    %1320 = vmatpush2.msra.mxu0 %v1238
    %1321 = vmatprep.subr.mxu0 0.0
    %1322 = vmatpush2.msra.mxu0 %v1237
    %1323 = vmatprep.subr.mxu0 0.0
    %1324 = vmatpush2.msra.mxu0 %v1236
    %1325 = vmatprep.subr.mxu0 0.0
    %1326 = vmatpush2.msra.mxu0 %v1235
    %1327 = vmatprep.subr.mxu0 0.0
    %1328 = vmatpush2.msra.mxu0 %v1234
    %1329 = vmatprep.subr.mxu0 0.0
    %1330 = vmatpush2.msra.mxu0 %v1233
    %1331 = vmatprep.subr.mxu0 0.0
    %1332 = vmatpush2.msra.mxu0 %v1232
    %1333 = vmatprep.subr.mxu0 0.0
    %1334 = vmatpush2.msra.mxu0 %v1231
    %1335 = vmatprep.subr.mxu0 0.0
    %1336 = vmatpush2.msra.mxu0 %v1230
    %1337 = vmatprep.subr.mxu0 0.0
    %1338 = vmatpush2.msra.mxu0 %v1229
    %1339 = vmatprep.subr.mxu0 0.0
    %1340 = vmatpush2.msra.mxu0 %v1228
    %1341 = vmatprep.subr.mxu0 0.0
    %1342 = vmatpush2.msra.mxu0 %v1227
    %1343 = vmatprep.subr.mxu0 0.0
    %1344 = vmatpush2.msra.mxu0 %v1226
    %1345 = vmatprep.mubr.f32.mxu0 %v1203
    %1346 = vmatmul.mubr.f32.gmra.mxu0 %v1202
    %v1347 = vpop.f32.mrf.mxu0
    %v1348 = vadd.f32 %v1279, %v1347
    %v1349 = vpop.f32.mrf.mxu0
    %1350 = vmatprep.mubr.f32.mxu0 %v1207
    %1351 = vmatmul.mubr.f32.gmra.mxu0 %v1206
    %v1352 = vpop.f32.mrf.mxu0
    %v1353 = vadd.f32 %v1279, %v1352
    %v1354 = vpop.f32.mrf.mxu0
    %1355 = vdwg.mxu0
    %1356 = vmatprep.subr.mxu0 0.0
    %1357 = vmatpush1.msra.mxu0 %v1257
    %1358 = vmatprep.subr.mxu0 0.0
    %1359 = vmatpush1.msra.mxu0 %v1256
    %1360 = vmatprep.subr.mxu0 0.0
    %1361 = vmatpush1.msra.mxu0 %v1255
    %1362 = vmatprep.subr.mxu0 0.0
    %1363 = vmatpush1.msra.mxu0 %v1254
    %1364 = vmatprep.subr.mxu0 0.0
    %1365 = vmatpush1.msra.mxu0 %v1253
    %1366 = vmatprep.subr.mxu0 0.0
    %1367 = vmatpush1.msra.mxu0 %v1252
    %1368 = vmatprep.subr.mxu0 0.0
    %1369 = vmatpush1.msra.mxu0 %v1251
    %1370 = vmatprep.subr.mxu0 0.0
    %1371 = vmatpush1.msra.mxu0 %v1250
    %1372 = vmatprep.subr.mxu0 0.0
    %1373 = vmatpush1.msra.mxu0 %v1249
    %1374 = vmatprep.subr.mxu0 0.0
    %1375 = vmatpush1.msra.mxu0 %v1248
    %1376 = vmatprep.subr.mxu0 0.0
    %1377 = vmatpush1.msra.mxu0 %v1247
    %1378 = vmatprep.subr.mxu0 0.0
    %1379 = vmatpush1.msra.mxu0 %v1246
    %1380 = vmatprep.subr.mxu0 0.0
    %1381 = vmatpush1.msra.mxu0 %v1245
    %1382 = vmatprep.subr.mxu0 0.0
    %1383 = vmatpush1.msra.mxu0 %v1244
    %1384 = vmatprep.subr.mxu0 0.0
    %1385 = vmatpush1.msra.mxu0 %v1243
    %1386 = vmatprep.subr.mxu0 0.0
    %1387 = vmatpush1.msra.mxu0 %v1242
    %1388 = vmatprep.subr.mxu0 0.0
    %1389 = vmatpush2.msra.mxu0 %v1273
    %1390 = vmatprep.subr.mxu0 0.0
    %1391 = vmatpush2.msra.mxu0 %v1272
    %1392 = vmatprep.subr.mxu0 0.0
    %1393 = vmatpush2.msra.mxu0 %v1271
    %1394 = vmatprep.subr.mxu0 0.0
    %1395 = vmatpush2.msra.mxu0 %v1270
    %1396 = vmatprep.subr.mxu0 0.0
    %1397 = vmatpush2.msra.mxu0 %v1269
    %1398 = vmatprep.subr.mxu0 0.0
    %1399 = vmatpush2.msra.mxu0 %v1268
    %1400 = vmatprep.subr.mxu0 0.0
    %1401 = vmatpush2.msra.mxu0 %v1267
    %1402 = vmatprep.subr.mxu0 0.0
    %1403 = vmatpush2.msra.mxu0 %v1266
    %1404 = vmatprep.subr.mxu0 0.0
    %1405 = vmatpush2.msra.mxu0 %v1265
    %1406 = vmatprep.subr.mxu0 0.0
    %1407 = vmatpush2.msra.mxu0 %v1264
    %1408 = vmatprep.subr.mxu0 0.0
    %1409 = vmatpush2.msra.mxu0 %v1263
    %1410 = vmatprep.subr.mxu0 0.0
    %1411 = vmatpush2.msra.mxu0 %v1262
    %1412 = vmatprep.subr.mxu0 0.0
    %1413 = vmatpush2.msra.mxu0 %v1261
    %1414 = vmatprep.subr.mxu0 0.0
    %1415 = vmatpush2.msra.mxu0 %v1260
    %1416 = vmatprep.subr.mxu0 0.0
    %1417 = vmatpush2.msra.mxu0 %v1259
    %1418 = vmatprep.subr.mxu0 0.0
    %1419 = vmatpush2.msra.mxu0 %v1258
    %1420 = vmatprep.mubr.f32.mxu0 %v1205
    %1421 = vmatmul.mubr.f32.gmra.mxu0 %v1204
    %v1422 = vpop.f32.mrf.mxu0
    %v1423 = vadd.f32 %v1348, %v1422
    %v1424 = vpop.f32.mrf.mxu0
    %1425 = vmatprep.mubr.f32.mxu0 %v1209
    %1426 = vmatmul.mubr.f32.gmra.mxu0 %v1208
    %v1427 = vpop.f32.mrf.mxu0
    %v1428 = vadd.f32 %v1353, %v1427
    %v1429 = vpop.f32.mrf.mxu0
    %1430 = vdwg.mxu0
    %v1431 = vadd.f32 %v1002, %v1423
    %v1432 = vadd.f32 %v1003, %v1428
    %s1433 = scalar_lea.vmem %s9, 32
    %v1434 = vld [vmem:[%s1433] sm:$0xff]
    %v1435 = vld [vmem:[%s1433 + $0x8] sm:$0xff]
    %v1436 = vld [vmem:[%s1433 + $0x10] sm:$0xff]
    %v1437 = vld [vmem:[%s1433 + $0x18] sm:$0xff]
    %s1438 = scalar_lea.vmem %s10, 1
    %v1439 = vld [vmem:[%s1438] sm:$0x1]
    %v1441 = vlaneseq
    %v1442 = vshrl.u32 %v1441, 7
    %v1443 = vsub.s32 0, %v1442
    %v1444 = vrot.slane %v1439, %v1443
    %v1447 = vsel %vm155, %v1431, 0
    %v1450 = vsel %vm155, %v1432, 0
    %1452 = vmatprep.subr.mxu0 0.0
    %1453 = vmatpush1.msra.mxu0 0.0
    %1454 = vmatprep.subr.mxu0 0.0
    %1455 = vmatpush1.msra.mxu0 0.0
    %1456 = vmatprep.subr.mxu0 0.0
    %1457 = vmatpush1.msra.mxu0 0.0
    %1458 = vmatprep.subr.mxu0 0.0
    %1459 = vmatpush1.msra.mxu0 0.0
    %1460 = vmatprep.subr.mxu0 0.0
    %1461 = vmatpush1.msra.mxu0 0.0
    %1462 = vmatprep.subr.mxu0 0.0
    %1463 = vmatpush1.msra.mxu0 0.0
    %1464 = vmatprep.subr.mxu0 0.0
    %1465 = vmatpush1.msra.mxu0 0.0
    %1466 = vmatprep.subr.mxu0 0.0
    %1467 = vmatpush1.msra.mxu0 0.0
    %1468 = vmatprep.subr.mxu0 0.0
    %1469 = vmatpush1.msra.mxu0 0.0
    %1470 = vmatprep.subr.mxu0 0.0
    %1471 = vmatpush1.msra.mxu0 0.0
    %1472 = vmatprep.subr.mxu0 0.0
    %1473 = vmatpush1.msra.mxu0 0.0
    %1474 = vmatprep.subr.mxu0 0.0
    %1475 = vmatpush1.msra.mxu0 0.0
    %1476 = vmatprep.subr.mxu0 0.0
    %1477 = vmatpush1.msra.mxu0 %v1437
    %1478 = vmatprep.subr.mxu0 0.0
    %1479 = vmatpush1.msra.mxu0 %v1436
    %1480 = vmatprep.subr.mxu0 0.0
    %1481 = vmatpush1.msra.mxu0 %v1435
    %1482 = vmatprep.subr.mxu0 0.0
    %1483 = vmatpush1.msra.mxu0 %v1434
    %1484 = vmatprep.subr.mxu0 0.0
    %1485 = vmatpush2.msra.mxu0 0.0
    %1486 = vmatprep.subr.mxu0 0.0
    %1487 = vmatpush2.msra.mxu0 0.0
    %1488 = vmatprep.subr.mxu0 0.0
    %1489 = vmatpush2.msra.mxu0 0.0
    %1490 = vmatprep.subr.mxu0 0.0
    %1491 = vmatpush2.msra.mxu0 0.0
    %1492 = vmatprep.subr.mxu0 0.0
    %1493 = vmatpush2.msra.mxu0 0.0
    %1494 = vmatprep.subr.mxu0 0.0
    %1495 = vmatpush2.msra.mxu0 0.0
    %1496 = vmatprep.subr.mxu0 0.0
    %1497 = vmatpush2.msra.mxu0 0.0
    %1498 = vmatprep.subr.mxu0 0.0
    %1499 = vmatpush2.msra.mxu0 0.0
    %1500 = vmatprep.subr.mxu0 0.0
    %1501 = vmatpush2.msra.mxu0 0.0
    %1502 = vmatprep.subr.mxu0 0.0
    %1503 = vmatpush2.msra.mxu0 0.0
    %1504 = vmatprep.subr.mxu0 0.0
    %1505 = vmatpush2.msra.mxu0 0.0
    %1506 = vmatprep.subr.mxu0 0.0
    %1507 = vmatpush2.msra.mxu0 0.0
    %1508 = vmatprep.subr.mxu0 0.0
    %1509 = vmatpush2.msra.mxu0 0.0
    %1510 = vmatprep.subr.mxu0 0.0
    %1511 = vmatpush2.msra.mxu0 0.0
    %1512 = vmatprep.subr.mxu0 0.0
    %1513 = vmatpush2.msra.mxu0 0.0
    %1514 = vmatprep.subr.mxu0 0.0
    %1515 = vmatpush2.msra.mxu0 0.0
    %1516 = vmatprep.mubr.f32.mxu0 0.0
    %1517 = vmatmul.mubr.f32.gmra.mxu0 %v1447
    %v1518 = vpop.f32.mrf.mxu0
    %v1519 = vadd.f32 %v1444, %v1518
    %v1520 = vpop.f32.mrf.mxu0
    %1521 = vmatprep.mubr.f32.mxu0 0.0
    %1522 = vmatmul.mubr.f32.gmra.mxu0 %v1450
    %v1523 = vpop.f32.mrf.mxu0
    %v1524 = vadd.f32 %v1444, %v1523
    %v1525 = vpop.f32.mrf.mxu0
    %1526 = vdwg.mxu0
    %1529 = vrot.lane.b32.xlu0 %v1519, 96
    %v1530 = vpop.permute.xlu0 %1529
    %1531 = vrot.lane.b32.xlu0 %v1524, 96
    %v1532 = vpop.permute.xlu0 %1531
    %1535 = vxpose.xlu0.b32.start [1/16] %v1530, 128
    %1536 = vxpose.xlu0.b32.cont [2/16] %v1532, 128
    %1537 = vxpose.xlu0.b32.cont [3/16] 0.0, 128
    %1538 = vxpose.xlu0.b32.cont [4/16] 0.0, 128
    %1539 = vxpose.xlu0.b32.cont [5/16] 0.0, 128
    %1540 = vxpose.xlu0.b32.cont [6/16] 0.0, 128
    %1541 = vxpose.xlu0.b32.cont [7/16] 0.0, 128
    %1542 = vxpose.xlu0.b32.cont [8/16] 0.0, 128
    %1543 = vxpose.xlu0.b32.cont [9/16] 0.0, 128
    %1544 = vxpose.xlu0.b32.cont [10/16] 0.0, 128
    %1545 = vxpose.xlu0.b32.cont [11/16] 0.0, 128
    %1546 = vxpose.xlu0.b32.cont [12/16] 0.0, 128
    %1547 = vxpose.xlu0.b32.cont [13/16] 0.0, 128
    %1548 = vxpose.xlu0.b32.cont [14/16] 0.0, 128
    %1549 = vxpose.xlu0.b32.cont [15/16] 0.0, 128
    %1550 = vxpose.xlu0.b32.end [16/16] 0.0, 128
    %v1551 = vpop.trf.xlu0
    %v1552 = vpop.trf.xlu0
    %v1553 = vpop.trf.xlu0
    %v1554 = vpop.trf.xlu0
    %v1555 = vpop.trf.xlu0
    %v1556 = vpop.trf.xlu0
    %v1557 = vpop.trf.xlu0
    %v1558 = vpop.trf.xlu0
    %v1559 = vpop.trf.xlu0
    %v1560 = vpop.trf.xlu0
    %v1561 = vpop.trf.xlu0
    %v1562 = vpop.trf.xlu0
    %v1563 = vpop.trf.xlu0
    %v1564 = vpop.trf.xlu0
    %v1565 = vpop.trf.xlu0
    %v1566 = vpop.trf.xlu0
    %v1568 = vsel %vm346, %v1551, 0
    %v1571 = vsel %vm346, %v1552, 0
    %v1574 = vsel %vm346, %v1553, 0
    %v1577 = vsel %vm346, %v1554, 0
    %1579 = vmatprep.subr.mxu0 0.0
    %1580 = vmatpush1.msra.mxu0 0.0
    %1581 = vmatprep.subr.mxu0 0.0
    %1582 = vmatpush1.msra.mxu0 0.0
    %1583 = vmatprep.subr.mxu0 0.0
    %1584 = vmatpush1.msra.mxu0 0.0
    %1585 = vmatprep.subr.mxu0 0.0
    %1586 = vmatpush1.msra.mxu0 0.0
    %1587 = vmatprep.subr.mxu0 0.0
    %1588 = vmatpush1.msra.mxu0 0.0
    %1589 = vmatprep.subr.mxu0 0.0
    %1590 = vmatpush1.msra.mxu0 0.0
    %1591 = vmatprep.subr.mxu0 0.0
    %1592 = vmatpush1.msra.mxu0 0.0
    %1593 = vmatprep.subr.mxu0 0.0
    %1594 = vmatpush1.msra.mxu0 0.0
    %1595 = vmatprep.subr.mxu0 0.0
    %1596 = vmatpush1.msra.mxu0 0.0
    %1597 = vmatprep.subr.mxu0 0.0
    %1598 = vmatpush1.msra.mxu0 0.0
    %1599 = vmatprep.subr.mxu0 0.0
    %1600 = vmatpush1.msra.mxu0 0.0
    %1601 = vmatprep.subr.mxu0 0.0
    %1602 = vmatpush1.msra.mxu0 0.0
    %1603 = vmatprep.subr.mxu0 0.0
    %1604 = vmatpush1.msra.mxu0 0.0
    %1605 = vmatprep.subr.mxu0 0.0
    %1606 = vmatpush1.msra.mxu0 0.0
    %1607 = vmatprep.subr.mxu0 0.0
    %1608 = vmatpush1.msra.mxu0 %v177
    %1609 = vmatprep.subr.mxu0 0.0
    %1610 = vmatpush1.msra.mxu0 %v176
    %1611 = vmatprep.subr.mxu0 0.0
    %1612 = vmatpush2.msra.mxu0 0.0
    %1613 = vmatprep.subr.mxu0 0.0
    %1614 = vmatpush2.msra.mxu0 0.0
    %1615 = vmatprep.subr.mxu0 0.0
    %1616 = vmatpush2.msra.mxu0 0.0
    %1617 = vmatprep.subr.mxu0 0.0
    %1618 = vmatpush2.msra.mxu0 0.0
    %1619 = vmatprep.subr.mxu0 0.0
    %1620 = vmatpush2.msra.mxu0 0.0
    %1621 = vmatprep.subr.mxu0 0.0
    %1622 = vmatpush2.msra.mxu0 0.0
    %1623 = vmatprep.subr.mxu0 0.0
    %1624 = vmatpush2.msra.mxu0 0.0
    %1625 = vmatprep.subr.mxu0 0.0
    %1626 = vmatpush2.msra.mxu0 0.0
    %1627 = vmatprep.subr.mxu0 0.0
    %1628 = vmatpush2.msra.mxu0 0.0
    %1629 = vmatprep.subr.mxu0 0.0
    %1630 = vmatpush2.msra.mxu0 0.0
    %1631 = vmatprep.subr.mxu0 0.0
    %1632 = vmatpush2.msra.mxu0 0.0
    %1633 = vmatprep.subr.mxu0 0.0
    %1634 = vmatpush2.msra.mxu0 0.0
    %1635 = vmatprep.subr.mxu0 0.0
    %1636 = vmatpush2.msra.mxu0 0.0
    %1637 = vmatprep.subr.mxu0 0.0
    %1638 = vmatpush2.msra.mxu0 0.0
    %1639 = vmatprep.subr.mxu0 0.0
    %1640 = vmatpush2.msra.mxu0 0.0
    %1641 = vmatprep.subr.mxu0 0.0
    %1642 = vmatpush2.msra.mxu0 0.0
    %1643 = vmatprep.mubr.f32.mxu0 0.0
    %1644 = vmatmul.mubr.f32.gmra.mxu0 %v1568
    %v1645 = vpop.f32.mrf.mxu0
    %v1646 = vadd.f32 0.0, %v1645
    %v1647 = vpop.f32.mrf.mxu0
    %1648 = vmatprep.mubr.f32.mxu0 0.0
    %1649 = vmatmul.mubr.f32.gmra.mxu0 %v1571
    %v1650 = vpop.f32.mrf.mxu0
    %v1651 = vadd.f32 0.0, %v1650
    %v1652 = vpop.f32.mrf.mxu0
    %1653 = vmatprep.mubr.f32.mxu0 0.0
    %1654 = vmatmul.mubr.f32.gmra.mxu0 %v1574
    %v1655 = vpop.f32.mrf.mxu0
    %v1656 = vadd.f32 0.0, %v1655
    %v1657 = vpop.f32.mrf.mxu0
    %1658 = vmatprep.mubr.f32.mxu0 0.0
    %1659 = vmatmul.mubr.f32.gmra.mxu0 %v1577
    %v1660 = vpop.f32.mrf.mxu0
    %v1661 = vadd.f32 0.0, %v1660
    %v1662 = vpop.f32.mrf.mxu0
    %1663 = vdwg.mxu0
    %v1664 = vmul.f32 %v1646, %v194
    %v1665 = vmul.f32 %v1651, %v195
    %v1666 = vmul.f32 %v1656, %v196
    %v1667 = vmul.f32 %v1661, %v197
    %v1668 = vsel %vm155, %v1519, 0
    %v1670 = vsel %vm155, %v1524, 0
    %1672 = vmatprep.subr.mxu0 0.0
    %1673 = vmatpush1.msra.mxu0 0.0
    %1674 = vmatprep.subr.mxu0 0.0
    %1675 = vmatpush1.msra.mxu0 0.0
    %1676 = vmatprep.subr.mxu0 0.0
    %1677 = vmatpush1.msra.mxu0 0.0
    %1678 = vmatprep.subr.mxu0 0.0
    %1679 = vmatpush1.msra.mxu0 0.0
    %1680 = vmatprep.subr.mxu0 0.0
    %1681 = vmatpush1.msra.mxu0 0.0
    %1682 = vmatprep.subr.mxu0 0.0
    %1683 = vmatpush1.msra.mxu0 0.0
    %1684 = vmatprep.subr.mxu0 0.0
    %1685 = vmatpush1.msra.mxu0 0.0
    %1686 = vmatprep.subr.mxu0 0.0
    %1687 = vmatpush1.msra.mxu0 0.0
    %1688 = vmatprep.subr.mxu0 0.0
    %1689 = vmatpush1.msra.mxu0 0.0
    %1690 = vmatprep.subr.mxu0 0.0
    %1691 = vmatpush1.msra.mxu0 0.0
    %1692 = vmatprep.subr.mxu0 0.0
    %1693 = vmatpush1.msra.mxu0 0.0
    %1694 = vmatprep.subr.mxu0 0.0
    %1695 = vmatpush1.msra.mxu0 0.0
    %1696 = vmatprep.subr.mxu0 0.0
    %1697 = vmatpush1.msra.mxu0 %v1667
    %1698 = vmatprep.subr.mxu0 0.0
    %1699 = vmatpush1.msra.mxu0 %v1666
    %1700 = vmatprep.subr.mxu0 0.0
    %1701 = vmatpush1.msra.mxu0 %v1665
    %1702 = vmatprep.subr.mxu0 0.0
    %1703 = vmatpush1.msra.mxu0 %v1664
    %1704 = vmatprep.subr.mxu0 0.0
    %1705 = vmatpush2.msra.mxu0 0.0
    %1706 = vmatprep.subr.mxu0 0.0
    %1707 = vmatpush2.msra.mxu0 0.0
    %1708 = vmatprep.subr.mxu0 0.0
    %1709 = vmatpush2.msra.mxu0 0.0
    %1710 = vmatprep.subr.mxu0 0.0
    %1711 = vmatpush2.msra.mxu0 0.0
    %1712 = vmatprep.subr.mxu0 0.0
    %1713 = vmatpush2.msra.mxu0 0.0
    %1714 = vmatprep.subr.mxu0 0.0
    %1715 = vmatpush2.msra.mxu0 0.0
    %1716 = vmatprep.subr.mxu0 0.0
    %1717 = vmatpush2.msra.mxu0 0.0
    %1718 = vmatprep.subr.mxu0 0.0
    %1719 = vmatpush2.msra.mxu0 0.0
    %1720 = vmatprep.subr.mxu0 0.0
    %1721 = vmatpush2.msra.mxu0 0.0
    %1722 = vmatprep.subr.mxu0 0.0
    %1723 = vmatpush2.msra.mxu0 0.0
    %1724 = vmatprep.subr.mxu0 0.0
    %1725 = vmatpush2.msra.mxu0 0.0
    %1726 = vmatprep.subr.mxu0 0.0
    %1727 = vmatpush2.msra.mxu0 0.0
    %1728 = vmatprep.subr.mxu0 0.0
    %1729 = vmatpush2.msra.mxu0 0.0
    %1730 = vmatprep.subr.mxu0 0.0
    %1731 = vmatpush2.msra.mxu0 0.0
    %1732 = vmatprep.subr.mxu0 0.0
    %1733 = vmatpush2.msra.mxu0 0.0
    %1734 = vmatprep.subr.mxu0 0.0
    %1735 = vmatpush2.msra.mxu0 0.0
    %1736 = vmatprep.mubr.f32.mxu0 0.0
    %1737 = vmatmul.mubr.f32.gmra.mxu0 %v1668
    %v1738 = vpop.f32.mrf.mxu0
    %v1739 = vadd.f32 0.0, %v1738
    %v1740 = vpop.f32.mrf.mxu0
    %1741 = vmatprep.mubr.f32.mxu0 0.0
    %1742 = vmatmul.mubr.f32.gmra.mxu0 %v1670
    %v1743 = vpop.f32.mrf.mxu0
    %v1744 = vadd.f32 0.0, %v1743
    %v1745 = vpop.f32.mrf.mxu0
    %1746 = vdwg.mxu0
    %v1747 = vmul.f32 %v1739, 0.5
    %v1748 = vmul.f32 %v1744, 0.5
    %v1749 = vadd.f32 %v1747, %v158
    %v1750 = vadd.f32 %v1748, %v159
    %1751 = vmax.xlane.f32.xlu0 %v1749
    %v1752 = vpop.xlane.xlu0 %1751
    %1753 = vmax.xlane.f32.xlu0 %v1750
    %v1754 = vpop.xlane.xlu0 %1753
    %v1755 = vsub.f32 %v1749, %v1752
    %v1756 = vsub.f32 %v1750, %v1754
    %v1757 = vmul.f32 %v1755, 1.442695
    %v1758 = vpow.pop %v1757
    %v1759 = vmul.f32 %v1756, 1.442695
    %v1760 = vpow.pop %v1759
    %1761 = vmatprep.subr.mxu0 0.0
    %1762 = vmatpush1.msra.mxu0 %v175
    %1763 = vmatprep.subr.mxu0 0.0
    %1764 = vmatpush1.msra.mxu0 %v174
    %1765 = vmatprep.subr.mxu0 0.0
    %1766 = vmatpush1.msra.mxu0 %v173
    %1767 = vmatprep.subr.mxu0 0.0
    %1768 = vmatpush1.msra.mxu0 %v172
    %1769 = vmatprep.subr.mxu0 0.0
    %1770 = vmatpush1.msra.mxu0 %v171
    %1771 = vmatprep.subr.mxu0 0.0
    %1772 = vmatpush1.msra.mxu0 %v170
    %1773 = vmatprep.subr.mxu0 0.0
    %1774 = vmatpush1.msra.mxu0 %v169
    %1775 = vmatprep.subr.mxu0 0.0
    %1776 = vmatpush1.msra.mxu0 %v168
    %1777 = vmatprep.subr.mxu0 0.0
    %1778 = vmatpush1.msra.mxu0 %v167
    %1779 = vmatprep.subr.mxu0 0.0
    %1780 = vmatpush1.msra.mxu0 %v166
    %1781 = vmatprep.subr.mxu0 0.0
    %1782 = vmatpush1.msra.mxu0 %v165
    %1783 = vmatprep.subr.mxu0 0.0
    %1784 = vmatpush1.msra.mxu0 %v164
    %1785 = vmatprep.subr.mxu0 0.0
    %1786 = vmatpush1.msra.mxu0 %v163
    %1787 = vmatprep.subr.mxu0 0.0
    %1788 = vmatpush1.msra.mxu0 %v162
    %1789 = vmatprep.subr.mxu0 0.0
    %1790 = vmatpush1.msra.mxu0 %v161
    %1791 = vmatprep.subr.mxu0 0.0
    %1792 = vmatpush1.msra.mxu0 %v160
    %1793 = vmatprep.subr.mxu0 0.0
    %1794 = vmatpush2.msra.mxu0 0.0
    %1795 = vmatprep.subr.mxu0 0.0
    %1796 = vmatpush2.msra.mxu0 0.0
    %1797 = vmatprep.subr.mxu0 0.0
    %1798 = vmatpush2.msra.mxu0 0.0
    %1799 = vmatprep.subr.mxu0 0.0
    %1800 = vmatpush2.msra.mxu0 0.0
    %1801 = vmatprep.subr.mxu0 0.0
    %1802 = vmatpush2.msra.mxu0 0.0
    %1803 = vmatprep.subr.mxu0 0.0
    %1804 = vmatpush2.msra.mxu0 0.0
    %1805 = vmatprep.subr.mxu0 0.0
    %1806 = vmatpush2.msra.mxu0 0.0
    %1807 = vmatprep.subr.mxu0 0.0
    %1808 = vmatpush2.msra.mxu0 0.0
    %1809 = vmatprep.subr.mxu0 0.0
    %1810 = vmatpush2.msra.mxu0 0.0
    %1811 = vmatprep.subr.mxu0 0.0
    %1812 = vmatpush2.msra.mxu0 0.0
    %1813 = vmatprep.subr.mxu0 0.0
    %1814 = vmatpush2.msra.mxu0 0.0
    %1815 = vmatprep.subr.mxu0 0.0
    %1816 = vmatpush2.msra.mxu0 0.0
    %1817 = vmatprep.subr.mxu0 0.0
    %1818 = vmatpush2.msra.mxu0 0.0
    %1819 = vmatprep.subr.mxu0 0.0
    %1820 = vmatpush2.msra.mxu0 0.0
    %1821 = vmatprep.subr.mxu0 0.0
    %1822 = vmatpush2.msra.mxu0 0.0
    %1823 = vmatprep.subr.mxu0 0.0
    %1824 = vmatpush2.msra.mxu0 0.0
    %1825 = vmatprep.mubr.f32.mxu0 0.0
    %1826 = vmatmul.mubr.f32.gmra.mxu0 %v1758
    %v1827 = vpop.f32.mrf.mxu0
    %v1828 = vadd.f32 0.0, %v1827
    %v1829 = vpop.f32.mrf.mxu0
    %1830 = vmatprep.mubr.f32.mxu0 0.0
    %1831 = vmatmul.mubr.f32.gmra.mxu0 %v1760
    %v1832 = vpop.f32.mrf.mxu0
    %v1833 = vadd.f32 0.0, %v1832
    %v1834 = vpop.f32.mrf.mxu0
    %1835 = vdwg.mxu0
    %v1836 = vrcp.pop %v1828
    %v1837 = vrcp.pop %v1833
    %v1838 = vmul.f32 %v1758, %v1836
    %v1839 = vmul.f32 %v1760, %v1837
    %1840 = vrot.lane.b32.xlu0 %v1519, 64
    %v1841 = vpop.permute.xlu0 %1840
    %1842 = vrot.lane.b32.xlu0 %v1524, 64
    %v1843 = vpop.permute.xlu0 %1842
    %1846 = vmatprep.subr.mxu0 0.0
    %1847 = vmatpush1.msra.mxu0 0.0
    %1848 = vmatprep.subr.mxu0 0.0
    %1849 = vmatpush1.msra.mxu0 0.0
    %1850 = vmatprep.subr.mxu0 0.0
    %1851 = vmatpush1.msra.mxu0 0.0
    %1852 = vmatprep.subr.mxu0 0.0
    %1853 = vmatpush1.msra.mxu0 0.0
    %1854 = vmatprep.subr.mxu0 0.0
    %1855 = vmatpush1.msra.mxu0 0.0
    %1856 = vmatprep.subr.mxu0 0.0
    %1857 = vmatpush1.msra.mxu0 0.0
    %1858 = vmatprep.subr.mxu0 0.0
    %1859 = vmatpush1.msra.mxu0 0.0
    %1860 = vmatprep.subr.mxu0 0.0
    %1861 = vmatpush1.msra.mxu0 0.0
    %1862 = vmatprep.subr.mxu0 0.0
    %1863 = vmatpush1.msra.mxu0 0.0
    %1864 = vmatprep.subr.mxu0 0.0
    %1865 = vmatpush1.msra.mxu0 0.0
    %1866 = vmatprep.subr.mxu0 0.0
    %1867 = vmatpush1.msra.mxu0 0.0
    %1868 = vmatprep.subr.mxu0 0.0
    %1869 = vmatpush1.msra.mxu0 0.0
    %1870 = vmatprep.subr.mxu0 0.0
    %1871 = vmatpush1.msra.mxu0 0.0
    %1872 = vmatprep.subr.mxu0 0.0
    %1873 = vmatpush1.msra.mxu0 0.0
    %1874 = vmatprep.subr.mxu0 0.0
    %1875 = vmatpush1.msra.mxu0 %v1843
    %1876 = vmatprep.subr.mxu0 0.0
    %1877 = vmatpush1.msra.mxu0 %v1841
    %1878 = vmatprep.subr.mxu0 0.0
    %1879 = vmatpush2.msra.mxu0 0.0
    %1880 = vmatprep.subr.mxu0 0.0
    %1881 = vmatpush2.msra.mxu0 0.0
    %1882 = vmatprep.subr.mxu0 0.0
    %1883 = vmatpush2.msra.mxu0 0.0
    %1884 = vmatprep.subr.mxu0 0.0
    %1885 = vmatpush2.msra.mxu0 0.0
    %1886 = vmatprep.subr.mxu0 0.0
    %1887 = vmatpush2.msra.mxu0 0.0
    %1888 = vmatprep.subr.mxu0 0.0
    %1889 = vmatpush2.msra.mxu0 0.0
    %1890 = vmatprep.subr.mxu0 0.0
    %1891 = vmatpush2.msra.mxu0 0.0
    %1892 = vmatprep.subr.mxu0 0.0
    %1893 = vmatpush2.msra.mxu0 0.0
    %1894 = vmatprep.subr.mxu0 0.0
    %1895 = vmatpush2.msra.mxu0 0.0
    %1896 = vmatprep.subr.mxu0 0.0
    %1897 = vmatpush2.msra.mxu0 0.0
    %1898 = vmatprep.subr.mxu0 0.0
    %1899 = vmatpush2.msra.mxu0 0.0
    %1900 = vmatprep.subr.mxu0 0.0
    %1901 = vmatpush2.msra.mxu0 0.0
    %1902 = vmatprep.subr.mxu0 0.0
    %1903 = vmatpush2.msra.mxu0 0.0
    %1904 = vmatprep.subr.mxu0 0.0
    %1905 = vmatpush2.msra.mxu0 0.0
    %1906 = vmatprep.subr.mxu0 0.0
    %1907 = vmatpush2.msra.mxu0 0.0
    %1908 = vmatprep.subr.mxu0 0.0
    %1909 = vmatpush2.msra.mxu0 0.0
    %1910 = vmatprep.mubr.f32.mxu0 0.0
    %1911 = vmatmul.mubr.f32.gmra.mxu0 %v627
    %v1912 = vpop.f32.mrf.mxu0
    %v1913 = vadd.f32 0.0, %v1912
    %v1914 = vpop.f32.mrf.mxu0
    %1915 = vmatprep.mubr.f32.mxu0 0.0
    %1916 = vmatmul.mubr.f32.gmra.mxu0 %v630
    %v1917 = vpop.f32.mrf.mxu0
    %v1918 = vadd.f32 0.0, %v1917
    %v1919 = vpop.f32.mrf.mxu0
    %1920 = vmatprep.mubr.f32.mxu0 0.0
    %1921 = vmatmul.mubr.f32.gmra.mxu0 %v633
    %v1922 = vpop.f32.mrf.mxu0
    %v1923 = vadd.f32 0.0, %v1922
    %v1924 = vpop.f32.mrf.mxu0
    %1925 = vmatprep.mubr.f32.mxu0 0.0
    %1926 = vmatmul.mubr.f32.gmra.mxu0 %v636
    %v1927 = vpop.f32.mrf.mxu0
    %v1928 = vadd.f32 0.0, %v1927
    %v1929 = vpop.f32.mrf.mxu0
    %1930 = vmatprep.mubr.f32.mxu0 0.0
    %1931 = vmatmul.mubr.f32.gmra.mxu0 %v639
    %v1932 = vpop.f32.mrf.mxu0
    %v1933 = vadd.f32 0.0, %v1932
    %v1934 = vpop.f32.mrf.mxu0
    %1935 = vmatprep.mubr.f32.mxu0 0.0
    %1936 = vmatmul.mubr.f32.gmra.mxu0 %v642
    %v1937 = vpop.f32.mrf.mxu0
    %v1938 = vadd.f32 0.0, %v1937
    %v1939 = vpop.f32.mrf.mxu0
    %1940 = vmatprep.mubr.f32.mxu0 0.0
    %1941 = vmatmul.mubr.f32.gmra.mxu0 %v645
    %v1942 = vpop.f32.mrf.mxu0
    %v1943 = vadd.f32 0.0, %v1942
    %v1944 = vpop.f32.mrf.mxu0
    %1945 = vmatprep.mubr.f32.mxu0 0.0
    %1946 = vmatmul.mubr.f32.gmra.mxu0 %v648
    %v1947 = vpop.f32.mrf.mxu0
    %v1948 = vadd.f32 0.0, %v1947
    %v1949 = vpop.f32.mrf.mxu0
    %1950 = vmatprep.mubr.f32.mxu0 0.0
    %1951 = vmatmul.mubr.f32.gmra.mxu0 %v651
    %v1952 = vpop.f32.mrf.mxu0
    %v1953 = vadd.f32 0.0, %v1952
    %v1954 = vpop.f32.mrf.mxu0
    %1955 = vmatprep.mubr.f32.mxu0 0.0
    %1956 = vmatmul.mubr.f32.gmra.mxu0 %v654
    %v1957 = vpop.f32.mrf.mxu0
    %v1958 = vadd.f32 0.0, %v1957
    %v1959 = vpop.f32.mrf.mxu0
    %1960 = vmatprep.mubr.f32.mxu0 0.0
    %1961 = vmatmul.mubr.f32.gmra.mxu0 %v657
    %v1962 = vpop.f32.mrf.mxu0
    %v1963 = vadd.f32 0.0, %v1962
    %v1964 = vpop.f32.mrf.mxu0
    %1965 = vmatprep.mubr.f32.mxu0 0.0
    %1966 = vmatmul.mubr.f32.gmra.mxu0 %v660
    %v1967 = vpop.f32.mrf.mxu0
    %v1968 = vadd.f32 0.0, %v1967
    %v1969 = vpop.f32.mrf.mxu0
    %1970 = vmatprep.mubr.f32.mxu0 0.0
    %1971 = vmatmul.mubr.f32.gmra.mxu0 %v663
    %v1972 = vpop.f32.mrf.mxu0
    %v1973 = vadd.f32 0.0, %v1972
    %v1974 = vpop.f32.mrf.mxu0
    %1975 = vmatprep.mubr.f32.mxu0 0.0
    %1976 = vmatmul.mubr.f32.gmra.mxu0 %v666
    %v1977 = vpop.f32.mrf.mxu0
    %v1978 = vadd.f32 0.0, %v1977
    %v1979 = vpop.f32.mrf.mxu0
    %1980 = vmatprep.mubr.f32.mxu0 0.0
    %1981 = vmatmul.mubr.f32.gmra.mxu0 %v669
    %v1982 = vpop.f32.mrf.mxu0
    %v1983 = vadd.f32 0.0, %v1982
    %v1984 = vpop.f32.mrf.mxu0
    %1985 = vmatprep.mubr.f32.mxu0 0.0
    %1986 = vmatmul.mubr.f32.gmra.mxu0 %v672
    %v1987 = vpop.f32.mrf.mxu0
    %v1988 = vadd.f32 0.0, %v1987
    %v1989 = vpop.f32.mrf.mxu0
    %1990 = vdwg.mxu0
    %v1991 = vmul.f32 %v1913, %v198
    %v1992 = vmul.f32 %v1918, %v199
    %v1993 = vmul.f32 %v1923, %v200
    %v1994 = vmul.f32 %v1928, %v201
    %v1995 = vmul.f32 %v1933, %v202
    %v1996 = vmul.f32 %v1938, %v203
    %v1997 = vmul.f32 %v1943, %v204
    %v1998 = vmul.f32 %v1948, %v205
    %v1999 = vmul.f32 %v1953, %v206
    %v2000 = vmul.f32 %v1958, %v207
    %v2001 = vmul.f32 %v1963, %v208
    %v2002 = vmul.f32 %v1968, %v209
    %v2003 = vmul.f32 %v1973, %v210
    %v2004 = vmul.f32 %v1978, %v211
    %v2005 = vmul.f32 %v1983, %v212
    %v2006 = vmul.f32 %v1988, %v213
    %2007 = vmatprep.subr.mxu0 0.0
    %2008 = vmatpush1.msra.mxu0 %v2006
    %2009 = vmatprep.subr.mxu0 0.0
    %2010 = vmatpush1.msra.mxu0 %v2005
    %2011 = vmatprep.subr.mxu0 0.0
    %2012 = vmatpush1.msra.mxu0 %v2004
    %2013 = vmatprep.subr.mxu0 0.0
    %2014 = vmatpush1.msra.mxu0 %v2003
    %2015 = vmatprep.subr.mxu0 0.0
    %2016 = vmatpush1.msra.mxu0 %v2002
    %2017 = vmatprep.subr.mxu0 0.0
    %2018 = vmatpush1.msra.mxu0 %v2001
    %2019 = vmatprep.subr.mxu0 0.0
    %2020 = vmatpush1.msra.mxu0 %v2000
    %2021 = vmatprep.subr.mxu0 0.0
    %2022 = vmatpush1.msra.mxu0 %v1999
    %2023 = vmatprep.subr.mxu0 0.0
    %2024 = vmatpush1.msra.mxu0 %v1998
    %2025 = vmatprep.subr.mxu0 0.0
    %2026 = vmatpush1.msra.mxu0 %v1997
    %2027 = vmatprep.subr.mxu0 0.0
    %2028 = vmatpush1.msra.mxu0 %v1996
    %2029 = vmatprep.subr.mxu0 0.0
    %2030 = vmatpush1.msra.mxu0 %v1995
    %2031 = vmatprep.subr.mxu0 0.0
    %2032 = vmatpush1.msra.mxu0 %v1994
    %2033 = vmatprep.subr.mxu0 0.0
    %2034 = vmatpush1.msra.mxu0 %v1993
    %2035 = vmatprep.subr.mxu0 0.0
    %2036 = vmatpush1.msra.mxu0 %v1992
    %2037 = vmatprep.subr.mxu0 0.0
    %2038 = vmatpush1.msra.mxu0 %v1991
    %2039 = vmatprep.subr.mxu0 0.0
    %2040 = vmatpush2.msra.mxu0 0.0
    %2041 = vmatprep.subr.mxu0 0.0
    %2042 = vmatpush2.msra.mxu0 0.0
    %2043 = vmatprep.subr.mxu0 0.0
    %2044 = vmatpush2.msra.mxu0 0.0
    %2045 = vmatprep.subr.mxu0 0.0
    %2046 = vmatpush2.msra.mxu0 0.0
    %2047 = vmatprep.subr.mxu0 0.0
    %2048 = vmatpush2.msra.mxu0 0.0
    %2049 = vmatprep.subr.mxu0 0.0
    %2050 = vmatpush2.msra.mxu0 0.0
    %2051 = vmatprep.subr.mxu0 0.0
    %2052 = vmatpush2.msra.mxu0 0.0
    %2053 = vmatprep.subr.mxu0 0.0
    %2054 = vmatpush2.msra.mxu0 0.0
    %2055 = vmatprep.subr.mxu0 0.0
    %2056 = vmatpush2.msra.mxu0 0.0
    %2057 = vmatprep.subr.mxu0 0.0
    %2058 = vmatpush2.msra.mxu0 0.0
    %2059 = vmatprep.subr.mxu0 0.0
    %2060 = vmatpush2.msra.mxu0 0.0
    %2061 = vmatprep.subr.mxu0 0.0
    %2062 = vmatpush2.msra.mxu0 0.0
    %2063 = vmatprep.subr.mxu0 0.0
    %2064 = vmatpush2.msra.mxu0 0.0
    %2065 = vmatprep.subr.mxu0 0.0
    %2066 = vmatpush2.msra.mxu0 0.0
    %2067 = vmatprep.subr.mxu0 0.0
    %2068 = vmatpush2.msra.mxu0 0.0
    %2069 = vmatprep.subr.mxu0 0.0
    %2070 = vmatpush2.msra.mxu0 0.0
    %2071 = vmatprep.mubr.f32.mxu0 0.0
    %2072 = vmatmul.mubr.f32.gmra.mxu0 %v1838
    %v2073 = vpop.f32.mrf.mxu0
    %v2074 = vadd.f32 0.0, %v2073
    %v2075 = vpop.f32.mrf.mxu0
    %2076 = vmatprep.mubr.f32.mxu0 0.0
    %2077 = vmatmul.mubr.f32.gmra.mxu0 %v1839
    %v2078 = vpop.f32.mrf.mxu0
    %v2079 = vadd.f32 0.0, %v2078
    %v2080 = vpop.f32.mrf.mxu0
    %2081 = vdwg.mxu0
    %s2082 = scalar_lea.vmem %s11, 32
    %v2083 = vld [vmem:[%s2082] sm:$0xff]
    %v2084 = vld [vmem:[%s2082 + $0x8] sm:$0xff]
    %v2085 = vld [vmem:[%s2082 + $0x10] sm:$0xff]
    %v2086 = vld [vmem:[%s2082 + $0x18] sm:$0xff]
    %s2087 = scalar_lea.vmem %s12, 1
    %v2088 = vld [vmem:[%s2087] sm:$0x1]
    %v2090 = vlaneseq
    %v2091 = vshrl.u32 %v2090, 7
    %v2092 = vsub.s32 0, %v2091
    %v2093 = vrot.slane %v2088, %v2092
    %v2096 = vsel %vm155, %v2074, 0
    %v2099 = vsel %vm155, %v2079, 0
    %2101 = vmatprep.subr.mxu0 0.0
    %2102 = vmatpush1.msra.mxu0 0.0
    %2103 = vmatprep.subr.mxu0 0.0
    %2104 = vmatpush1.msra.mxu0 0.0
    %2105 = vmatprep.subr.mxu0 0.0
    %2106 = vmatpush1.msra.mxu0 0.0
    %2107 = vmatprep.subr.mxu0 0.0
    %2108 = vmatpush1.msra.mxu0 0.0
    %2109 = vmatprep.subr.mxu0 0.0
    %2110 = vmatpush1.msra.mxu0 0.0
    %2111 = vmatprep.subr.mxu0 0.0
    %2112 = vmatpush1.msra.mxu0 0.0
    %2113 = vmatprep.subr.mxu0 0.0
    %2114 = vmatpush1.msra.mxu0 0.0
    %2115 = vmatprep.subr.mxu0 0.0
    %2116 = vmatpush1.msra.mxu0 0.0
    %2117 = vmatprep.subr.mxu0 0.0
    %2118 = vmatpush1.msra.mxu0 0.0
    %2119 = vmatprep.subr.mxu0 0.0
    %2120 = vmatpush1.msra.mxu0 0.0
    %2121 = vmatprep.subr.mxu0 0.0
    %2122 = vmatpush1.msra.mxu0 0.0
    %2123 = vmatprep.subr.mxu0 0.0
    %2124 = vmatpush1.msra.mxu0 0.0
    %2125 = vmatprep.subr.mxu0 0.0
    %2126 = vmatpush1.msra.mxu0 %v2086
    %2127 = vmatprep.subr.mxu0 0.0
    %2128 = vmatpush1.msra.mxu0 %v2085
    %2129 = vmatprep.subr.mxu0 0.0
    %2130 = vmatpush1.msra.mxu0 %v2084
    %2131 = vmatprep.subr.mxu0 0.0
    %2132 = vmatpush1.msra.mxu0 %v2083
    %2133 = vmatprep.subr.mxu0 0.0
    %2134 = vmatpush2.msra.mxu0 0.0
    %2135 = vmatprep.subr.mxu0 0.0
    %2136 = vmatpush2.msra.mxu0 0.0
    %2137 = vmatprep.subr.mxu0 0.0
    %2138 = vmatpush2.msra.mxu0 0.0
    %2139 = vmatprep.subr.mxu0 0.0
    %2140 = vmatpush2.msra.mxu0 0.0
    %2141 = vmatprep.subr.mxu0 0.0
    %2142 = vmatpush2.msra.mxu0 0.0
    %2143 = vmatprep.subr.mxu0 0.0
    %2144 = vmatpush2.msra.mxu0 0.0
    %2145 = vmatprep.subr.mxu0 0.0
    %2146 = vmatpush2.msra.mxu0 0.0
    %2147 = vmatprep.subr.mxu0 0.0
    %2148 = vmatpush2.msra.mxu0 0.0
    %2149 = vmatprep.subr.mxu0 0.0
    %2150 = vmatpush2.msra.mxu0 0.0
    %2151 = vmatprep.subr.mxu0 0.0
    %2152 = vmatpush2.msra.mxu0 0.0
    %2153 = vmatprep.subr.mxu0 0.0
    %2154 = vmatpush2.msra.mxu0 0.0
    %2155 = vmatprep.subr.mxu0 0.0
    %2156 = vmatpush2.msra.mxu0 0.0
    %2157 = vmatprep.subr.mxu0 0.0
    %2158 = vmatpush2.msra.mxu0 0.0
    %2159 = vmatprep.subr.mxu0 0.0
    %2160 = vmatpush2.msra.mxu0 0.0
    %2161 = vmatprep.subr.mxu0 0.0
    %2162 = vmatpush2.msra.mxu0 0.0
    %2163 = vmatprep.subr.mxu0 0.0
    %2164 = vmatpush2.msra.mxu0 0.0
    %2165 = vmatprep.mubr.f32.mxu0 0.0
    %2166 = vmatmul.mubr.f32.gmra.mxu0 %v2096
    %v2167 = vpop.f32.mrf.mxu0
    %v2168 = vadd.f32 %v2093, %v2167
    %v2169 = vpop.f32.mrf.mxu0
    %2170 = vmatprep.mubr.f32.mxu0 0.0
    %2171 = vmatmul.mubr.f32.gmra.mxu0 %v2099
    %v2172 = vpop.f32.mrf.mxu0
    %v2173 = vadd.f32 %v2093, %v2172
    %v2174 = vpop.f32.mrf.mxu0
    %2175 = vdwg.mxu0
    %v2176 = vadd.f32 %v1431, %v2168
    %v2177 = vadd.f32 %v1432, %v2173
    %s2178 = scalar_lea.vmem %s13, 128
    %v2179 = vld [vmem:[%s2178] sm:$0xff]
    %v2180 = vld [vmem:[%s2178 + $0x8] sm:$0xff]
    %v2181 = vld [vmem:[%s2178 + $0x10] sm:$0xff]
    %v2182 = vld [vmem:[%s2178 + $0x18] sm:$0xff]
    %v2183 = vld [vmem:[%s2178 + $0x20] sm:$0xff]
    %v2184 = vld [vmem:[%s2178 + $0x28] sm:$0xff]
    %v2185 = vld [vmem:[%s2178 + $0x30] sm:$0xff]
    %v2186 = vld [vmem:[%s2178 + $0x38] sm:$0xff]
    %v2187 = vld [vmem:[%s2178 + $0x40] sm:$0xff]
    %v2188 = vld [vmem:[%s2178 + $0x48] sm:$0xff]
    %v2189 = vld [vmem:[%s2178 + $0x50] sm:$0xff]
    %v2190 = vld [vmem:[%s2178 + $0x58] sm:$0xff]
    %v2191 = vld [vmem:[%s2178 + $0x60] sm:$0xff]
    %v2192 = vld [vmem:[%s2178 + $0x68] sm:$0xff]
    %v2193 = vld [vmem:[%s2178 + $0x70] sm:$0xff]
    %v2194 = vld [vmem:[%s2178 + $0x78] sm:$0xff]
    %s2195 = scalar_lea.vmem %s14, 4
    %v2196 = vld [vmem:[%s2195] sm:$0xf]
    %v2198 = vlaneseq
    %v2199 = vshrl.u32 %v2198, 7
    %v2200 = vsub.s32 0, %v2199
    %v2201 = vrot.slane %v2196, %v2200
    %v2202 = vlaneseq
    %v2203 = vshrl.u32 %v2202, 7
    %v2204 = vsub.s32 1, %v2203
    %v2205 = vrot.slane %v2196, %v2204
    %v2206 = vlaneseq
    %v2207 = vshrl.u32 %v2206, 7
    %v2208 = vsub.s32 2, %v2207
    %v2209 = vrot.slane %v2196, %v2208
    %v2210 = vlaneseq
    %v2211 = vshrl.u32 %v2210, 7
    %v2212 = vsub.s32 3, %v2211
    %v2213 = vrot.slane %v2196, %v2212
    %v2219 = vsel %vm155, %v2176, 0
    %v2222 = vsel %vm155, %v2177, 0
    %2224 = vmatprep.subr.mxu0 0.0
    %2225 = vmatpush1.msra.mxu0 0.0
    %2226 = vmatprep.subr.mxu0 0.0
    %2227 = vmatpush1.msra.mxu0 0.0
    %2228 = vmatprep.subr.mxu0 0.0
    %2229 = vmatpush1.msra.mxu0 0.0
    %2230 = vmatprep.subr.mxu0 0.0
    %2231 = vmatpush1.msra.mxu0 0.0
    %2232 = vmatprep.subr.mxu0 0.0
    %2233 = vmatpush1.msra.mxu0 0.0
    %2234 = vmatprep.subr.mxu0 0.0
    %2235 = vmatpush1.msra.mxu0 0.0
    %2236 = vmatprep.subr.mxu0 0.0
    %2237 = vmatpush1.msra.mxu0 0.0
    %2238 = vmatprep.subr.mxu0 0.0
    %2239 = vmatpush1.msra.mxu0 0.0
    %2240 = vmatprep.subr.mxu0 0.0
    %2241 = vmatpush1.msra.mxu0 0.0
    %2242 = vmatprep.subr.mxu0 0.0
    %2243 = vmatpush1.msra.mxu0 0.0
    %2244 = vmatprep.subr.mxu0 0.0
    %2245 = vmatpush1.msra.mxu0 0.0
    %2246 = vmatprep.subr.mxu0 0.0
    %2247 = vmatpush1.msra.mxu0 0.0
    %2248 = vmatprep.subr.mxu0 %v2192
    %2249 = vmatpush1.msra.mxu0 %v2191
    %2250 = vmatprep.subr.mxu0 %v2188
    %2251 = vmatpush1.msra.mxu0 %v2187
    %2252 = vmatprep.subr.mxu0 %v2184
    %2253 = vmatpush1.msra.mxu0 %v2183
    %2254 = vmatprep.subr.mxu0 %v2180
    %2255 = vmatpush1.msra.mxu0 %v2179
    %2256 = vmatprep.subr.mxu0 0.0
    %2257 = vmatpush2.msra.mxu0 0.0
    %2258 = vmatprep.subr.mxu0 0.0
    %2259 = vmatpush2.msra.mxu0 0.0
    %2260 = vmatprep.subr.mxu0 0.0
    %2261 = vmatpush2.msra.mxu0 0.0
    %2262 = vmatprep.subr.mxu0 0.0
    %2263 = vmatpush2.msra.mxu0 0.0
    %2264 = vmatprep.subr.mxu0 0.0
    %2265 = vmatpush2.msra.mxu0 0.0
    %2266 = vmatprep.subr.mxu0 0.0
    %2267 = vmatpush2.msra.mxu0 0.0
    %2268 = vmatprep.subr.mxu0 0.0
    %2269 = vmatpush2.msra.mxu0 0.0
    %2270 = vmatprep.subr.mxu0 0.0
    %2271 = vmatpush2.msra.mxu0 0.0
    %2272 = vmatprep.subr.mxu0 0.0
    %2273 = vmatpush2.msra.mxu0 0.0
    %2274 = vmatprep.subr.mxu0 0.0
    %2275 = vmatpush2.msra.mxu0 0.0
    %2276 = vmatprep.subr.mxu0 0.0
    %2277 = vmatpush2.msra.mxu0 0.0
    %2278 = vmatprep.subr.mxu0 0.0
    %2279 = vmatpush2.msra.mxu0 0.0
    %2280 = vmatprep.subr.mxu0 0.0
    %2281 = vmatpush2.msra.mxu0 0.0
    %2282 = vmatprep.subr.mxu0 0.0
    %2283 = vmatpush2.msra.mxu0 0.0
    %2284 = vmatprep.subr.mxu0 0.0
    %2285 = vmatpush2.msra.mxu0 0.0
    %2286 = vmatprep.subr.mxu0 0.0
    %2287 = vmatpush2.msra.mxu0 0.0
    %2288 = vmatprep.mubr.f32.mxu0 0.0
    %2289 = vmatmul.mubr.f32.gmra.mxu0 %v2219
    %v2290 = vpop.f32.mrf.mxu0
    %v2291 = vadd.f32 %v2201, %v2290
    %v2292 = vpop.f32.mrf.mxu0
    %v2293 = vadd.f32 %v2205, %v2292
    %2294 = vmatprep.mubr.f32.mxu0 0.0
    %2295 = vmatmul.mubr.f32.gmra.mxu0 %v2222
    %v2296 = vpop.f32.mrf.mxu0
    %v2297 = vadd.f32 %v2201, %v2296
    %v2298 = vpop.f32.mrf.mxu0
    %v2299 = vadd.f32 %v2205, %v2298
    %2300 = vdwg.mxu0
    %2301 = vmatprep.subr.mxu0 0.0
    %2302 = vmatpush1.msra.mxu0 0.0
    %2303 = vmatprep.subr.mxu0 0.0
    %2304 = vmatpush1.msra.mxu0 0.0
    %2305 = vmatprep.subr.mxu0 0.0
    %2306 = vmatpush1.msra.mxu0 0.0
    %2307 = vmatprep.subr.mxu0 0.0
    %2308 = vmatpush1.msra.mxu0 0.0
    %2309 = vmatprep.subr.mxu0 0.0
    %2310 = vmatpush1.msra.mxu0 0.0
    %2311 = vmatprep.subr.mxu0 0.0
    %2312 = vmatpush1.msra.mxu0 0.0
    %2313 = vmatprep.subr.mxu0 0.0
    %2314 = vmatpush1.msra.mxu0 0.0
    %2315 = vmatprep.subr.mxu0 0.0
    %2316 = vmatpush1.msra.mxu0 0.0
    %2317 = vmatprep.subr.mxu0 0.0
    %2318 = vmatpush1.msra.mxu0 0.0
    %2319 = vmatprep.subr.mxu0 0.0
    %2320 = vmatpush1.msra.mxu0 0.0
    %2321 = vmatprep.subr.mxu0 0.0
    %2322 = vmatpush1.msra.mxu0 0.0
    %2323 = vmatprep.subr.mxu0 0.0
    %2324 = vmatpush1.msra.mxu0 0.0
    %2325 = vmatprep.subr.mxu0 %v2194
    %2326 = vmatpush1.msra.mxu0 %v2193
    %2327 = vmatprep.subr.mxu0 %v2190
    %2328 = vmatpush1.msra.mxu0 %v2189
    %2329 = vmatprep.subr.mxu0 %v2186
    %2330 = vmatpush1.msra.mxu0 %v2185
    %2331 = vmatprep.subr.mxu0 %v2182
    %2332 = vmatpush1.msra.mxu0 %v2181
    %2333 = vmatprep.subr.mxu0 0.0
    %2334 = vmatpush2.msra.mxu0 0.0
    %2335 = vmatprep.subr.mxu0 0.0
    %2336 = vmatpush2.msra.mxu0 0.0
    %2337 = vmatprep.subr.mxu0 0.0
    %2338 = vmatpush2.msra.mxu0 0.0
    %2339 = vmatprep.subr.mxu0 0.0
    %2340 = vmatpush2.msra.mxu0 0.0
    %2341 = vmatprep.subr.mxu0 0.0
    %2342 = vmatpush2.msra.mxu0 0.0
    %2343 = vmatprep.subr.mxu0 0.0
    %2344 = vmatpush2.msra.mxu0 0.0
    %2345 = vmatprep.subr.mxu0 0.0
    %2346 = vmatpush2.msra.mxu0 0.0
    %2347 = vmatprep.subr.mxu0 0.0
    %2348 = vmatpush2.msra.mxu0 0.0
    %2349 = vmatprep.subr.mxu0 0.0
    %2350 = vmatpush2.msra.mxu0 0.0
    %2351 = vmatprep.subr.mxu0 0.0
    %2352 = vmatpush2.msra.mxu0 0.0
    %2353 = vmatprep.subr.mxu0 0.0
    %2354 = vmatpush2.msra.mxu0 0.0
    %2355 = vmatprep.subr.mxu0 0.0
    %2356 = vmatpush2.msra.mxu0 0.0
    %2357 = vmatprep.subr.mxu0 0.0
    %2358 = vmatpush2.msra.mxu0 0.0
    %2359 = vmatprep.subr.mxu0 0.0
    %2360 = vmatpush2.msra.mxu0 0.0
    %2361 = vmatprep.subr.mxu0 0.0
    %2362 = vmatpush2.msra.mxu0 0.0
    %2363 = vmatprep.subr.mxu0 0.0
    %2364 = vmatpush2.msra.mxu0 0.0
    %2365 = vmatprep.mubr.f32.mxu0 0.0
    %2366 = vmatmul.mubr.f32.gmra.mxu0 %v2219
    %v2367 = vpop.f32.mrf.mxu0
    %v2368 = vadd.f32 %v2209, %v2367
    %v2369 = vpop.f32.mrf.mxu0
    %v2370 = vadd.f32 %v2213, %v2369
    %2371 = vmatprep.mubr.f32.mxu0 0.0
    %2372 = vmatmul.mubr.f32.gmra.mxu0 %v2222
    %v2373 = vpop.f32.mrf.mxu0
    %v2374 = vadd.f32 %v2209, %v2373
    %v2375 = vpop.f32.mrf.mxu0
    %v2376 = vadd.f32 %v2213, %v2375
    %2377 = vdwg.mxu0
    %v2378 = vmax.f32 %v2291, 0.0
    %v2379 = vmax.f32 %v2293, 0.0
    %v2380 = vmax.f32 %v2368, 0.0
    %v2381 = vmax.f32 %v2370, 0.0
    %v2382 = vmax.f32 %v2297, 0.0
    %v2383 = vmax.f32 %v2299, 0.0
    %v2384 = vmax.f32 %v2374, 0.0
    %v2385 = vmax.f32 %v2376, 0.0
    %s2386 = scalar_lea.vmem %s15, 512
    %v2387 = vld [vmem:[%s2386] sm:$0xff]
    %v2388 = vld [vmem:[%s2386 + $0x8] sm:$0xff]
    %v2389 = vld [vmem:[%s2386 + $0x10] sm:$0xff]
    %v2390 = vld [vmem:[%s2386 + $0x18] sm:$0xff]
    %v2391 = vld [vmem:[%s2386 + $0x20] sm:$0xff]
    %v2392 = vld [vmem:[%s2386 + $0x28] sm:$0xff]
    %v2393 = vld [vmem:[%s2386 + $0x30] sm:$0xff]
    %v2394 = vld [vmem:[%s2386 + $0x38] sm:$0xff]
    %v2395 = vld [vmem:[%s2386 + $0x40] sm:$0xff]
    %v2396 = vld [vmem:[%s2386 + $0x48] sm:$0xff]
    %v2397 = vld [vmem:[%s2386 + $0x50] sm:$0xff]
    %v2398 = vld [vmem:[%s2386 + $0x58] sm:$0xff]
    %v2399 = vld [vmem:[%s2386 + $0x60] sm:$0xff]
    %v2400 = vld [vmem:[%s2386 + $0x68] sm:$0xff]
    %v2401 = vld [vmem:[%s2386 + $0x70] sm:$0xff]
    %v2402 = vld [vmem:[%s2386 + $0x78] sm:$0xff]
    %v2403 = vld [vmem:[%s2386 + $0x80] sm:$0xff]
    %v2404 = vld [vmem:[%s2386 + $0x88] sm:$0xff]
    %v2405 = vld [vmem:[%s2386 + $0x90] sm:$0xff]
    %v2406 = vld [vmem:[%s2386 + $0x98] sm:$0xff]
    %v2407 = vld [vmem:[%s2386 + $0xa0] sm:$0xff]
    %v2408 = vld [vmem:[%s2386 + $0xa8] sm:$0xff]
    %v2409 = vld [vmem:[%s2386 + $0xb0] sm:$0xff]
    %v2410 = vld [vmem:[%s2386 + $0xb8] sm:$0xff]
    %v2411 = vld [vmem:[%s2386 + $0xc0] sm:$0xff]
    %v2412 = vld [vmem:[%s2386 + $0xc8] sm:$0xff]
    %v2413 = vld [vmem:[%s2386 + $0xd0] sm:$0xff]
    %v2414 = vld [vmem:[%s2386 + $0xd8] sm:$0xff]
    %v2415 = vld [vmem:[%s2386 + $0xe0] sm:$0xff]
    %v2416 = vld [vmem:[%s2386 + $0xe8] sm:$0xff]
    %v2417 = vld [vmem:[%s2386 + $0xf0] sm:$0xff]
    %v2418 = vld [vmem:[%s2386 + $0xf8] sm:$0xff]
    %v2419 = vld [vmem:[%s2386 + $0x100] sm:$0xff]
    %v2420 = vld [vmem:[%s2386 + $0x108] sm:$0xff]
    %v2421 = vld [vmem:[%s2386 + $0x110] sm:$0xff]
    %v2422 = vld [vmem:[%s2386 + $0x118] sm:$0xff]
    %v2423 = vld [vmem:[%s2386 + $0x120] sm:$0xff]
    %v2424 = vld [vmem:[%s2386 + $0x128] sm:$0xff]
    %v2425 = vld [vmem:[%s2386 + $0x130] sm:$0xff]
    %v2426 = vld [vmem:[%s2386 + $0x138] sm:$0xff]
    %v2427 = vld [vmem:[%s2386 + $0x140] sm:$0xff]
    %v2428 = vld [vmem:[%s2386 + $0x148] sm:$0xff]
    %v2429 = vld [vmem:[%s2386 + $0x150] sm:$0xff]
    %v2430 = vld [vmem:[%s2386 + $0x158] sm:$0xff]
    %v2431 = vld [vmem:[%s2386 + $0x160] sm:$0xff]
    %v2432 = vld [vmem:[%s2386 + $0x168] sm:$0xff]
    %v2433 = vld [vmem:[%s2386 + $0x170] sm:$0xff]
    %v2434 = vld [vmem:[%s2386 + $0x178] sm:$0xff]
    %v2435 = vld [vmem:[%s2386 + $0x180] sm:$0xff]
    %v2436 = vld [vmem:[%s2386 + $0x188] sm:$0xff]
    %v2437 = vld [vmem:[%s2386 + $0x190] sm:$0xff]
    %v2438 = vld [vmem:[%s2386 + $0x198] sm:$0xff]
    %v2439 = vld [vmem:[%s2386 + $0x1a0] sm:$0xff]
    %v2440 = vld [vmem:[%s2386 + $0x1a8] sm:$0xff]
    %v2441 = vld [vmem:[%s2386 + $0x1b0] sm:$0xff]
    %v2442 = vld [vmem:[%s2386 + $0x1b8] sm:$0xff]
    %v2443 = vld [vmem:[%s2386 + $0x1c0] sm:$0xff]
    %v2444 = vld [vmem:[%s2386 + $0x1c8] sm:$0xff]
    %v2445 = vld [vmem:[%s2386 + $0x1d0] sm:$0xff]
    %v2446 = vld [vmem:[%s2386 + $0x1d8] sm:$0xff]
    %v2447 = vld [vmem:[%s2386 + $0x1e0] sm:$0xff]
    %v2448 = vld [vmem:[%s2386 + $0x1e8] sm:$0xff]
    %v2449 = vld [vmem:[%s2386 + $0x1f0] sm:$0xff]
    %v2450 = vld [vmem:[%s2386 + $0x1f8] sm:$0xff]
    %s2451 = scalar_lea.vmem %s16, 1
    %v2452 = vld [vmem:[%s2451] sm:$0x1]
    %v2454 = vlaneseq
    %v2455 = vshrl.u32 %v2454, 7
    %v2456 = vsub.s32 0, %v2455
    %v2457 = vrot.slane %v2452, %v2456
    %2459 = vmatprep.subr.mxu0 0.0
    %2460 = vmatpush1.msra.mxu0 %v2402
    %2461 = vmatprep.subr.mxu0 0.0
    %2462 = vmatpush1.msra.mxu0 %v2401
    %2463 = vmatprep.subr.mxu0 0.0
    %2464 = vmatpush1.msra.mxu0 %v2400
    %2465 = vmatprep.subr.mxu0 0.0
    %2466 = vmatpush1.msra.mxu0 %v2399
    %2467 = vmatprep.subr.mxu0 0.0
    %2468 = vmatpush1.msra.mxu0 %v2398
    %2469 = vmatprep.subr.mxu0 0.0
    %2470 = vmatpush1.msra.mxu0 %v2397
    %2471 = vmatprep.subr.mxu0 0.0
    %2472 = vmatpush1.msra.mxu0 %v2396
    %2473 = vmatprep.subr.mxu0 0.0
    %2474 = vmatpush1.msra.mxu0 %v2395
    %2475 = vmatprep.subr.mxu0 0.0
    %2476 = vmatpush1.msra.mxu0 %v2394
    %2477 = vmatprep.subr.mxu0 0.0
    %2478 = vmatpush1.msra.mxu0 %v2393
    %2479 = vmatprep.subr.mxu0 0.0
    %2480 = vmatpush1.msra.mxu0 %v2392
    %2481 = vmatprep.subr.mxu0 0.0
    %2482 = vmatpush1.msra.mxu0 %v2391
    %2483 = vmatprep.subr.mxu0 0.0
    %2484 = vmatpush1.msra.mxu0 %v2390
    %2485 = vmatprep.subr.mxu0 0.0
    %2486 = vmatpush1.msra.mxu0 %v2389
    %2487 = vmatprep.subr.mxu0 0.0
    %2488 = vmatpush1.msra.mxu0 %v2388
    %2489 = vmatprep.subr.mxu0 0.0
    %2490 = vmatpush1.msra.mxu0 %v2387
    %2491 = vmatprep.subr.mxu0 0.0
    %2492 = vmatpush2.msra.mxu0 %v2418
    %2493 = vmatprep.subr.mxu0 0.0
    %2494 = vmatpush2.msra.mxu0 %v2417
    %2495 = vmatprep.subr.mxu0 0.0
    %2496 = vmatpush2.msra.mxu0 %v2416
    %2497 = vmatprep.subr.mxu0 0.0
    %2498 = vmatpush2.msra.mxu0 %v2415
    %2499 = vmatprep.subr.mxu0 0.0
    %2500 = vmatpush2.msra.mxu0 %v2414
    %2501 = vmatprep.subr.mxu0 0.0
    %2502 = vmatpush2.msra.mxu0 %v2413
    %2503 = vmatprep.subr.mxu0 0.0
    %2504 = vmatpush2.msra.mxu0 %v2412
    %2505 = vmatprep.subr.mxu0 0.0
    %2506 = vmatpush2.msra.mxu0 %v2411
    %2507 = vmatprep.subr.mxu0 0.0
    %2508 = vmatpush2.msra.mxu0 %v2410
    %2509 = vmatprep.subr.mxu0 0.0
    %2510 = vmatpush2.msra.mxu0 %v2409
    %2511 = vmatprep.subr.mxu0 0.0
    %2512 = vmatpush2.msra.mxu0 %v2408
    %2513 = vmatprep.subr.mxu0 0.0
    %2514 = vmatpush2.msra.mxu0 %v2407
    %2515 = vmatprep.subr.mxu0 0.0
    %2516 = vmatpush2.msra.mxu0 %v2406
    %2517 = vmatprep.subr.mxu0 0.0
    %2518 = vmatpush2.msra.mxu0 %v2405
    %2519 = vmatprep.subr.mxu0 0.0
    %2520 = vmatpush2.msra.mxu0 %v2404
    %2521 = vmatprep.subr.mxu0 0.0
    %2522 = vmatpush2.msra.mxu0 %v2403
    %2523 = vmatprep.mubr.f32.mxu0 %v2379
    %2524 = vmatmul.mubr.f32.gmra.mxu0 %v2378
    %v2525 = vpop.f32.mrf.mxu0
    %v2526 = vadd.f32 %v2457, %v2525
    %v2527 = vpop.f32.mrf.mxu0
    %2528 = vmatprep.mubr.f32.mxu0 %v2383
    %2529 = vmatmul.mubr.f32.gmra.mxu0 %v2382
    %v2530 = vpop.f32.mrf.mxu0
    %v2531 = vadd.f32 %v2457, %v2530
    %v2532 = vpop.f32.mrf.mxu0
    %2533 = vdwg.mxu0
    %2534 = vmatprep.subr.mxu0 0.0
    %2535 = vmatpush1.msra.mxu0 %v2434
    %2536 = vmatprep.subr.mxu0 0.0
    %2537 = vmatpush1.msra.mxu0 %v2433
    %2538 = vmatprep.subr.mxu0 0.0
    %2539 = vmatpush1.msra.mxu0 %v2432
    %2540 = vmatprep.subr.mxu0 0.0
    %2541 = vmatpush1.msra.mxu0 %v2431
    %2542 = vmatprep.subr.mxu0 0.0
    %2543 = vmatpush1.msra.mxu0 %v2430
    %2544 = vmatprep.subr.mxu0 0.0
    %2545 = vmatpush1.msra.mxu0 %v2429
    %2546 = vmatprep.subr.mxu0 0.0
    %2547 = vmatpush1.msra.mxu0 %v2428
    %2548 = vmatprep.subr.mxu0 0.0
    %2549 = vmatpush1.msra.mxu0 %v2427
    %2550 = vmatprep.subr.mxu0 0.0
    %2551 = vmatpush1.msra.mxu0 %v2426
    %2552 = vmatprep.subr.mxu0 0.0
    %2553 = vmatpush1.msra.mxu0 %v2425
    %2554 = vmatprep.subr.mxu0 0.0
    %2555 = vmatpush1.msra.mxu0 %v2424
    %2556 = vmatprep.subr.mxu0 0.0
    %2557 = vmatpush1.msra.mxu0 %v2423
    %2558 = vmatprep.subr.mxu0 0.0
    %2559 = vmatpush1.msra.mxu0 %v2422
    %2560 = vmatprep.subr.mxu0 0.0
    %2561 = vmatpush1.msra.mxu0 %v2421
    %2562 = vmatprep.subr.mxu0 0.0
    %2563 = vmatpush1.msra.mxu0 %v2420
    %2564 = vmatprep.subr.mxu0 0.0
    %2565 = vmatpush1.msra.mxu0 %v2419
    %2566 = vmatprep.subr.mxu0 0.0
    %2567 = vmatpush2.msra.mxu0 %v2450
    %2568 = vmatprep.subr.mxu0 0.0
    %2569 = vmatpush2.msra.mxu0 %v2449
    %2570 = vmatprep.subr.mxu0 0.0
    %2571 = vmatpush2.msra.mxu0 %v2448
    %2572 = vmatprep.subr.mxu0 0.0
    %2573 = vmatpush2.msra.mxu0 %v2447
    %2574 = vmatprep.subr.mxu0 0.0
    %2575 = vmatpush2.msra.mxu0 %v2446
    %2576 = vmatprep.subr.mxu0 0.0
    %2577 = vmatpush2.msra.mxu0 %v2445
    %2578 = vmatprep.subr.mxu0 0.0
    %2579 = vmatpush2.msra.mxu0 %v2444
    %2580 = vmatprep.subr.mxu0 0.0
    %2581 = vmatpush2.msra.mxu0 %v2443
    %2582 = vmatprep.subr.mxu0 0.0
    %2583 = vmatpush2.msra.mxu0 %v2442
    %2584 = vmatprep.subr.mxu0 0.0
    %2585 = vmatpush2.msra.mxu0 %v2441
    %2586 = vmatprep.subr.mxu0 0.0
    %2587 = vmatpush2.msra.mxu0 %v2440
    %2588 = vmatprep.subr.mxu0 0.0
    %2589 = vmatpush2.msra.mxu0 %v2439
    %2590 = vmatprep.subr.mxu0 0.0
    %2591 = vmatpush2.msra.mxu0 %v2438
    %2592 = vmatprep.subr.mxu0 0.0
    %2593 = vmatpush2.msra.mxu0 %v2437
    %2594 = vmatprep.subr.mxu0 0.0
    %2595 = vmatpush2.msra.mxu0 %v2436
    %2596 = vmatprep.subr.mxu0 0.0
    %2597 = vmatpush2.msra.mxu0 %v2435
    %2598 = vmatprep.mubr.f32.mxu0 %v2381
    %2599 = vmatmul.mubr.f32.gmra.mxu0 %v2380
    %v2600 = vpop.f32.mrf.mxu0
    %v2601 = vadd.f32 %v2526, %v2600
    %v2602 = vpop.f32.mrf.mxu0
    %2603 = vmatprep.mubr.f32.mxu0 %v2385
    %2604 = vmatmul.mubr.f32.gmra.mxu0 %v2384
    %v2605 = vpop.f32.mrf.mxu0
    %v2606 = vadd.f32 %v2531, %v2605
    %v2607 = vpop.f32.mrf.mxu0
    %2608 = vdwg.mxu0
    %v2609 = vadd.f32 %v2176, %v2601
    %v2610 = vadd.f32 %v2177, %v2606
    %s2611 = scalar_lea.vmem %s9, 64
    %v2612 = vld [vmem:[%s2611] sm:$0xff]
    %v2613 = vld [vmem:[%s2611 + $0x8] sm:$0xff]
    %v2614 = vld [vmem:[%s2611 + $0x10] sm:$0xff]
    %v2615 = vld [vmem:[%s2611 + $0x18] sm:$0xff]
    %s2616 = scalar_lea.vmem %s10, 2
    %v2617 = vld [vmem:[%s2616] sm:$0x1]
    %v2619 = vlaneseq
    %v2620 = vshrl.u32 %v2619, 7
    %v2621 = vsub.s32 0, %v2620
    %v2622 = vrot.slane %v2617, %v2621
    %v2625 = vsel %vm155, %v2609, 0
    %v2628 = vsel %vm155, %v2610, 0
    %2630 = vmatprep.subr.mxu0 0.0
    %2631 = vmatpush1.msra.mxu0 0.0
    %2632 = vmatprep.subr.mxu0 0.0
    %2633 = vmatpush1.msra.mxu0 0.0
    %2634 = vmatprep.subr.mxu0 0.0
    %2635 = vmatpush1.msra.mxu0 0.0
    %2636 = vmatprep.subr.mxu0 0.0
    %2637 = vmatpush1.msra.mxu0 0.0
    %2638 = vmatprep.subr.mxu0 0.0
    %2639 = vmatpush1.msra.mxu0 0.0
    %2640 = vmatprep.subr.mxu0 0.0
    %2641 = vmatpush1.msra.mxu0 0.0
    %2642 = vmatprep.subr.mxu0 0.0
    %2643 = vmatpush1.msra.mxu0 0.0
    %2644 = vmatprep.subr.mxu0 0.0
    %2645 = vmatpush1.msra.mxu0 0.0
    %2646 = vmatprep.subr.mxu0 0.0
    %2647 = vmatpush1.msra.mxu0 0.0
    %2648 = vmatprep.subr.mxu0 0.0
    %2649 = vmatpush1.msra.mxu0 0.0
    %2650 = vmatprep.subr.mxu0 0.0
    %2651 = vmatpush1.msra.mxu0 0.0
    %2652 = vmatprep.subr.mxu0 0.0
    %2653 = vmatpush1.msra.mxu0 0.0
    %2654 = vmatprep.subr.mxu0 0.0
    %2655 = vmatpush1.msra.mxu0 %v2615
    %2656 = vmatprep.subr.mxu0 0.0
    %2657 = vmatpush1.msra.mxu0 %v2614
    %2658 = vmatprep.subr.mxu0 0.0
    %2659 = vmatpush1.msra.mxu0 %v2613
    %2660 = vmatprep.subr.mxu0 0.0
    %2661 = vmatpush1.msra.mxu0 %v2612
    %2662 = vmatprep.subr.mxu0 0.0
    %2663 = vmatpush2.msra.mxu0 0.0
    %2664 = vmatprep.subr.mxu0 0.0
    %2665 = vmatpush2.msra.mxu0 0.0
    %2666 = vmatprep.subr.mxu0 0.0
    %2667 = vmatpush2.msra.mxu0 0.0
    %2668 = vmatprep.subr.mxu0 0.0
    %2669 = vmatpush2.msra.mxu0 0.0
    %2670 = vmatprep.subr.mxu0 0.0
    %2671 = vmatpush2.msra.mxu0 0.0
    %2672 = vmatprep.subr.mxu0 0.0
    %2673 = vmatpush2.msra.mxu0 0.0
    %2674 = vmatprep.subr.mxu0 0.0
    %2675 = vmatpush2.msra.mxu0 0.0
    %2676 = vmatprep.subr.mxu0 0.0
    %2677 = vmatpush2.msra.mxu0 0.0
    %2678 = vmatprep.subr.mxu0 0.0
    %2679 = vmatpush2.msra.mxu0 0.0
    %2680 = vmatprep.subr.mxu0 0.0
    %2681 = vmatpush2.msra.mxu0 0.0
    %2682 = vmatprep.subr.mxu0 0.0
    %2683 = vmatpush2.msra.mxu0 0.0
    %2684 = vmatprep.subr.mxu0 0.0
    %2685 = vmatpush2.msra.mxu0 0.0
    %2686 = vmatprep.subr.mxu0 0.0
    %2687 = vmatpush2.msra.mxu0 0.0
    %2688 = vmatprep.subr.mxu0 0.0
    %2689 = vmatpush2.msra.mxu0 0.0
    %2690 = vmatprep.subr.mxu0 0.0
    %2691 = vmatpush2.msra.mxu0 0.0
    %2692 = vmatprep.subr.mxu0 0.0
    %2693 = vmatpush2.msra.mxu0 0.0
    %2694 = vmatprep.mubr.f32.mxu0 0.0
    %2695 = vmatmul.mubr.f32.gmra.mxu0 %v2625
    %v2696 = vpop.f32.mrf.mxu0
    %v2697 = vadd.f32 %v2622, %v2696
    %v2698 = vpop.f32.mrf.mxu0
    %2699 = vmatprep.mubr.f32.mxu0 0.0
    %2700 = vmatmul.mubr.f32.gmra.mxu0 %v2628
    %v2701 = vpop.f32.mrf.mxu0
    %v2702 = vadd.f32 %v2622, %v2701
    %v2703 = vpop.f32.mrf.mxu0
    %2704 = vdwg.mxu0
    %2707 = vrot.lane.b32.xlu0 %v2697, 96
    %v2708 = vpop.permute.xlu0 %2707
    %2709 = vrot.lane.b32.xlu0 %v2702, 96
    %v2710 = vpop.permute.xlu0 %2709
    %2713 = vxpose.xlu0.b32.start [1/16] %v2708, 128
    %2714 = vxpose.xlu0.b32.cont [2/16] %v2710, 128
    %2715 = vxpose.xlu0.b32.cont [3/16] 0.0, 128
    %2716 = vxpose.xlu0.b32.cont [4/16] 0.0, 128
    %2717 = vxpose.xlu0.b32.cont [5/16] 0.0, 128
    %2718 = vxpose.xlu0.b32.cont [6/16] 0.0, 128
    %2719 = vxpose.xlu0.b32.cont [7/16] 0.0, 128
    %2720 = vxpose.xlu0.b32.cont [8/16] 0.0, 128
    %2721 = vxpose.xlu0.b32.cont [9/16] 0.0, 128
    %2722 = vxpose.xlu0.b32.cont [10/16] 0.0, 128
    %2723 = vxpose.xlu0.b32.cont [11/16] 0.0, 128
    %2724 = vxpose.xlu0.b32.cont [12/16] 0.0, 128
    %2725 = vxpose.xlu0.b32.cont [13/16] 0.0, 128
    %2726 = vxpose.xlu0.b32.cont [14/16] 0.0, 128
    %2727 = vxpose.xlu0.b32.cont [15/16] 0.0, 128
    %2728 = vxpose.xlu0.b32.end [16/16] 0.0, 128
    %v2729 = vpop.trf.xlu0
    %v2730 = vpop.trf.xlu0
    %v2731 = vpop.trf.xlu0
    %v2732 = vpop.trf.xlu0
    %v2733 = vpop.trf.xlu0
    %v2734 = vpop.trf.xlu0
    %v2735 = vpop.trf.xlu0
    %v2736 = vpop.trf.xlu0
    %v2737 = vpop.trf.xlu0
    %v2738 = vpop.trf.xlu0
    %v2739 = vpop.trf.xlu0
    %v2740 = vpop.trf.xlu0
    %v2741 = vpop.trf.xlu0
    %v2742 = vpop.trf.xlu0
    %v2743 = vpop.trf.xlu0
    %v2744 = vpop.trf.xlu0
    %v2746 = vsel %vm346, %v2729, 0
    %v2749 = vsel %vm346, %v2730, 0
    %v2752 = vsel %vm346, %v2731, 0
    %v2755 = vsel %vm346, %v2732, 0
    %2757 = vmatprep.subr.mxu0 0.0
    %2758 = vmatpush1.msra.mxu0 0.0
    %2759 = vmatprep.subr.mxu0 0.0
    %2760 = vmatpush1.msra.mxu0 0.0
    %2761 = vmatprep.subr.mxu0 0.0
    %2762 = vmatpush1.msra.mxu0 0.0
    %2763 = vmatprep.subr.mxu0 0.0
    %2764 = vmatpush1.msra.mxu0 0.0
    %2765 = vmatprep.subr.mxu0 0.0
    %2766 = vmatpush1.msra.mxu0 0.0
    %2767 = vmatprep.subr.mxu0 0.0
    %2768 = vmatpush1.msra.mxu0 0.0
    %2769 = vmatprep.subr.mxu0 0.0
    %2770 = vmatpush1.msra.mxu0 0.0
    %2771 = vmatprep.subr.mxu0 0.0
    %2772 = vmatpush1.msra.mxu0 0.0
    %2773 = vmatprep.subr.mxu0 0.0
    %2774 = vmatpush1.msra.mxu0 0.0
    %2775 = vmatprep.subr.mxu0 0.0
    %2776 = vmatpush1.msra.mxu0 0.0
    %2777 = vmatprep.subr.mxu0 0.0
    %2778 = vmatpush1.msra.mxu0 0.0
    %2779 = vmatprep.subr.mxu0 0.0
    %2780 = vmatpush1.msra.mxu0 0.0
    %2781 = vmatprep.subr.mxu0 0.0
    %2782 = vmatpush1.msra.mxu0 0.0
    %2783 = vmatprep.subr.mxu0 0.0
    %2784 = vmatpush1.msra.mxu0 0.0
    %2785 = vmatprep.subr.mxu0 0.0
    %2786 = vmatpush1.msra.mxu0 %v177
    %2787 = vmatprep.subr.mxu0 0.0
    %2788 = vmatpush1.msra.mxu0 %v176
    %2789 = vmatprep.subr.mxu0 0.0
    %2790 = vmatpush2.msra.mxu0 0.0
    %2791 = vmatprep.subr.mxu0 0.0
    %2792 = vmatpush2.msra.mxu0 0.0
    %2793 = vmatprep.subr.mxu0 0.0
    %2794 = vmatpush2.msra.mxu0 0.0
    %2795 = vmatprep.subr.mxu0 0.0
    %2796 = vmatpush2.msra.mxu0 0.0
    %2797 = vmatprep.subr.mxu0 0.0
    %2798 = vmatpush2.msra.mxu0 0.0
    %2799 = vmatprep.subr.mxu0 0.0
    %2800 = vmatpush2.msra.mxu0 0.0
    %2801 = vmatprep.subr.mxu0 0.0
    %2802 = vmatpush2.msra.mxu0 0.0
    %2803 = vmatprep.subr.mxu0 0.0
    %2804 = vmatpush2.msra.mxu0 0.0
    %2805 = vmatprep.subr.mxu0 0.0
    %2806 = vmatpush2.msra.mxu0 0.0
    %2807 = vmatprep.subr.mxu0 0.0
    %2808 = vmatpush2.msra.mxu0 0.0
    %2809 = vmatprep.subr.mxu0 0.0
    %2810 = vmatpush2.msra.mxu0 0.0
    %2811 = vmatprep.subr.mxu0 0.0
    %2812 = vmatpush2.msra.mxu0 0.0
    %2813 = vmatprep.subr.mxu0 0.0
    %2814 = vmatpush2.msra.mxu0 0.0
    %2815 = vmatprep.subr.mxu0 0.0
    %2816 = vmatpush2.msra.mxu0 0.0
    %2817 = vmatprep.subr.mxu0 0.0
    %2818 = vmatpush2.msra.mxu0 0.0
    %2819 = vmatprep.subr.mxu0 0.0
    %2820 = vmatpush2.msra.mxu0 0.0
    %2821 = vmatprep.mubr.f32.mxu0 0.0
    %2822 = vmatmul.mubr.f32.gmra.mxu0 %v2746
    %v2823 = vpop.f32.mrf.mxu0
    %v2824 = vadd.f32 0.0, %v2823
    %v2825 = vpop.f32.mrf.mxu0
    %2826 = vmatprep.mubr.f32.mxu0 0.0
    %2827 = vmatmul.mubr.f32.gmra.mxu0 %v2749
    %v2828 = vpop.f32.mrf.mxu0
    %v2829 = vadd.f32 0.0, %v2828
    %v2830 = vpop.f32.mrf.mxu0
    %2831 = vmatprep.mubr.f32.mxu0 0.0
    %2832 = vmatmul.mubr.f32.gmra.mxu0 %v2752
    %v2833 = vpop.f32.mrf.mxu0
    %v2834 = vadd.f32 0.0, %v2833
    %v2835 = vpop.f32.mrf.mxu0
    %2836 = vmatprep.mubr.f32.mxu0 0.0
    %2837 = vmatmul.mubr.f32.gmra.mxu0 %v2755
    %v2838 = vpop.f32.mrf.mxu0
    %v2839 = vadd.f32 0.0, %v2838
    %v2840 = vpop.f32.mrf.mxu0
    %2841 = vdwg.mxu0
    %v2842 = vmul.f32 %v2824, %v194
    %v2843 = vmul.f32 %v2829, %v195
    %v2844 = vmul.f32 %v2834, %v196
    %v2845 = vmul.f32 %v2839, %v197
    %v2846 = vsel %vm155, %v2697, 0
    %v2848 = vsel %vm155, %v2702, 0
    %2850 = vmatprep.subr.mxu0 0.0
    %2851 = vmatpush1.msra.mxu0 0.0
    %2852 = vmatprep.subr.mxu0 0.0
    %2853 = vmatpush1.msra.mxu0 0.0
    %2854 = vmatprep.subr.mxu0 0.0
    %2855 = vmatpush1.msra.mxu0 0.0
    %2856 = vmatprep.subr.mxu0 0.0
    %2857 = vmatpush1.msra.mxu0 0.0
    %2858 = vmatprep.subr.mxu0 0.0
    %2859 = vmatpush1.msra.mxu0 0.0
    %2860 = vmatprep.subr.mxu0 0.0
    %2861 = vmatpush1.msra.mxu0 0.0
    %2862 = vmatprep.subr.mxu0 0.0
    %2863 = vmatpush1.msra.mxu0 0.0
    %2864 = vmatprep.subr.mxu0 0.0
    %2865 = vmatpush1.msra.mxu0 0.0
    %2866 = vmatprep.subr.mxu0 0.0
    %2867 = vmatpush1.msra.mxu0 0.0
    %2868 = vmatprep.subr.mxu0 0.0
    %2869 = vmatpush1.msra.mxu0 0.0
    %2870 = vmatprep.subr.mxu0 0.0
    %2871 = vmatpush1.msra.mxu0 0.0
    %2872 = vmatprep.subr.mxu0 0.0
    %2873 = vmatpush1.msra.mxu0 0.0
    %2874 = vmatprep.subr.mxu0 0.0
    %2875 = vmatpush1.msra.mxu0 %v2845
    %2876 = vmatprep.subr.mxu0 0.0
    %2877 = vmatpush1.msra.mxu0 %v2844
    %2878 = vmatprep.subr.mxu0 0.0
    %2879 = vmatpush1.msra.mxu0 %v2843
    %2880 = vmatprep.subr.mxu0 0.0
    %2881 = vmatpush1.msra.mxu0 %v2842
    %2882 = vmatprep.subr.mxu0 0.0
    %2883 = vmatpush2.msra.mxu0 0.0
    %2884 = vmatprep.subr.mxu0 0.0
    %2885 = vmatpush2.msra.mxu0 0.0
    %2886 = vmatprep.subr.mxu0 0.0
    %2887 = vmatpush2.msra.mxu0 0.0
    %2888 = vmatprep.subr.mxu0 0.0
    %2889 = vmatpush2.msra.mxu0 0.0
    %2890 = vmatprep.subr.mxu0 0.0
    %2891 = vmatpush2.msra.mxu0 0.0
    %2892 = vmatprep.subr.mxu0 0.0
    %2893 = vmatpush2.msra.mxu0 0.0
    %2894 = vmatprep.subr.mxu0 0.0
    %2895 = vmatpush2.msra.mxu0 0.0
    %2896 = vmatprep.subr.mxu0 0.0
    %2897 = vmatpush2.msra.mxu0 0.0
    %2898 = vmatprep.subr.mxu0 0.0
    %2899 = vmatpush2.msra.mxu0 0.0
    %2900 = vmatprep.subr.mxu0 0.0
    %2901 = vmatpush2.msra.mxu0 0.0
    %2902 = vmatprep.subr.mxu0 0.0
    %2903 = vmatpush2.msra.mxu0 0.0
    %2904 = vmatprep.subr.mxu0 0.0
    %2905 = vmatpush2.msra.mxu0 0.0
    %2906 = vmatprep.subr.mxu0 0.0
    %2907 = vmatpush2.msra.mxu0 0.0
    %2908 = vmatprep.subr.mxu0 0.0
    %2909 = vmatpush2.msra.mxu0 0.0
    %2910 = vmatprep.subr.mxu0 0.0
    %2911 = vmatpush2.msra.mxu0 0.0
    %2912 = vmatprep.subr.mxu0 0.0
    %2913 = vmatpush2.msra.mxu0 0.0
    %2914 = vmatprep.mubr.f32.mxu0 0.0
    %2915 = vmatmul.mubr.f32.gmra.mxu0 %v2846
    %v2916 = vpop.f32.mrf.mxu0
    %v2917 = vadd.f32 0.0, %v2916
    %v2918 = vpop.f32.mrf.mxu0
    %2919 = vmatprep.mubr.f32.mxu0 0.0
    %2920 = vmatmul.mubr.f32.gmra.mxu0 %v2848
    %v2921 = vpop.f32.mrf.mxu0
    %v2922 = vadd.f32 0.0, %v2921
    %v2923 = vpop.f32.mrf.mxu0
    %2924 = vdwg.mxu0
    %v2925 = vmul.f32 %v2917, 0.5
    %v2926 = vmul.f32 %v2922, 0.5
    %v2927 = vadd.f32 %v2925, %v158
    %v2928 = vadd.f32 %v2926, %v159
    %2929 = vmax.xlane.f32.xlu0 %v2927
    %v2930 = vpop.xlane.xlu0 %2929
    %2931 = vmax.xlane.f32.xlu0 %v2928
    %v2932 = vpop.xlane.xlu0 %2931
    %v2933 = vsub.f32 %v2927, %v2930
    %v2934 = vsub.f32 %v2928, %v2932
    %v2935 = vmul.f32 %v2933, 1.442695
    %v2936 = vpow.pop %v2935
    %v2937 = vmul.f32 %v2934, 1.442695
    %v2938 = vpow.pop %v2937
    %2939 = vmatprep.subr.mxu0 0.0
    %2940 = vmatpush1.msra.mxu0 %v175
    %2941 = vmatprep.subr.mxu0 0.0
    %2942 = vmatpush1.msra.mxu0 %v174
    %2943 = vmatprep.subr.mxu0 0.0
    %2944 = vmatpush1.msra.mxu0 %v173
    %2945 = vmatprep.subr.mxu0 0.0
    %2946 = vmatpush1.msra.mxu0 %v172
    %2947 = vmatprep.subr.mxu0 0.0
    %2948 = vmatpush1.msra.mxu0 %v171
    %2949 = vmatprep.subr.mxu0 0.0
    %2950 = vmatpush1.msra.mxu0 %v170
    %2951 = vmatprep.subr.mxu0 0.0
    %2952 = vmatpush1.msra.mxu0 %v169
    %2953 = vmatprep.subr.mxu0 0.0
    %2954 = vmatpush1.msra.mxu0 %v168
    %2955 = vmatprep.subr.mxu0 0.0
    %2956 = vmatpush1.msra.mxu0 %v167
    %2957 = vmatprep.subr.mxu0 0.0
    %2958 = vmatpush1.msra.mxu0 %v166
    %2959 = vmatprep.subr.mxu0 0.0
    %2960 = vmatpush1.msra.mxu0 %v165
    %2961 = vmatprep.subr.mxu0 0.0
    %2962 = vmatpush1.msra.mxu0 %v164
    %2963 = vmatprep.subr.mxu0 0.0
    %2964 = vmatpush1.msra.mxu0 %v163
    %2965 = vmatprep.subr.mxu0 0.0
    %2966 = vmatpush1.msra.mxu0 %v162
    %2967 = vmatprep.subr.mxu0 0.0
    %2968 = vmatpush1.msra.mxu0 %v161
    %2969 = vmatprep.subr.mxu0 0.0
    %2970 = vmatpush1.msra.mxu0 %v160
    %2971 = vmatprep.subr.mxu0 0.0
    %2972 = vmatpush2.msra.mxu0 0.0
    %2973 = vmatprep.subr.mxu0 0.0
    %2974 = vmatpush2.msra.mxu0 0.0
    %2975 = vmatprep.subr.mxu0 0.0
    %2976 = vmatpush2.msra.mxu0 0.0
    %2977 = vmatprep.subr.mxu0 0.0
    %2978 = vmatpush2.msra.mxu0 0.0
    %2979 = vmatprep.subr.mxu0 0.0
    %2980 = vmatpush2.msra.mxu0 0.0
    %2981 = vmatprep.subr.mxu0 0.0
    %2982 = vmatpush2.msra.mxu0 0.0
    %2983 = vmatprep.subr.mxu0 0.0
    %2984 = vmatpush2.msra.mxu0 0.0
    %2985 = vmatprep.subr.mxu0 0.0
    %2986 = vmatpush2.msra.mxu0 0.0
    %2987 = vmatprep.subr.mxu0 0.0
    %2988 = vmatpush2.msra.mxu0 0.0
    %2989 = vmatprep.subr.mxu0 0.0
    %2990 = vmatpush2.msra.mxu0 0.0
    %2991 = vmatprep.subr.mxu0 0.0
    %2992 = vmatpush2.msra.mxu0 0.0
    %2993 = vmatprep.subr.mxu0 0.0
    %2994 = vmatpush2.msra.mxu0 0.0
    %2995 = vmatprep.subr.mxu0 0.0
    %2996 = vmatpush2.msra.mxu0 0.0
    %2997 = vmatprep.subr.mxu0 0.0
    %2998 = vmatpush2.msra.mxu0 0.0
    %2999 = vmatprep.subr.mxu0 0.0
    %3000 = vmatpush2.msra.mxu0 0.0
    %3001 = vmatprep.subr.mxu0 0.0
    %3002 = vmatpush2.msra.mxu0 0.0
    %3003 = vmatprep.mubr.f32.mxu0 0.0
    %3004 = vmatmul.mubr.f32.gmra.mxu0 %v2936
    %v3005 = vpop.f32.mrf.mxu0
    %v3006 = vadd.f32 0.0, %v3005
    %v3007 = vpop.f32.mrf.mxu0
    %3008 = vmatprep.mubr.f32.mxu0 0.0
    %3009 = vmatmul.mubr.f32.gmra.mxu0 %v2938
    %v3010 = vpop.f32.mrf.mxu0
    %v3011 = vadd.f32 0.0, %v3010
    %v3012 = vpop.f32.mrf.mxu0
    %3013 = vdwg.mxu0
    %v3014 = vrcp.pop %v3006
    %v3015 = vrcp.pop %v3011
    %v3016 = vmul.f32 %v2936, %v3014
    %v3017 = vmul.f32 %v2938, %v3015
    %3018 = vrot.lane.b32.xlu0 %v2697, 64
    %v3019 = vpop.permute.xlu0 %3018
    %3020 = vrot.lane.b32.xlu0 %v2702, 64
    %v3021 = vpop.permute.xlu0 %3020
    %3024 = vmatprep.subr.mxu0 0.0
    %3025 = vmatpush1.msra.mxu0 0.0
    %3026 = vmatprep.subr.mxu0 0.0
    %3027 = vmatpush1.msra.mxu0 0.0
    %3028 = vmatprep.subr.mxu0 0.0
    %3029 = vmatpush1.msra.mxu0 0.0
    %3030 = vmatprep.subr.mxu0 0.0
    %3031 = vmatpush1.msra.mxu0 0.0
    %3032 = vmatprep.subr.mxu0 0.0
    %3033 = vmatpush1.msra.mxu0 0.0
    %3034 = vmatprep.subr.mxu0 0.0
    %3035 = vmatpush1.msra.mxu0 0.0
    %3036 = vmatprep.subr.mxu0 0.0
    %3037 = vmatpush1.msra.mxu0 0.0
    %3038 = vmatprep.subr.mxu0 0.0
    %3039 = vmatpush1.msra.mxu0 0.0
    %3040 = vmatprep.subr.mxu0 0.0
    %3041 = vmatpush1.msra.mxu0 0.0
    %3042 = vmatprep.subr.mxu0 0.0
    %3043 = vmatpush1.msra.mxu0 0.0
    %3044 = vmatprep.subr.mxu0 0.0
    %3045 = vmatpush1.msra.mxu0 0.0
    %3046 = vmatprep.subr.mxu0 0.0
    %3047 = vmatpush1.msra.mxu0 0.0
    %3048 = vmatprep.subr.mxu0 0.0
    %3049 = vmatpush1.msra.mxu0 0.0
    %3050 = vmatprep.subr.mxu0 0.0
    %3051 = vmatpush1.msra.mxu0 0.0
    %3052 = vmatprep.subr.mxu0 0.0
    %3053 = vmatpush1.msra.mxu0 %v3021
    %3054 = vmatprep.subr.mxu0 0.0
    %3055 = vmatpush1.msra.mxu0 %v3019
    %3056 = vmatprep.subr.mxu0 0.0
    %3057 = vmatpush2.msra.mxu0 0.0
    %3058 = vmatprep.subr.mxu0 0.0
    %3059 = vmatpush2.msra.mxu0 0.0
    %3060 = vmatprep.subr.mxu0 0.0
    %3061 = vmatpush2.msra.mxu0 0.0
    %3062 = vmatprep.subr.mxu0 0.0
    %3063 = vmatpush2.msra.mxu0 0.0
    %3064 = vmatprep.subr.mxu0 0.0
    %3065 = vmatpush2.msra.mxu0 0.0
    %3066 = vmatprep.subr.mxu0 0.0
    %3067 = vmatpush2.msra.mxu0 0.0
    %3068 = vmatprep.subr.mxu0 0.0
    %3069 = vmatpush2.msra.mxu0 0.0
    %3070 = vmatprep.subr.mxu0 0.0
    %3071 = vmatpush2.msra.mxu0 0.0
    %3072 = vmatprep.subr.mxu0 0.0
    %3073 = vmatpush2.msra.mxu0 0.0
    %3074 = vmatprep.subr.mxu0 0.0
    %3075 = vmatpush2.msra.mxu0 0.0
    %3076 = vmatprep.subr.mxu0 0.0
    %3077 = vmatpush2.msra.mxu0 0.0
    %3078 = vmatprep.subr.mxu0 0.0
    %3079 = vmatpush2.msra.mxu0 0.0
    %3080 = vmatprep.subr.mxu0 0.0
    %3081 = vmatpush2.msra.mxu0 0.0
    %3082 = vmatprep.subr.mxu0 0.0
    %3083 = vmatpush2.msra.mxu0 0.0
    %3084 = vmatprep.subr.mxu0 0.0
    %3085 = vmatpush2.msra.mxu0 0.0
    %3086 = vmatprep.subr.mxu0 0.0
    %3087 = vmatpush2.msra.mxu0 0.0
    %3088 = vmatprep.mubr.f32.mxu0 0.0
    %3089 = vmatmul.mubr.f32.gmra.mxu0 %v627
    %v3090 = vpop.f32.mrf.mxu0
    %v3091 = vadd.f32 0.0, %v3090
    %v3092 = vpop.f32.mrf.mxu0
    %3093 = vmatprep.mubr.f32.mxu0 0.0
    %3094 = vmatmul.mubr.f32.gmra.mxu0 %v630
    %v3095 = vpop.f32.mrf.mxu0
    %v3096 = vadd.f32 0.0, %v3095
    %v3097 = vpop.f32.mrf.mxu0
    %3098 = vmatprep.mubr.f32.mxu0 0.0
    %3099 = vmatmul.mubr.f32.gmra.mxu0 %v633
    %v3100 = vpop.f32.mrf.mxu0
    %v3101 = vadd.f32 0.0, %v3100
    %v3102 = vpop.f32.mrf.mxu0
    %3103 = vmatprep.mubr.f32.mxu0 0.0
    %3104 = vmatmul.mubr.f32.gmra.mxu0 %v636
    %v3105 = vpop.f32.mrf.mxu0
    %v3106 = vadd.f32 0.0, %v3105
    %v3107 = vpop.f32.mrf.mxu0
    %3108 = vmatprep.mubr.f32.mxu0 0.0
    %3109 = vmatmul.mubr.f32.gmra.mxu0 %v639
    %v3110 = vpop.f32.mrf.mxu0
    %v3111 = vadd.f32 0.0, %v3110
    %v3112 = vpop.f32.mrf.mxu0
    %3113 = vmatprep.mubr.f32.mxu0 0.0
    %3114 = vmatmul.mubr.f32.gmra.mxu0 %v642
    %v3115 = vpop.f32.mrf.mxu0
    %v3116 = vadd.f32 0.0, %v3115
    %v3117 = vpop.f32.mrf.mxu0
    %3118 = vmatprep.mubr.f32.mxu0 0.0
    %3119 = vmatmul.mubr.f32.gmra.mxu0 %v645
    %v3120 = vpop.f32.mrf.mxu0
    %v3121 = vadd.f32 0.0, %v3120
    %v3122 = vpop.f32.mrf.mxu0
    %3123 = vmatprep.mubr.f32.mxu0 0.0
    %3124 = vmatmul.mubr.f32.gmra.mxu0 %v648
    %v3125 = vpop.f32.mrf.mxu0
    %v3126 = vadd.f32 0.0, %v3125
    %v3127 = vpop.f32.mrf.mxu0
    %3128 = vmatprep.mubr.f32.mxu0 0.0
    %3129 = vmatmul.mubr.f32.gmra.mxu0 %v651
    %v3130 = vpop.f32.mrf.mxu0
    %v3131 = vadd.f32 0.0, %v3130
    %v3132 = vpop.f32.mrf.mxu0
    %3133 = vmatprep.mubr.f32.mxu0 0.0
    %3134 = vmatmul.mubr.f32.gmra.mxu0 %v654
    %v3135 = vpop.f32.mrf.mxu0
    %v3136 = vadd.f32 0.0, %v3135
    %v3137 = vpop.f32.mrf.mxu0
    %3138 = vmatprep.mubr.f32.mxu0 0.0
    %3139 = vmatmul.mubr.f32.gmra.mxu0 %v657
    %v3140 = vpop.f32.mrf.mxu0
    %v3141 = vadd.f32 0.0, %v3140
    %v3142 = vpop.f32.mrf.mxu0
    %3143 = vmatprep.mubr.f32.mxu0 0.0
    %3144 = vmatmul.mubr.f32.gmra.mxu0 %v660
    %v3145 = vpop.f32.mrf.mxu0
    %v3146 = vadd.f32 0.0, %v3145
    %v3147 = vpop.f32.mrf.mxu0
    %3148 = vmatprep.mubr.f32.mxu0 0.0
    %3149 = vmatmul.mubr.f32.gmra.mxu0 %v663
    %v3150 = vpop.f32.mrf.mxu0
    %v3151 = vadd.f32 0.0, %v3150
    %v3152 = vpop.f32.mrf.mxu0
    %3153 = vmatprep.mubr.f32.mxu0 0.0
    %3154 = vmatmul.mubr.f32.gmra.mxu0 %v666
    %v3155 = vpop.f32.mrf.mxu0
    %v3156 = vadd.f32 0.0, %v3155
    %v3157 = vpop.f32.mrf.mxu0
    %3158 = vmatprep.mubr.f32.mxu0 0.0
    %3159 = vmatmul.mubr.f32.gmra.mxu0 %v669
    %v3160 = vpop.f32.mrf.mxu0
    %v3161 = vadd.f32 0.0, %v3160
    %v3162 = vpop.f32.mrf.mxu0
    %3163 = vmatprep.mubr.f32.mxu0 0.0
    %3164 = vmatmul.mubr.f32.gmra.mxu0 %v672
    %v3165 = vpop.f32.mrf.mxu0
    %v3166 = vadd.f32 0.0, %v3165
    %v3167 = vpop.f32.mrf.mxu0
    %3168 = vdwg.mxu0
    %v3169 = vmul.f32 %v3091, %v198
    %v3170 = vmul.f32 %v3096, %v199
    %v3171 = vmul.f32 %v3101, %v200
    %v3172 = vmul.f32 %v3106, %v201
    %v3173 = vmul.f32 %v3111, %v202
    %v3174 = vmul.f32 %v3116, %v203
    %v3175 = vmul.f32 %v3121, %v204
    %v3176 = vmul.f32 %v3126, %v205
    %v3177 = vmul.f32 %v3131, %v206
    %v3178 = vmul.f32 %v3136, %v207
    %v3179 = vmul.f32 %v3141, %v208
    %v3180 = vmul.f32 %v3146, %v209
    %v3181 = vmul.f32 %v3151, %v210
    %v3182 = vmul.f32 %v3156, %v211
    %v3183 = vmul.f32 %v3161, %v212
    %v3184 = vmul.f32 %v3166, %v213
    %3185 = vmatprep.subr.mxu0 0.0
    %3186 = vmatpush1.msra.mxu0 %v3184
    %3187 = vmatprep.subr.mxu0 0.0
    %3188 = vmatpush1.msra.mxu0 %v3183
    %3189 = vmatprep.subr.mxu0 0.0
    %3190 = vmatpush1.msra.mxu0 %v3182
    %3191 = vmatprep.subr.mxu0 0.0
    %3192 = vmatpush1.msra.mxu0 %v3181
    %3193 = vmatprep.subr.mxu0 0.0
    %3194 = vmatpush1.msra.mxu0 %v3180
    %3195 = vmatprep.subr.mxu0 0.0
    %3196 = vmatpush1.msra.mxu0 %v3179
    %3197 = vmatprep.subr.mxu0 0.0
    %3198 = vmatpush1.msra.mxu0 %v3178
    %3199 = vmatprep.subr.mxu0 0.0
    %3200 = vmatpush1.msra.mxu0 %v3177
    %3201 = vmatprep.subr.mxu0 0.0
    %3202 = vmatpush1.msra.mxu0 %v3176
    %3203 = vmatprep.subr.mxu0 0.0
    %3204 = vmatpush1.msra.mxu0 %v3175
    %3205 = vmatprep.subr.mxu0 0.0
    %3206 = vmatpush1.msra.mxu0 %v3174
    %3207 = vmatprep.subr.mxu0 0.0
    %3208 = vmatpush1.msra.mxu0 %v3173
    %3209 = vmatprep.subr.mxu0 0.0
    %3210 = vmatpush1.msra.mxu0 %v3172
    %3211 = vmatprep.subr.mxu0 0.0
    %3212 = vmatpush1.msra.mxu0 %v3171
    %3213 = vmatprep.subr.mxu0 0.0
    %3214 = vmatpush1.msra.mxu0 %v3170
    %3215 = vmatprep.subr.mxu0 0.0
    %3216 = vmatpush1.msra.mxu0 %v3169
    %3217 = vmatprep.subr.mxu0 0.0
    %3218 = vmatpush2.msra.mxu0 0.0
    %3219 = vmatprep.subr.mxu0 0.0
    %3220 = vmatpush2.msra.mxu0 0.0
    %3221 = vmatprep.subr.mxu0 0.0
    %3222 = vmatpush2.msra.mxu0 0.0
    %3223 = vmatprep.subr.mxu0 0.0
    %3224 = vmatpush2.msra.mxu0 0.0
    %3225 = vmatprep.subr.mxu0 0.0
    %3226 = vmatpush2.msra.mxu0 0.0
    %3227 = vmatprep.subr.mxu0 0.0
    %3228 = vmatpush2.msra.mxu0 0.0
    %3229 = vmatprep.subr.mxu0 0.0
    %3230 = vmatpush2.msra.mxu0 0.0
    %3231 = vmatprep.subr.mxu0 0.0
    %3232 = vmatpush2.msra.mxu0 0.0
    %3233 = vmatprep.subr.mxu0 0.0
    %3234 = vmatpush2.msra.mxu0 0.0
    %3235 = vmatprep.subr.mxu0 0.0
    %3236 = vmatpush2.msra.mxu0 0.0
    %3237 = vmatprep.subr.mxu0 0.0
    %3238 = vmatpush2.msra.mxu0 0.0
    %3239 = vmatprep.subr.mxu0 0.0
    %3240 = vmatpush2.msra.mxu0 0.0
    %3241 = vmatprep.subr.mxu0 0.0
    %3242 = vmatpush2.msra.mxu0 0.0
    %3243 = vmatprep.subr.mxu0 0.0
    %3244 = vmatpush2.msra.mxu0 0.0
    %3245 = vmatprep.subr.mxu0 0.0
    %3246 = vmatpush2.msra.mxu0 0.0
    %3247 = vmatprep.subr.mxu0 0.0
    %3248 = vmatpush2.msra.mxu0 0.0
    %3249 = vmatprep.mubr.f32.mxu0 0.0
    %3250 = vmatmul.mubr.f32.gmra.mxu0 %v3016
    %v3251 = vpop.f32.mrf.mxu0
    %v3252 = vadd.f32 0.0, %v3251
    %v3253 = vpop.f32.mrf.mxu0
    %3254 = vmatprep.mubr.f32.mxu0 0.0
    %3255 = vmatmul.mubr.f32.gmra.mxu0 %v3017
    %v3256 = vpop.f32.mrf.mxu0
    %v3257 = vadd.f32 0.0, %v3256
    %v3258 = vpop.f32.mrf.mxu0
    %3259 = vdwg.mxu0
    %s3260 = scalar_lea.vmem %s11, 64
    %v3261 = vld [vmem:[%s3260] sm:$0xff]
    %v3262 = vld [vmem:[%s3260 + $0x8] sm:$0xff]
    %v3263 = vld [vmem:[%s3260 + $0x10] sm:$0xff]
    %v3264 = vld [vmem:[%s3260 + $0x18] sm:$0xff]
    %s3265 = scalar_lea.vmem %s12, 2
    %v3266 = vld [vmem:[%s3265] sm:$0x1]
    %v3268 = vlaneseq
    %v3269 = vshrl.u32 %v3268, 7
    %v3270 = vsub.s32 0, %v3269
    %v3271 = vrot.slane %v3266, %v3270
    %v3274 = vsel %vm155, %v3252, 0
    %v3277 = vsel %vm155, %v3257, 0
    %3279 = vmatprep.subr.mxu0 0.0
    %3280 = vmatpush1.msra.mxu0 0.0
    %3281 = vmatprep.subr.mxu0 0.0
    %3282 = vmatpush1.msra.mxu0 0.0
    %3283 = vmatprep.subr.mxu0 0.0
    %3284 = vmatpush1.msra.mxu0 0.0
    %3285 = vmatprep.subr.mxu0 0.0
    %3286 = vmatpush1.msra.mxu0 0.0
    %3287 = vmatprep.subr.mxu0 0.0
    %3288 = vmatpush1.msra.mxu0 0.0
    %3289 = vmatprep.subr.mxu0 0.0
    %3290 = vmatpush1.msra.mxu0 0.0
    %3291 = vmatprep.subr.mxu0 0.0
    %3292 = vmatpush1.msra.mxu0 0.0
    %3293 = vmatprep.subr.mxu0 0.0
    %3294 = vmatpush1.msra.mxu0 0.0
    %3295 = vmatprep.subr.mxu0 0.0
    %3296 = vmatpush1.msra.mxu0 0.0
    %3297 = vmatprep.subr.mxu0 0.0
    %3298 = vmatpush1.msra.mxu0 0.0
    %3299 = vmatprep.subr.mxu0 0.0
    %3300 = vmatpush1.msra.mxu0 0.0
    %3301 = vmatprep.subr.mxu0 0.0
    %3302 = vmatpush1.msra.mxu0 0.0
    %3303 = vmatprep.subr.mxu0 0.0
    %3304 = vmatpush1.msra.mxu0 %v3264
    %3305 = vmatprep.subr.mxu0 0.0
    %3306 = vmatpush1.msra.mxu0 %v3263
    %3307 = vmatprep.subr.mxu0 0.0
    %3308 = vmatpush1.msra.mxu0 %v3262
    %3309 = vmatprep.subr.mxu0 0.0
    %3310 = vmatpush1.msra.mxu0 %v3261
    %3311 = vmatprep.subr.mxu0 0.0
    %3312 = vmatpush2.msra.mxu0 0.0
    %3313 = vmatprep.subr.mxu0 0.0
    %3314 = vmatpush2.msra.mxu0 0.0
    %3315 = vmatprep.subr.mxu0 0.0
    %3316 = vmatpush2.msra.mxu0 0.0
    %3317 = vmatprep.subr.mxu0 0.0
    %3318 = vmatpush2.msra.mxu0 0.0
    %3319 = vmatprep.subr.mxu0 0.0
    %3320 = vmatpush2.msra.mxu0 0.0
    %3321 = vmatprep.subr.mxu0 0.0
    %3322 = vmatpush2.msra.mxu0 0.0
    %3323 = vmatprep.subr.mxu0 0.0
    %3324 = vmatpush2.msra.mxu0 0.0
    %3325 = vmatprep.subr.mxu0 0.0
    %3326 = vmatpush2.msra.mxu0 0.0
    %3327 = vmatprep.subr.mxu0 0.0
    %3328 = vmatpush2.msra.mxu0 0.0
    %3329 = vmatprep.subr.mxu0 0.0
    %3330 = vmatpush2.msra.mxu0 0.0
    %3331 = vmatprep.subr.mxu0 0.0
    %3332 = vmatpush2.msra.mxu0 0.0
    %3333 = vmatprep.subr.mxu0 0.0
    %3334 = vmatpush2.msra.mxu0 0.0
    %3335 = vmatprep.subr.mxu0 0.0
    %3336 = vmatpush2.msra.mxu0 0.0
    %3337 = vmatprep.subr.mxu0 0.0
    %3338 = vmatpush2.msra.mxu0 0.0
    %3339 = vmatprep.subr.mxu0 0.0
    %3340 = vmatpush2.msra.mxu0 0.0
    %3341 = vmatprep.subr.mxu0 0.0
    %3342 = vmatpush2.msra.mxu0 0.0
    %3343 = vmatprep.mubr.f32.mxu0 0.0
    %3344 = vmatmul.mubr.f32.gmra.mxu0 %v3274
    %v3345 = vpop.f32.mrf.mxu0
    %v3346 = vadd.f32 %v3271, %v3345
    %v3347 = vpop.f32.mrf.mxu0
    %3348 = vmatprep.mubr.f32.mxu0 0.0
    %3349 = vmatmul.mubr.f32.gmra.mxu0 %v3277
    %v3350 = vpop.f32.mrf.mxu0
    %v3351 = vadd.f32 %v3271, %v3350
    %v3352 = vpop.f32.mrf.mxu0
    %3353 = vdwg.mxu0
    %v3354 = vadd.f32 %v2609, %v3346
    %v3355 = vadd.f32 %v2610, %v3351
    %s3356 = scalar_lea.vmem %s13, 256
    %v3357 = vld [vmem:[%s3356] sm:$0xff]
    %v3358 = vld [vmem:[%s3356 + $0x8] sm:$0xff]
    %v3359 = vld [vmem:[%s3356 + $0x10] sm:$0xff]
    %v3360 = vld [vmem:[%s3356 + $0x18] sm:$0xff]
    %v3361 = vld [vmem:[%s3356 + $0x20] sm:$0xff]
    %v3362 = vld [vmem:[%s3356 + $0x28] sm:$0xff]
    %v3363 = vld [vmem:[%s3356 + $0x30] sm:$0xff]
    %v3364 = vld [vmem:[%s3356 + $0x38] sm:$0xff]
    %v3365 = vld [vmem:[%s3356 + $0x40] sm:$0xff]
    %v3366 = vld [vmem:[%s3356 + $0x48] sm:$0xff]
    %v3367 = vld [vmem:[%s3356 + $0x50] sm:$0xff]
    %v3368 = vld [vmem:[%s3356 + $0x58] sm:$0xff]
    %v3369 = vld [vmem:[%s3356 + $0x60] sm:$0xff]
    %v3370 = vld [vmem:[%s3356 + $0x68] sm:$0xff]
    %v3371 = vld [vmem:[%s3356 + $0x70] sm:$0xff]
    %v3372 = vld [vmem:[%s3356 + $0x78] sm:$0xff]
    %s3373 = scalar_lea.vmem %s14, 8
    %v3374 = vld [vmem:[%s3373] sm:$0xf]
    %v3376 = vlaneseq
    %v3377 = vshrl.u32 %v3376, 7
    %v3378 = vsub.s32 0, %v3377
    %v3379 = vrot.slane %v3374, %v3378
    %v3380 = vlaneseq
    %v3381 = vshrl.u32 %v3380, 7
    %v3382 = vsub.s32 1, %v3381
    %v3383 = vrot.slane %v3374, %v3382
    %v3384 = vlaneseq
    %v3385 = vshrl.u32 %v3384, 7
    %v3386 = vsub.s32 2, %v3385
    %v3387 = vrot.slane %v3374, %v3386
    %v3388 = vlaneseq
    %v3389 = vshrl.u32 %v3388, 7
    %v3390 = vsub.s32 3, %v3389
    %v3391 = vrot.slane %v3374, %v3390
    %v3397 = vsel %vm155, %v3354, 0
    %v3400 = vsel %vm155, %v3355, 0
    %3402 = vmatprep.subr.mxu0 0.0
    %3403 = vmatpush1.msra.mxu0 0.0
    %3404 = vmatprep.subr.mxu0 0.0
    %3405 = vmatpush1.msra.mxu0 0.0
    %3406 = vmatprep.subr.mxu0 0.0
    %3407 = vmatpush1.msra.mxu0 0.0
    %3408 = vmatprep.subr.mxu0 0.0
    %3409 = vmatpush1.msra.mxu0 0.0
    %3410 = vmatprep.subr.mxu0 0.0
    %3411 = vmatpush1.msra.mxu0 0.0
    %3412 = vmatprep.subr.mxu0 0.0
    %3413 = vmatpush1.msra.mxu0 0.0
    %3414 = vmatprep.subr.mxu0 0.0
    %3415 = vmatpush1.msra.mxu0 0.0
    %3416 = vmatprep.subr.mxu0 0.0
    %3417 = vmatpush1.msra.mxu0 0.0
    %3418 = vmatprep.subr.mxu0 0.0
    %3419 = vmatpush1.msra.mxu0 0.0
    %3420 = vmatprep.subr.mxu0 0.0
    %3421 = vmatpush1.msra.mxu0 0.0
    %3422 = vmatprep.subr.mxu0 0.0
    %3423 = vmatpush1.msra.mxu0 0.0
    %3424 = vmatprep.subr.mxu0 0.0
    %3425 = vmatpush1.msra.mxu0 0.0
    %3426 = vmatprep.subr.mxu0 %v3370
    %3427 = vmatpush1.msra.mxu0 %v3369
    %3428 = vmatprep.subr.mxu0 %v3366
    %3429 = vmatpush1.msra.mxu0 %v3365
    %3430 = vmatprep.subr.mxu0 %v3362
    %3431 = vmatpush1.msra.mxu0 %v3361
    %3432 = vmatprep.subr.mxu0 %v3358
    %3433 = vmatpush1.msra.mxu0 %v3357
    %3434 = vmatprep.subr.mxu0 0.0
    %3435 = vmatpush2.msra.mxu0 0.0
    %3436 = vmatprep.subr.mxu0 0.0
    %3437 = vmatpush2.msra.mxu0 0.0
    %3438 = vmatprep.subr.mxu0 0.0
    %3439 = vmatpush2.msra.mxu0 0.0
    %3440 = vmatprep.subr.mxu0 0.0
    %3441 = vmatpush2.msra.mxu0 0.0
    %3442 = vmatprep.subr.mxu0 0.0
    %3443 = vmatpush2.msra.mxu0 0.0
    %3444 = vmatprep.subr.mxu0 0.0
    %3445 = vmatpush2.msra.mxu0 0.0
    %3446 = vmatprep.subr.mxu0 0.0
    %3447 = vmatpush2.msra.mxu0 0.0
    %3448 = vmatprep.subr.mxu0 0.0
    %3449 = vmatpush2.msra.mxu0 0.0
    %3450 = vmatprep.subr.mxu0 0.0
    %3451 = vmatpush2.msra.mxu0 0.0
    %3452 = vmatprep.subr.mxu0 0.0
    %3453 = vmatpush2.msra.mxu0 0.0
    %3454 = vmatprep.subr.mxu0 0.0
    %3455 = vmatpush2.msra.mxu0 0.0
    %3456 = vmatprep.subr.mxu0 0.0
    %3457 = vmatpush2.msra.mxu0 0.0
    %3458 = vmatprep.subr.mxu0 0.0
    %3459 = vmatpush2.msra.mxu0 0.0
    %3460 = vmatprep.subr.mxu0 0.0
    %3461 = vmatpush2.msra.mxu0 0.0
    %3462 = vmatprep.subr.mxu0 0.0
    %3463 = vmatpush2.msra.mxu0 0.0
    %3464 = vmatprep.subr.mxu0 0.0
    %3465 = vmatpush2.msra.mxu0 0.0
    %3466 = vmatprep.mubr.f32.mxu0 0.0
    %3467 = vmatmul.mubr.f32.gmra.mxu0 %v3397
    %v3468 = vpop.f32.mrf.mxu0
    %v3469 = vadd.f32 %v3379, %v3468
    %v3470 = vpop.f32.mrf.mxu0
    %v3471 = vadd.f32 %v3383, %v3470
    %3472 = vmatprep.mubr.f32.mxu0 0.0
    %3473 = vmatmul.mubr.f32.gmra.mxu0 %v3400
    %v3474 = vpop.f32.mrf.mxu0
    %v3475 = vadd.f32 %v3379, %v3474
    %v3476 = vpop.f32.mrf.mxu0
    %v3477 = vadd.f32 %v3383, %v3476
    %3478 = vdwg.mxu0
    %3479 = vmatprep.subr.mxu0 0.0
    %3480 = vmatpush1.msra.mxu0 0.0
    %3481 = vmatprep.subr.mxu0 0.0
    %3482 = vmatpush1.msra.mxu0 0.0
    %3483 = vmatprep.subr.mxu0 0.0
    %3484 = vmatpush1.msra.mxu0 0.0
    %3485 = vmatprep.subr.mxu0 0.0
    %3486 = vmatpush1.msra.mxu0 0.0
    %3487 = vmatprep.subr.mxu0 0.0
    %3488 = vmatpush1.msra.mxu0 0.0
    %3489 = vmatprep.subr.mxu0 0.0
    %3490 = vmatpush1.msra.mxu0 0.0
    %3491 = vmatprep.subr.mxu0 0.0
    %3492 = vmatpush1.msra.mxu0 0.0
    %3493 = vmatprep.subr.mxu0 0.0
    %3494 = vmatpush1.msra.mxu0 0.0
    %3495 = vmatprep.subr.mxu0 0.0
    %3496 = vmatpush1.msra.mxu0 0.0
    %3497 = vmatprep.subr.mxu0 0.0
    %3498 = vmatpush1.msra.mxu0 0.0
    %3499 = vmatprep.subr.mxu0 0.0
    %3500 = vmatpush1.msra.mxu0 0.0
    %3501 = vmatprep.subr.mxu0 0.0
    %3502 = vmatpush1.msra.mxu0 0.0
    %3503 = vmatprep.subr.mxu0 %v3372
    %3504 = vmatpush1.msra.mxu0 %v3371
    %3505 = vmatprep.subr.mxu0 %v3368
    %3506 = vmatpush1.msra.mxu0 %v3367
    %3507 = vmatprep.subr.mxu0 %v3364
    %3508 = vmatpush1.msra.mxu0 %v3363
    %3509 = vmatprep.subr.mxu0 %v3360
    %3510 = vmatpush1.msra.mxu0 %v3359
    %3511 = vmatprep.subr.mxu0 0.0
    %3512 = vmatpush2.msra.mxu0 0.0
    %3513 = vmatprep.subr.mxu0 0.0
    %3514 = vmatpush2.msra.mxu0 0.0
    %3515 = vmatprep.subr.mxu0 0.0
    %3516 = vmatpush2.msra.mxu0 0.0
    %3517 = vmatprep.subr.mxu0 0.0
    %3518 = vmatpush2.msra.mxu0 0.0
    %3519 = vmatprep.subr.mxu0 0.0
    %3520 = vmatpush2.msra.mxu0 0.0
    %3521 = vmatprep.subr.mxu0 0.0
    %3522 = vmatpush2.msra.mxu0 0.0
    %3523 = vmatprep.subr.mxu0 0.0
    %3524 = vmatpush2.msra.mxu0 0.0
    %3525 = vmatprep.subr.mxu0 0.0
    %3526 = vmatpush2.msra.mxu0 0.0
    %3527 = vmatprep.subr.mxu0 0.0
    %3528 = vmatpush2.msra.mxu0 0.0
    %3529 = vmatprep.subr.mxu0 0.0
    %3530 = vmatpush2.msra.mxu0 0.0
    %3531 = vmatprep.subr.mxu0 0.0
    %3532 = vmatpush2.msra.mxu0 0.0
    %3533 = vmatprep.subr.mxu0 0.0
    %3534 = vmatpush2.msra.mxu0 0.0
    %3535 = vmatprep.subr.mxu0 0.0
    %3536 = vmatpush2.msra.mxu0 0.0
    %3537 = vmatprep.subr.mxu0 0.0
    %3538 = vmatpush2.msra.mxu0 0.0
    %3539 = vmatprep.subr.mxu0 0.0
    %3540 = vmatpush2.msra.mxu0 0.0
    %3541 = vmatprep.subr.mxu0 0.0
    %3542 = vmatpush2.msra.mxu0 0.0
    %3543 = vmatprep.mubr.f32.mxu0 0.0
    %3544 = vmatmul.mubr.f32.gmra.mxu0 %v3397
    %v3545 = vpop.f32.mrf.mxu0
    %v3546 = vadd.f32 %v3387, %v3545
    %v3547 = vpop.f32.mrf.mxu0
    %v3548 = vadd.f32 %v3391, %v3547
    %3549 = vmatprep.mubr.f32.mxu0 0.0
    %3550 = vmatmul.mubr.f32.gmra.mxu0 %v3400
    %v3551 = vpop.f32.mrf.mxu0
    %v3552 = vadd.f32 %v3387, %v3551
    %v3553 = vpop.f32.mrf.mxu0
    %v3554 = vadd.f32 %v3391, %v3553
    %3555 = vdwg.mxu0
    %v3556 = vmax.f32 %v3469, 0.0
    %v3557 = vmax.f32 %v3471, 0.0
    %v3558 = vmax.f32 %v3546, 0.0
    %v3559 = vmax.f32 %v3548, 0.0
    %v3560 = vmax.f32 %v3475, 0.0
    %v3561 = vmax.f32 %v3477, 0.0
    %v3562 = vmax.f32 %v3552, 0.0
    %v3563 = vmax.f32 %v3554, 0.0
    %s3564 = scalar_lea.vmem %s15, 1024
    %v3565 = vld [vmem:[%s3564] sm:$0xff]
    %v3566 = vld [vmem:[%s3564 + $0x8] sm:$0xff]
    %v3567 = vld [vmem:[%s3564 + $0x10] sm:$0xff]
    %v3568 = vld [vmem:[%s3564 + $0x18] sm:$0xff]
    %v3569 = vld [vmem:[%s3564 + $0x20] sm:$0xff]
    %v3570 = vld [vmem:[%s3564 + $0x28] sm:$0xff]
    %v3571 = vld [vmem:[%s3564 + $0x30] sm:$0xff]
    %v3572 = vld [vmem:[%s3564 + $0x38] sm:$0xff]
    %v3573 = vld [vmem:[%s3564 + $0x40] sm:$0xff]
    %v3574 = vld [vmem:[%s3564 + $0x48] sm:$0xff]
    %v3575 = vld [vmem:[%s3564 + $0x50] sm:$0xff]
    %v3576 = vld [vmem:[%s3564 + $0x58] sm:$0xff]
    %v3577 = vld [vmem:[%s3564 + $0x60] sm:$0xff]
    %v3578 = vld [vmem:[%s3564 + $0x68] sm:$0xff]
    %v3579 = vld [vmem:[%s3564 + $0x70] sm:$0xff]
    %v3580 = vld [vmem:[%s3564 + $0x78] sm:$0xff]
    %v3581 = vld [vmem:[%s3564 + $0x80] sm:$0xff]
    %v3582 = vld [vmem:[%s3564 + $0x88] sm:$0xff]
    %v3583 = vld [vmem:[%s3564 + $0x90] sm:$0xff]
    %v3584 = vld [vmem:[%s3564 + $0x98] sm:$0xff]
    %v3585 = vld [vmem:[%s3564 + $0xa0] sm:$0xff]
    %v3586 = vld [vmem:[%s3564 + $0xa8] sm:$0xff]
    %v3587 = vld [vmem:[%s3564 + $0xb0] sm:$0xff]
    %v3588 = vld [vmem:[%s3564 + $0xb8] sm:$0xff]
    %v3589 = vld [vmem:[%s3564 + $0xc0] sm:$0xff]
    %v3590 = vld [vmem:[%s3564 + $0xc8] sm:$0xff]
    %v3591 = vld [vmem:[%s3564 + $0xd0] sm:$0xff]
    %v3592 = vld [vmem:[%s3564 + $0xd8] sm:$0xff]
    %v3593 = vld [vmem:[%s3564 + $0xe0] sm:$0xff]
    %v3594 = vld [vmem:[%s3564 + $0xe8] sm:$0xff]
    %v3595 = vld [vmem:[%s3564 + $0xf0] sm:$0xff]
    %v3596 = vld [vmem:[%s3564 + $0xf8] sm:$0xff]
    %v3597 = vld [vmem:[%s3564 + $0x100] sm:$0xff]
    %v3598 = vld [vmem:[%s3564 + $0x108] sm:$0xff]
    %v3599 = vld [vmem:[%s3564 + $0x110] sm:$0xff]
    %v3600 = vld [vmem:[%s3564 + $0x118] sm:$0xff]
    %v3601 = vld [vmem:[%s3564 + $0x120] sm:$0xff]
    %v3602 = vld [vmem:[%s3564 + $0x128] sm:$0xff]
    %v3603 = vld [vmem:[%s3564 + $0x130] sm:$0xff]
    %v3604 = vld [vmem:[%s3564 + $0x138] sm:$0xff]
    %v3605 = vld [vmem:[%s3564 + $0x140] sm:$0xff]
    %v3606 = vld [vmem:[%s3564 + $0x148] sm:$0xff]
    %v3607 = vld [vmem:[%s3564 + $0x150] sm:$0xff]
    %v3608 = vld [vmem:[%s3564 + $0x158] sm:$0xff]
    %v3609 = vld [vmem:[%s3564 + $0x160] sm:$0xff]
    %v3610 = vld [vmem:[%s3564 + $0x168] sm:$0xff]
    %v3611 = vld [vmem:[%s3564 + $0x170] sm:$0xff]
    %v3612 = vld [vmem:[%s3564 + $0x178] sm:$0xff]
    %v3613 = vld [vmem:[%s3564 + $0x180] sm:$0xff]
    %v3614 = vld [vmem:[%s3564 + $0x188] sm:$0xff]
    %v3615 = vld [vmem:[%s3564 + $0x190] sm:$0xff]
    %v3616 = vld [vmem:[%s3564 + $0x198] sm:$0xff]
    %v3617 = vld [vmem:[%s3564 + $0x1a0] sm:$0xff]
    %v3618 = vld [vmem:[%s3564 + $0x1a8] sm:$0xff]
    %v3619 = vld [vmem:[%s3564 + $0x1b0] sm:$0xff]
    %v3620 = vld [vmem:[%s3564 + $0x1b8] sm:$0xff]
    %v3621 = vld [vmem:[%s3564 + $0x1c0] sm:$0xff]
    %v3622 = vld [vmem:[%s3564 + $0x1c8] sm:$0xff]
    %v3623 = vld [vmem:[%s3564 + $0x1d0] sm:$0xff]
    %v3624 = vld [vmem:[%s3564 + $0x1d8] sm:$0xff]
    %v3625 = vld [vmem:[%s3564 + $0x1e0] sm:$0xff]
    %v3626 = vld [vmem:[%s3564 + $0x1e8] sm:$0xff]
    %v3627 = vld [vmem:[%s3564 + $0x1f0] sm:$0xff]
    %v3628 = vld [vmem:[%s3564 + $0x1f8] sm:$0xff]
    %s3629 = scalar_lea.vmem %s16, 2
    %v3630 = vld [vmem:[%s3629] sm:$0x1]
    %v3632 = vlaneseq
    %v3633 = vshrl.u32 %v3632, 7
    %v3634 = vsub.s32 0, %v3633
    %v3635 = vrot.slane %v3630, %v3634
    %3637 = vmatprep.subr.mxu0 0.0
    %3638 = vmatpush1.msra.mxu0 %v3580
    %3639 = vmatprep.subr.mxu0 0.0
    %3640 = vmatpush1.msra.mxu0 %v3579
    %3641 = vmatprep.subr.mxu0 0.0
    %3642 = vmatpush1.msra.mxu0 %v3578
    %3643 = vmatprep.subr.mxu0 0.0
    %3644 = vmatpush1.msra.mxu0 %v3577
    %3645 = vmatprep.subr.mxu0 0.0
    %3646 = vmatpush1.msra.mxu0 %v3576
    %3647 = vmatprep.subr.mxu0 0.0
    %3648 = vmatpush1.msra.mxu0 %v3575
    %3649 = vmatprep.subr.mxu0 0.0
    %3650 = vmatpush1.msra.mxu0 %v3574
    %3651 = vmatprep.subr.mxu0 0.0
    %3652 = vmatpush1.msra.mxu0 %v3573
    %3653 = vmatprep.subr.mxu0 0.0
    %3654 = vmatpush1.msra.mxu0 %v3572
    %3655 = vmatprep.subr.mxu0 0.0
    %3656 = vmatpush1.msra.mxu0 %v3571
    %3657 = vmatprep.subr.mxu0 0.0
    %3658 = vmatpush1.msra.mxu0 %v3570
    %3659 = vmatprep.subr.mxu0 0.0
    %3660 = vmatpush1.msra.mxu0 %v3569
    %3661 = vmatprep.subr.mxu0 0.0
    %3662 = vmatpush1.msra.mxu0 %v3568
    %3663 = vmatprep.subr.mxu0 0.0
    %3664 = vmatpush1.msra.mxu0 %v3567
    %3665 = vmatprep.subr.mxu0 0.0
    %3666 = vmatpush1.msra.mxu0 %v3566
    %3667 = vmatprep.subr.mxu0 0.0
    %3668 = vmatpush1.msra.mxu0 %v3565
    %3669 = vmatprep.subr.mxu0 0.0
    %3670 = vmatpush2.msra.mxu0 %v3596
    %3671 = vmatprep.subr.mxu0 0.0
    %3672 = vmatpush2.msra.mxu0 %v3595
    %3673 = vmatprep.subr.mxu0 0.0
    %3674 = vmatpush2.msra.mxu0 %v3594
    %3675 = vmatprep.subr.mxu0 0.0
    %3676 = vmatpush2.msra.mxu0 %v3593
    %3677 = vmatprep.subr.mxu0 0.0
    %3678 = vmatpush2.msra.mxu0 %v3592
    %3679 = vmatprep.subr.mxu0 0.0
    %3680 = vmatpush2.msra.mxu0 %v3591
    %3681 = vmatprep.subr.mxu0 0.0
    %3682 = vmatpush2.msra.mxu0 %v3590
    %3683 = vmatprep.subr.mxu0 0.0
    %3684 = vmatpush2.msra.mxu0 %v3589
    %3685 = vmatprep.subr.mxu0 0.0
    %3686 = vmatpush2.msra.mxu0 %v3588
    %3687 = vmatprep.subr.mxu0 0.0
    %3688 = vmatpush2.msra.mxu0 %v3587
    %3689 = vmatprep.subr.mxu0 0.0
    %3690 = vmatpush2.msra.mxu0 %v3586
    %3691 = vmatprep.subr.mxu0 0.0
    %3692 = vmatpush2.msra.mxu0 %v3585
    %3693 = vmatprep.subr.mxu0 0.0
    %3694 = vmatpush2.msra.mxu0 %v3584
    %3695 = vmatprep.subr.mxu0 0.0
    %3696 = vmatpush2.msra.mxu0 %v3583
    %3697 = vmatprep.subr.mxu0 0.0
    %3698 = vmatpush2.msra.mxu0 %v3582
    %3699 = vmatprep.subr.mxu0 0.0
    %3700 = vmatpush2.msra.mxu0 %v3581
    %3701 = vmatprep.mubr.f32.mxu0 %v3557
    %3702 = vmatmul.mubr.f32.gmra.mxu0 %v3556
    %v3703 = vpop.f32.mrf.mxu0
    %v3704 = vadd.f32 %v3635, %v3703
    %v3705 = vpop.f32.mrf.mxu0
    %3706 = vmatprep.mubr.f32.mxu0 %v3561
    %3707 = vmatmul.mubr.f32.gmra.mxu0 %v3560
    %v3708 = vpop.f32.mrf.mxu0
    %v3709 = vadd.f32 %v3635, %v3708
    %v3710 = vpop.f32.mrf.mxu0
    %3711 = vdwg.mxu0
    %3712 = vmatprep.subr.mxu0 0.0
    %3713 = vmatpush1.msra.mxu0 %v3612
    %3714 = vmatprep.subr.mxu0 0.0
    %3715 = vmatpush1.msra.mxu0 %v3611
    %3716 = vmatprep.subr.mxu0 0.0
    %3717 = vmatpush1.msra.mxu0 %v3610
    %3718 = vmatprep.subr.mxu0 0.0
    %3719 = vmatpush1.msra.mxu0 %v3609
    %3720 = vmatprep.subr.mxu0 0.0
    %3721 = vmatpush1.msra.mxu0 %v3608
    %3722 = vmatprep.subr.mxu0 0.0
    %3723 = vmatpush1.msra.mxu0 %v3607
    %3724 = vmatprep.subr.mxu0 0.0
    %3725 = vmatpush1.msra.mxu0 %v3606
    %3726 = vmatprep.subr.mxu0 0.0
    %3727 = vmatpush1.msra.mxu0 %v3605
    %3728 = vmatprep.subr.mxu0 0.0
    %3729 = vmatpush1.msra.mxu0 %v3604
    %3730 = vmatprep.subr.mxu0 0.0
    %3731 = vmatpush1.msra.mxu0 %v3603
    %3732 = vmatprep.subr.mxu0 0.0
    %3733 = vmatpush1.msra.mxu0 %v3602
    %3734 = vmatprep.subr.mxu0 0.0
    %3735 = vmatpush1.msra.mxu0 %v3601
    %3736 = vmatprep.subr.mxu0 0.0
    %3737 = vmatpush1.msra.mxu0 %v3600
    %3738 = vmatprep.subr.mxu0 0.0
    %3739 = vmatpush1.msra.mxu0 %v3599
    %3740 = vmatprep.subr.mxu0 0.0
    %3741 = vmatpush1.msra.mxu0 %v3598
    %3742 = vmatprep.subr.mxu0 0.0
    %3743 = vmatpush1.msra.mxu0 %v3597
    %3744 = vmatprep.subr.mxu0 0.0
    %3745 = vmatpush2.msra.mxu0 %v3628
    %3746 = vmatprep.subr.mxu0 0.0
    %3747 = vmatpush2.msra.mxu0 %v3627
    %3748 = vmatprep.subr.mxu0 0.0
    %3749 = vmatpush2.msra.mxu0 %v3626
    %3750 = vmatprep.subr.mxu0 0.0
    %3751 = vmatpush2.msra.mxu0 %v3625
    %3752 = vmatprep.subr.mxu0 0.0
    %3753 = vmatpush2.msra.mxu0 %v3624
    %3754 = vmatprep.subr.mxu0 0.0
    %3755 = vmatpush2.msra.mxu0 %v3623
    %3756 = vmatprep.subr.mxu0 0.0
    %3757 = vmatpush2.msra.mxu0 %v3622
    %3758 = vmatprep.subr.mxu0 0.0
    %3759 = vmatpush2.msra.mxu0 %v3621
    %3760 = vmatprep.subr.mxu0 0.0
    %3761 = vmatpush2.msra.mxu0 %v3620
    %3762 = vmatprep.subr.mxu0 0.0
    %3763 = vmatpush2.msra.mxu0 %v3619
    %3764 = vmatprep.subr.mxu0 0.0
    %3765 = vmatpush2.msra.mxu0 %v3618
    %3766 = vmatprep.subr.mxu0 0.0
    %3767 = vmatpush2.msra.mxu0 %v3617
    %3768 = vmatprep.subr.mxu0 0.0
    %3769 = vmatpush2.msra.mxu0 %v3616
    %3770 = vmatprep.subr.mxu0 0.0
    %3771 = vmatpush2.msra.mxu0 %v3615
    %3772 = vmatprep.subr.mxu0 0.0
    %3773 = vmatpush2.msra.mxu0 %v3614
    %3774 = vmatprep.subr.mxu0 0.0
    %3775 = vmatpush2.msra.mxu0 %v3613
    %3776 = vmatprep.mubr.f32.mxu0 %v3559
    %3777 = vmatmul.mubr.f32.gmra.mxu0 %v3558
    %v3778 = vpop.f32.mrf.mxu0
    %v3779 = vadd.f32 %v3704, %v3778
    %v3780 = vpop.f32.mrf.mxu0
    %3781 = vmatprep.mubr.f32.mxu0 %v3563
    %3782 = vmatmul.mubr.f32.gmra.mxu0 %v3562
    %v3783 = vpop.f32.mrf.mxu0
    %v3784 = vadd.f32 %v3709, %v3783
    %v3785 = vpop.f32.mrf.mxu0
    %3786 = vdwg.mxu0
    %v3787 = vadd.f32 %v3354, %v3779
    %v3788 = vadd.f32 %v3355, %v3784
    %3789 = vst.msk [vmem:[#allocation4] sm:$0xff] %vm155, %v3787
    %3790 = vst.msk [vmem:[#allocation4 + $0x8] sm:$0xff] %vm155, %v3788
    %v3791 = vld [vmem:[%s8] sm:$0x3]
    %v3793 = vsel %vm346, %v3791, 0
    %3795 = vmatprep.subr.mxu0 0.0
    %3796 = vmatpush1.msra.mxu0 0.0
    %3797 = vmatprep.subr.mxu0 0.0
    %3798 = vmatpush1.msra.mxu0 0.0
    %3799 = vmatprep.subr.mxu0 0.0
    %3800 = vmatpush1.msra.mxu0 0.0
    %3801 = vmatprep.subr.mxu0 0.0
    %3802 = vmatpush1.msra.mxu0 0.0
    %3803 = vmatprep.subr.mxu0 0.0
    %3804 = vmatpush1.msra.mxu0 0.0
    %3805 = vmatprep.subr.mxu0 0.0
    %3806 = vmatpush1.msra.mxu0 0.0
    %3807 = vmatprep.subr.mxu0 0.0
    %3808 = vmatpush1.msra.mxu0 0.0
    %3809 = vmatprep.subr.mxu0 0.0
    %3810 = vmatpush1.msra.mxu0 0.0
    %3811 = vmatprep.subr.mxu0 0.0
    %3812 = vmatpush1.msra.mxu0 0.0
    %3813 = vmatprep.subr.mxu0 0.0
    %3814 = vmatpush1.msra.mxu0 0.0
    %3815 = vmatprep.subr.mxu0 0.0
    %3816 = vmatpush1.msra.mxu0 0.0
    %3817 = vmatprep.subr.mxu0 0.0
    %3818 = vmatpush1.msra.mxu0 0.0
    %3819 = vmatprep.subr.mxu0 0.0
    %3820 = vmatpush1.msra.mxu0 0.0
    %3821 = vmatprep.subr.mxu0 0.0
    %3822 = vmatpush1.msra.mxu0 0.0
    %3823 = vmatprep.subr.mxu0 0.0
    %3824 = vmatpush1.msra.mxu0 %v3788
    %3825 = vmatprep.subr.mxu0 0.0
    %3826 = vmatpush1.msra.mxu0 %v3787
    %3827 = vmatprep.subr.mxu0 0.0
    %3828 = vmatpush2.msra.mxu0 0.0
    %3829 = vmatprep.subr.mxu0 0.0
    %3830 = vmatpush2.msra.mxu0 0.0
    %3831 = vmatprep.subr.mxu0 0.0
    %3832 = vmatpush2.msra.mxu0 0.0
    %3833 = vmatprep.subr.mxu0 0.0
    %3834 = vmatpush2.msra.mxu0 0.0
    %3835 = vmatprep.subr.mxu0 0.0
    %3836 = vmatpush2.msra.mxu0 0.0
    %3837 = vmatprep.subr.mxu0 0.0
    %3838 = vmatpush2.msra.mxu0 0.0
    %3839 = vmatprep.subr.mxu0 0.0
    %3840 = vmatpush2.msra.mxu0 0.0
    %3841 = vmatprep.subr.mxu0 0.0
    %3842 = vmatpush2.msra.mxu0 0.0
    %3843 = vmatprep.subr.mxu0 0.0
    %3844 = vmatpush2.msra.mxu0 0.0
    %3845 = vmatprep.subr.mxu0 0.0
    %3846 = vmatpush2.msra.mxu0 0.0
    %3847 = vmatprep.subr.mxu0 0.0
    %3848 = vmatpush2.msra.mxu0 0.0
    %3849 = vmatprep.subr.mxu0 0.0
    %3850 = vmatpush2.msra.mxu0 0.0
    %3851 = vmatprep.subr.mxu0 0.0
    %3852 = vmatpush2.msra.mxu0 0.0
    %3853 = vmatprep.subr.mxu0 0.0
    %3854 = vmatpush2.msra.mxu0 0.0
    %3855 = vmatprep.subr.mxu0 0.0
    %3856 = vmatpush2.msra.mxu0 0.0
    %3857 = vmatprep.subr.mxu0 0.0
    %3858 = vmatpush2.msra.mxu0 0.0
    %3859 = vmatprep.mubr.f32.mxu0 0.0
    %3860 = vmatmul.mubr.f32.gmra.mxu0 %v3793
    %v3861 = vpop.f32.mrf.mxu0
    %v3862 = vadd.f32 0.0, %v3861
    %v3863 = vpop.f32.mrf.mxu0
    %3864 = vdwg.mxu0
    %v3865 = vld [vmem:[%s17] sm:$0xff]
    %v3866 = vld [vmem:[%s17 + $0x8] sm:$0xff]
    %v3867 = vld [vmem:[%s17 + $0x10] sm:$0xff]
    %v3868 = vld [vmem:[%s17 + $0x18] sm:$0xff]
    %v3869 = vld [vmem:[%s18] sm:$0x1]
    %v3871 = vlaneseq
    %v3872 = vshrl.u32 %v3871, 7
    %v3873 = vsub.s32 0, %v3872
    %v3874 = vrot.slane %v3869, %v3873
    %v3877 = vsel %vm155, %v3862, 0
    %3879 = vmatprep.subr.mxu0 0.0
    %3880 = vmatpush1.msra.mxu0 0.0
    %3881 = vmatprep.subr.mxu0 0.0
    %3882 = vmatpush1.msra.mxu0 0.0
    %3883 = vmatprep.subr.mxu0 0.0
    %3884 = vmatpush1.msra.mxu0 0.0
    %3885 = vmatprep.subr.mxu0 0.0
    %3886 = vmatpush1.msra.mxu0 0.0
    %3887 = vmatprep.subr.mxu0 0.0
    %3888 = vmatpush1.msra.mxu0 0.0
    %3889 = vmatprep.subr.mxu0 0.0
    %3890 = vmatpush1.msra.mxu0 0.0
    %3891 = vmatprep.subr.mxu0 0.0
    %3892 = vmatpush1.msra.mxu0 0.0
    %3893 = vmatprep.subr.mxu0 0.0
    %3894 = vmatpush1.msra.mxu0 0.0
    %3895 = vmatprep.subr.mxu0 0.0
    %3896 = vmatpush1.msra.mxu0 0.0
    %3897 = vmatprep.subr.mxu0 0.0
    %3898 = vmatpush1.msra.mxu0 0.0
    %3899 = vmatprep.subr.mxu0 0.0
    %3900 = vmatpush1.msra.mxu0 0.0
    %3901 = vmatprep.subr.mxu0 0.0
    %3902 = vmatpush1.msra.mxu0 0.0
    %3903 = vmatprep.subr.mxu0 0.0
    %3904 = vmatpush1.msra.mxu0 %v3868
    %3905 = vmatprep.subr.mxu0 0.0
    %3906 = vmatpush1.msra.mxu0 %v3867
    %3907 = vmatprep.subr.mxu0 0.0
    %3908 = vmatpush1.msra.mxu0 %v3866
    %3909 = vmatprep.subr.mxu0 0.0
    %3910 = vmatpush1.msra.mxu0 %v3865
    %3911 = vmatprep.subr.mxu0 0.0
    %3912 = vmatpush2.msra.mxu0 0.0
    %3913 = vmatprep.subr.mxu0 0.0
    %3914 = vmatpush2.msra.mxu0 0.0
    %3915 = vmatprep.subr.mxu0 0.0
    %3916 = vmatpush2.msra.mxu0 0.0
    %3917 = vmatprep.subr.mxu0 0.0
    %3918 = vmatpush2.msra.mxu0 0.0
    %3919 = vmatprep.subr.mxu0 0.0
    %3920 = vmatpush2.msra.mxu0 0.0
    %3921 = vmatprep.subr.mxu0 0.0
    %3922 = vmatpush2.msra.mxu0 0.0
    %3923 = vmatprep.subr.mxu0 0.0
    %3924 = vmatpush2.msra.mxu0 0.0
    %3925 = vmatprep.subr.mxu0 0.0
    %3926 = vmatpush2.msra.mxu0 0.0
    %3927 = vmatprep.subr.mxu0 0.0
    %3928 = vmatpush2.msra.mxu0 0.0
    %3929 = vmatprep.subr.mxu0 0.0
    %3930 = vmatpush2.msra.mxu0 0.0
    %3931 = vmatprep.subr.mxu0 0.0
    %3932 = vmatpush2.msra.mxu0 0.0
    %3933 = vmatprep.subr.mxu0 0.0
    %3934 = vmatpush2.msra.mxu0 0.0
    %3935 = vmatprep.subr.mxu0 0.0
    %3936 = vmatpush2.msra.mxu0 0.0
    %3937 = vmatprep.subr.mxu0 0.0
    %3938 = vmatpush2.msra.mxu0 0.0
    %3939 = vmatprep.subr.mxu0 0.0
    %3940 = vmatpush2.msra.mxu0 0.0
    %3941 = vmatprep.subr.mxu0 0.0
    %3942 = vmatpush2.msra.mxu0 0.0
    %3943 = vmatprep.mubr.f32.mxu0 0.0
    %3944 = vmatmul.mubr.f32.gmra.mxu0 %v3877
    %v3945 = vpop.f32.mrf.mxu0
    %v3946 = vadd.f32 %v3874, %v3945
    %v3947 = vpop.f32.mrf.mxu0
    %3948 = vdwg.mxu0
    %v3949 = vld [vmem:[%s19] sm:$0x1]
    %v3951 = vlaneseq
    %v3952 = vshrl.u32 %v3951, 7
    %v3953 = vsub.s32 0, %v3952
    %v3954 = vrot.slane %v3949, %v3953
    %v3956 = vadd.f32 %v3946, %v3954
    %vm3957 = vcmask 254976
    %3958 = vst.msk [vmem:[#allocation6] sm:$0x3] %vm3957, %v3956
    // Predicated region
    $region82: #{hetnet_tsne_forward.1} parent=1 // pred_check
      _
    $region83: #{hetnet_tsne_forward.1} parent=1 // pred_check_branch
      %3960 = sbr.rel (0) target = $region85
    $region84: #{hetnet_tsne_forward.1} parent=1 // pred_region
      %s3962 = ssub.s32 256, 256
      %3963 = vsyncadd [#allocation3], %s3962
      %s3964 = sshll.u32 [#allocation2], 4
      %s3965 = int_to_ptr.vmem [resolvable:$true] %s3964
      %3970 = dma.vmem_to_hbm [thread:$0]  %s3965, 256, %s20, [#allocation3], 128, 128, 8
    $region85: #{hetnet_tsne_forward.1} parent=1 // pred_fallthru
      _
    // Predicated region
    $region86: #{hetnet_tsne_forward.1} parent=1 // pred_check
      _
    $region87: #{hetnet_tsne_forward.1} parent=1 // pred_check_branch
      %3972 = sbr.rel (0) target = $region89
    $region88: #{hetnet_tsne_forward.1} parent=1 // pred_region
      %s3974 = ssub.s32 256, 256
      %3975 = vsyncadd [#allocation5], %s3974
      %s3976 = sshll.u32 [#allocation4], 4
      %s3977 = int_to_ptr.vmem [resolvable:$true] %s3976
      %3982 = dma.vmem_to_hbm [thread:$0]  %s3977, 256, %s21, [#allocation5], 128, 128, 8
    $region89: #{hetnet_tsne_forward.1} parent=1 // pred_fallthru
      _
    // Predicated region
    $region90: #{hetnet_tsne_forward.1} parent=1 // pred_check
      _
    $region91: #{hetnet_tsne_forward.1} parent=1 // pred_check_branch
      %3984 = sbr.rel (0) target = $region93
    $region92: #{hetnet_tsne_forward.1} parent=1 // pred_region
      %s3986 = ssub.s32 32, 32
      %3987 = vsyncadd [#allocation5], %s3986
      %s3989 = sshll.u32 [#allocation6], 4
      %s3990 = int_to_ptr.vmem [resolvable:$true] %s3989
      %3992 = dma.vmem_to_hbm [thread:$0]  %s3990, 32, %s22, [#allocation5]
    $region93: #{hetnet_tsne_forward.1} parent=1 // pred_fallthru
      _
    // Predicated region
    $region94: #{hetnet_tsne_forward.1} parent=1 // pred_check
      _
    $region95: #{hetnet_tsne_forward.1} parent=1 // pred_check_branch
      %3994 = sbr.rel (0) target = $region97
    $region96: #{hetnet_tsne_forward.1} parent=1 // pred_region
      %3995 = dma.done [#allocation3], 256
    $region97: #{hetnet_tsne_forward.1} parent=1 // pred_fallthru
      _
    // Predicated region
    $region98: #{hetnet_tsne_forward.1} parent=1 // pred_check
      _
    $region99: #{hetnet_tsne_forward.1} parent=1 // pred_check_branch
      %3997 = sbr.rel (0) target = $region101
    $region100: #{hetnet_tsne_forward.1} parent=1 // pred_region
      %3998 = dma.done [#allocation5], 256
    $region101: #{hetnet_tsne_forward.1} parent=1 // pred_fallthru
      _
    // Predicated region
    $region102: #{hetnet_tsne_forward.1} parent=1 // pred_check
      _
    $region103: #{hetnet_tsne_forward.1} parent=1 // pred_check_branch
      %4000 = sbr.rel (0) target = $region105
    $region104: #{hetnet_tsne_forward.1} parent=1 // pred_region
      %4001 = dma.done [#allocation5], 32
    $region105: #{hetnet_tsne_forward.1} parent=1 // pred_fallthru
      _
    %4002 = vsyncpa [#allocation3], 1
    %4003 = vsyncpa [#allocation5], 1

</llo_original>
